<compile_context>
chip_gen: v7x
topology: tpu7x:2x2x1
jax: 0.10.0
libtpu: 0.0.40
codegen_flags: <defaults>
</compile_context>

<pallas_src>
import functools

import jax
import jax.numpy as jnp
from jax.experimental import pallas as pl
from jax.experimental.pallas import tpu as pltpu

# Explicit scoped-VMEM budget.  Actual per-step working sets here are < 2 MiB,
# so 32 MiB fits every generation (128 MiB on v5e/v6e, 64 MiB on v7x).
_VMEM_LIMIT = 32 * 1024 * 1024

FEATURE_DIM = 128          # lane-dense channel width (>=128 real output lanes)


def _pick_tile(dim, mult, cap):
    """Largest multiple of `mult` that divides `dim` and is <= cap, otherwise
    the full dim (full-extent blocks are exempt from the (8,128) rule)."""
    best = 0
    t = mult
    limit = min(dim, cap)
    while t <= limit:
        if dim % t == 0:
            best = t
        t += mult
    return best if best else dim


# ----------------------------------------------------------------------------
# Tiled matmul with fused bias / residual-add / ReLU epilogue (MXU, bf16 in,
# f32 accumulate, bf16 out).
# ----------------------------------------------------------------------------

def _matmul_kernel(a_ref, w_ref, b_ref, *rest, relu, has_res):
    if has_res:
        res_ref, o_ref, acc_ref = rest
    else:
        res_ref = None
        o_ref, acc_ref = rest

    @pl.when(pl.program_id(2) == 0)
    def _init():
        acc_ref[...] = jnp.zeros_like(acc_ref)

    acc_ref[...] += jnp.dot(a_ref[...], w_ref[...],
                            preferred_element_type=jnp.float32)

    @pl.when(pl.program_id(2) == pl.num_programs(2) - 1)
    def _finalize():
        r = acc_ref[...] + b_ref[...]                 # (1, tn) bias broadcasts
        if has_res:
            r = r + res_ref[...].astype(jnp.float32)  # fused residual add
        if relu:
            r = jnp.maximum(r, 0.0)
        o_ref[...] = r.astype(o_ref.dtype)


def matmul_bias_act(a, w, b, *, relu, residual=None):
    """a:(M,K) bf16, w:(K,N) bf16, b:(1,N) f32[, residual:(M,N) bf16] -> (M,N) bf16."""
    M, K = a.shape
    Kw, n_out = w.shape
    assert K == Kw
    tm = _pick_tile(M, 8, 512)
    tn = _pick_tile(n_out, 128, 256)
    tk = _pick_tile(K, 128, 512)
    grid = (M // tm, n_out // tn, K // tk)

    in_specs = [
        pl.BlockSpec((tm, tk), lambda i, j, k: (i, k)),
        pl.BlockSpec((tk, tn), lambda i, j, k: (k, j)),
        pl.BlockSpec((1, tn), lambda i, j, k: (0, j)),
    ]
    operands = [a, w, b]
    if residual is not None:
        in_specs.append(pl.BlockSpec((tm, tn), lambda i, j, k: (i, j)))
        operands.append(residual)

    bytes_accessed = (a.size * a.dtype.itemsize + w.size * w.dtype.itemsize
                      + b.size * b.dtype.itemsize + M * n_out * 2)
    if residual is not None:
        bytes_accessed += residual.size * residual.dtype.itemsize
    cost = pl.CostEstimate(flops=2 * M * n_out * K, transcendentals=0,
                           bytes_accessed=bytes_accessed)

    return pl.pallas_call(
        functools.partial(_matmul_kernel, relu=relu,
                          has_res=residual is not None),
        out_shape=jax.ShapeDtypeStruct((M, n_out), jnp.bfloat16),
        grid=grid,
        in_specs=in_specs,
        out_specs=pl.BlockSpec((tm, tn), lambda i, j, k: (i, j)),
        scratch_shapes=[pltpu.VMEM((tm, tn), jnp.float32)],
        compiler_params=pltpu.CompilerParams(
            dimension_semantics=("parallel", "parallel", "arbitrary"),
            vmem_limit_bytes=_VMEM_LIMIT),
        cost_estimate=cost,
    )(*operands)


# ----------------------------------------------------------------------------
# Direct 3x3 stride-1 pad-1 conv (no 9x im2col in HBM): the kernel accumulates
# nine shifted matmuls; column shifts are three host views, row shifts are
# unit-stride slices of the VMEM block.
# ----------------------------------------------------------------------------

def _conv3x3_kernel(x0_ref, x1_ref, x2_ref, w_ref, b_ref, o_ref, *, H, W, relu):
    refs = (x0_ref, x1_ref, x2_ref)
    cout = o_ref.shape[-1]
    acc = jnp.zeros((H * W, cout), jnp.float32)
    for i in range(3):               # row offset inside the 3x3 window
        for j in range(3):           # col offset -> pre-shifted operand j
            a = refs[j][0, i * W:i * W + H * W, :]      # (H*W, Cin)
            acc = acc + jnp.dot(a, w_ref[3 * i + j],
                                preferred_element_type=jnp.float32)
    acc = acc + b_ref[...]
    if relu:
        acc = jnp.maximum(acc, 0.0)
    o_ref[0] = acc.astype(o_ref.dtype)


def conv3x3_s1(x, w9, b, *, relu):
    """x:(N,H,W,Cin) bf16, w9:(9,Cin,Cout) bf16, b:(1,Cout) f32 -> (N,H*W,Cout) bf16."""
    N, H, W, Cin = x.shape
    Cout = w9.shape[-1]
    xp = jnp.pad(x, ((0, 0), (1, 1), (1, 1), (0, 0)))
    # Three column-shifted, row-flattened copies (~3x the small input instead
    # of a 9x im2col matrix); row shifts happen inside the kernel.
    cols = [xp[:, :, j:j + W, :].reshape(N, (H + 2) * W, Cin) for j in range(3)]
    spec_x = pl.BlockSpec((1, (H + 2) * W, Cin), lambda n: (n, 0, 0))
    return pl.pallas_call(
        functools.partial(_conv3x3_kernel, H=H, W=W, relu=relu),
        out_shape=jax.ShapeDtypeStruct((N, H * W, Cout), jnp.bfloat16),
        grid=(N,),
        in_specs=[spec_x, spec_x, spec_x,
                  pl.BlockSpec((9, Cin, Cout), lambda n: (0, 0, 0)),
                  pl.BlockSpec((1, Cout), lambda n: (0, 0))],
        out_specs=pl.BlockSpec((1, H * W, Cout), lambda n: (n, 0, 0)),
        compiler_params=pltpu.CompilerParams(
            dimension_semantics=("parallel",),
            vmem_limit_bytes=_VMEM_LIMIT),
    )(cols[0], cols[1], cols[2], w9, b)


# ----------------------------------------------------------------------------
# MaxPool 3x3 / stride 2 / pad 1 as an in-kernel running max (VPU chain).
# ----------------------------------------------------------------------------

def _maxpool_kernel(a_ref, b_ref, c_ref, o_ref, *, OH):
    # column-direction running max over the three stride-2 column views (f32)
    cm = jnp.maximum(jnp.maximum(a_ref[0].astype(jnp.float32),
                                 b_ref[0].astype(jnp.float32)),
                     c_ref[0].astype(jnp.float32))          # (Hp, OW, C)
    hp, ow, c = cm.shape
    r = cm.reshape(hp // 2, 2, ow, c)    # split rows into even / odd
    re = r[:, 0]                         # rows 0, 2, 4, ...
    ro = r[:, 1]                         # rows 1, 3, 5, ...
    out = jnp.maximum(jnp.maximum(re[:OH], ro[:OH]), re[1:OH + 1])
    o_ref[0] = out.astype(o_ref.dtype)


def maxpool_3x3_s2(x):
    """nn.MaxPool2d(kernel_size=3, stride=2, padding=1) on NHWC (even H, W)."""
    N, H, W, C = x.shape
    assert H % 2 == 0 and W % 2 == 0
    OH, OW = H // 2, W // 2
    xp = jnp.pad(x, ((0, 0), (1, 1), (1, 1), (0, 0)), constant_values=-1e30)
    ca = xp[:, :, 0:2 * OW:2, :]         # three stride-2 column views
    cb = xp[:, :, 1:2 * OW:2, :]
    cc = xp[:, :, 2:2 * OW + 1:2, :]
    spec = pl.BlockSpec((1, H + 2, OW, C), lambda n: (n, 0, 0, 0))
    return pl.pallas_call(
        functools.partial(_maxpool_kernel, OH=OH),
        out_shape=jax.ShapeDtypeStruct((N, OH, OW, C), x.dtype),
        grid=(N,),
        in_specs=[spec, spec, spec],
        out_specs=pl.BlockSpec((1, OH, OW, C), lambda n: (n, 0, 0, 0)),
        compiler_params=pltpu.CompilerParams(
            dimension_semantics=("parallel",),
            vmem_limit_bytes=_VMEM_LIMIT),
    )(ca, cb, cc)


# ----------------------------------------------------------------------------
# AdaptiveAvgPool2d((1,1)) + flatten: tiled running-sum over the spatial axis.
# ----------------------------------------------------------------------------

def _gap_kernel(x_ref, o_ref, acc_ref, *, inv):
    @pl.when(pl.program_id(0) == 0)
    def _init():
        acc_ref[...] = jnp.zeros_like(acc_ref)

    acc_ref[...] += jnp.sum(x_ref[...].astype(jnp.float32), axis=1)

    @pl.when(pl.program_id(0) == pl.num_programs(0) - 1)
    def _finalize():
        o_ref[...] = acc_ref[...] * inv


def global_avg_pool(x):
    """x: (N, HW, C) bf16 -> (N, C) f32."""
    N, HW, C = x.shape
    ts = _pick_tile(HW, 8, 512)
    return pl.pallas_call(
        functools.partial(_gap_kernel, inv=1.0 / HW),
        out_shape=jax.ShapeDtypeStruct((N, C), jnp.float32),
        grid=(HW // ts,),
        in_specs=[pl.BlockSpec((N, ts, C), lambda s: (0, s, 0))],
        out_specs=pl.BlockSpec((N, C), lambda s: (0, 0)),
        scratch_shapes=[pltpu.VMEM((N, C), jnp.float32)],
        compiler_params=pltpu.CompilerParams(
            dimension_semantics=("arbitrary",),
            vmem_limit_bytes=_VMEM_LIMIT),
    )(x)


# ----------------------------------------------------------------------------
# Host-side glue: im2col only for the 7x7 stem (Cin=3 -> tiny matrix).
# ----------------------------------------------------------------------------

def _im2col(x, kh, kw, stride, pad):
    """x: NHWC -> (N*OH*OW, kh*kw*C), columns ordered (kh, kw, cin)."""
    N, H, W, C = x.shape
    if pad:
        x = jnp.pad(x, ((0, 0), (pad, pad), (pad, pad), (0, 0)))
    OH = (H + 2 * pad - kh) // stride + 1
    OW = (W + 2 * pad - kw) // stride + 1
    pieces = []
    for i in range(kh):
        for j in range(kw):
            pieces.append(x[:, i:i + stride * OH:stride,
                            j:j + stride * OW:stride, :])
    cols = jnp.concatenate(pieces, axis=-1)
    return cols.reshape(N * OH * OW, kh * kw * C), OH, OW


# ----------------------------------------------------------------------------
# Deterministic parameters (Conv + BatchNorm folded, inference mode).
# ----------------------------------------------------------------------------

def _fold_bn(key, cin, cout, k):
    kk, kg, kb, km, kv = jax.random.split(key, 5)
    fan_in = cin * k * k
    w = jax.random.normal(kk, (k, k, cin, cout), jnp.float32) * (2.0 / fan_in) ** 0.5
    gamma = 1.0 + 0.1 * jax.random.normal(kg, (cout,), jnp.float32)
    beta = 0.1 * jax.random.normal(kb, (cout,), jnp.float32)
    mean = 0.1 * jax.random.normal(km, (cout,), jnp.float32)
    var = jnp.abs(jax.random.normal(kv, (cout,), jnp.float32)) + 0.5
    scale = gamma / jnp.sqrt(var + 1e-5)
    w_eff = (w * scale).astype(jnp.bfloat16)          # bf16 weights for the MXU
    b_eff = (beta - mean * scale).reshape(1, cout)    # f32 bias (f32 epilogue)
    return w_eff, b_eff


def build_backbone_params(key):
    keys = jax.random.split(key, 8)
    C = FEATURE_DIM

    def mat1x1(k):
        w, b = _fold_bn(k, C, C, 1)
        return w.reshape(C, C), b

    def mat3x3(k):
        w, b = _fold_bn(k, C, C, 3)
        return w.reshape(9, C, C), b

    w1, b1 = _fold_bn(keys[0], 3, C, 7)
    return {
        "conv1":   (w1.reshape(7 * 7 * 3, C), b1),    # stem 7x7/2, 3 -> 128
        "b1_c1":   mat1x1(keys[1]),
        "b1_c2":   mat3x3(keys[2]),
        "b1_c3":   mat1x1(keys[3]),
        "b1_down": mat1x1(keys[4]),                   # projection shortcut
        "b2_c1":   mat1x1(keys[5]),
        "b2_c2":   mat3x3(keys[6]),
        "b2_c3":   mat1x1(keys[7]),
    }


# ----------------------------------------------------------------------------
# BackBone.forward
# ----------------------------------------------------------------------------

# TODO(synk): loading the pretrained resnet50 .pth checkpoint and the
# torchvision augment/compose transforms are host-side setup, not forward();
# they are replaced by deterministic synthetic folded Conv+BN weights.

def backbone_forward(x_nchw, params):
    """CNN trunk -> AdaptiveAvgPool2d((1,1)) -> flatten -> Identity."""
    x = jnp.transpose(x_nchw, (0, 2, 3, 1)).astype(jnp.bfloat16)   # NCHW -> NHWC
    N = x.shape[0]
    C = FEATURE_DIM

    # stem: conv 7x7 / stride 2 + folded BN + ReLU
    cols, OH, OW = _im2col(x, 7, 7, 2, 3)
    y = matmul_bias_act(cols, *params["conv1"], relu=True)        # (N*OH*OW, C)
    y = y.reshape(N, OH, OW, C)

    # maxpool 3x3 / stride 2 / pad 1
    x1 = maxpool_3x3_s2(y)                                        # (N, PH, PW, C)
    _, PH, PW, _ = x1.shape
    M = N * PH * PW
    x1f = x1.reshape(M, C)

    # residual block 1 (projection shortcut); all 1x1 convs skip im2col
    sc = matmul_bias_act(x1f, *params["b1_down"], relu=False)
    h = matmul_bias_act(x1f, *params["b1_c1"], relu=True)
    h = conv3x3_s1(h.reshape(N, PH, PW, C), *params["b1_c2"], relu=True)
    h = h.reshape(M, C)
    x2 = matmul_bias_act(h, *params["b1_c3"], relu=True, residual=sc)

    # residual block 2 (identity shortcut), add+ReLU fused in the epilogue
    h = matmul_bias_act(x2, *params["b2_c1"], relu=True)
    h = conv3x3_s1(h.reshape(N, PH, PW, C), *params["b2_c2"], relu=True)
    h = h.reshape(M, C)
    x3 = matmul_bias_act(h, *params["b2_c3"], relu=True, residual=x2)

    # AdaptiveAvgPool2d((1,1)) + flatten; final classifier replaced by Identity
    return global_avg_pool(x3.reshape(N, PH * PW, C))             # (N, 128) f32


if __name__ == "__main__":
    key = jax.random.PRNGKey(0)
    k_inp, k_par = jax.random.split(key)

    # NCHW input, PyTorch convention (batch=2, 3 channels, 16x16)
    x = jax.random.normal(k_inp, (2, 3, 16, 16), jnp.float32)
    params = build_backbone_params(k_par)

    feat = jax.jit(backbone_forward)(x, params)
    feat = jax.block_until_ready(feat)

    assert feat.shape == (2, FEATURE_DIM), feat.shape   # (N, output_feature_dim)
    assert feat.dtype == jnp.float32
    assert bool(jnp.all(jnp.isfinite(feat)))
    print("KERNEL_OK")
</pallas_src>

<mosaic_0001>
module attributes {stable_mosaic.version = 11 : i64} {
  func.func @_matmul_kernel(%arg0: i32, %arg1: i32, %arg2: i32, %arg3: memref<128x147xbf16, #tpu.memory_space<vmem>>, %arg4: memref<147x128xbf16, #tpu.memory_space<vmem>>, %arg5: memref<1x128xf32, #tpu.memory_space<vmem>>, %arg6: memref<128x128xbf16, #tpu.memory_space<vmem>>, %arg7: memref<128x128xf32, #tpu.memory_space<vmem>>) attributes {dimension_semantics = [#tpu.dimension_semantics<parallel>, #tpu.dimension_semantics<parallel>, #tpu.dimension_semantics<arbitrary>], iteration_bounds = array<i64: 1, 1, 1>, scalar_prefetch = 0 : i64, scratch_operands = 1 : i64, tpu.core_type = #tpu.core_type<tc>, window_params = [{transform_indices = @transform_0, window_bounds = array<i64: 128, 147>}, {transform_indices = @transform_1, window_bounds = array<i64: 147, 128>}, {transform_indices = @transform_2, window_bounds = array<i64: 1, 128>}, {transform_indices = @transform_3, window_bounds = array<i64: 128, 128>}]} {
    %c0_i32 = arith.constant 0 : i32
    %0 = arith.cmpi eq, %arg2, %c0_i32 : i32
    %1 = arith.extui %0 : i1 to i32
    %c0_i32_0 = arith.constant 0 : i32
    %2 = arith.cmpi ne, %1, %c0_i32_0 : i32
    scf.if %2 {
      %cst_10 = arith.constant 0.000000e+00 : f32
      %12 = vector.broadcast %cst_10 : f32 to vector<128x128xf32>
      %c0_11 = arith.constant 0 : index
      %c0_12 = arith.constant 0 : index
      %13 = vector.load %arg7[%c0_11, %c0_12] : memref<128x128xf32, #tpu.memory_space<vmem>>, vector<128x128xf32>
      tpu.vector_store %arg7[%c0_11, %c0_12], %12 {strides = array<i32>} : memref<128x128xf32, #tpu.memory_space<vmem>>, vector<128x128xf32>,
    } else {
    }
    %c0 = arith.constant 0 : index
    %c0_1 = arith.constant 0 : index
    %3 = vector.load %arg7[%c0, %c0_1] : memref<128x128xf32, #tpu.memory_space<vmem>>, vector<128x128xf32>
    %c0_2 = arith.constant 0 : index
    %c0_3 = arith.constant 0 : index
    %4 = vector.load %arg3[%c0_2, %c0_3] : memref<128x147xbf16, #tpu.memory_space<vmem>>, vector<128x147xbf16>
    %c0_4 = arith.constant 0 : index
    %c0_5 = arith.constant 0 : index
    %5 = vector.load %arg4[%c0_4, %c0_5] : memref<147x128xbf16, #tpu.memory_space<vmem>>, vector<147x128xbf16>
    %cst = arith.constant dense<0.000000e+00> : vector<128x128xf32>
    %6 = tpu.matmul %4, %5, %cst {dimension_numbers = #tpu.dot_dimension_numbers<[1], [0], [0], [1], [0, 0, 1, 1], [], []>} : vector<128x147xbf16>, vector<147x128xbf16>, vector<128x128xf32> -> vector<128x128xf32>
    %7 = arith.addf %3, %6 : vector<128x128xf32>
    %c0_6 = arith.constant 0 : index
    %c0_7 = arith.constant 0 : index
    %8 = vector.load %arg7[%c0_6, %c0_7] : memref<128x128xf32, #tpu.memory_space<vmem>>, vector<128x128xf32>
    tpu.vector_store %arg7[%c0_6, %c0_7], %7 {strides = array<i32>} : memref<128x128xf32, #tpu.memory_space<vmem>>, vector<128x128xf32>,
    %c0_i32_8 = arith.constant 0 : i32
    %9 = arith.cmpi eq, %arg2, %c0_i32_8 : i32
    %10 = arith.extui %9 : i1 to i32
    %c0_i32_9 = arith.constant 0 : i32
    %11 = arith.cmpi ne, %10, %c0_i32_9 : i32
    scf.if %11 {
      %c0_10 = arith.constant 0 : index
      %c0_11 = arith.constant 0 : index
      %12 = vector.load %arg7[%c0_10, %c0_11] : memref<128x128xf32, #tpu.memory_space<vmem>>, vector<128x128xf32>
      %c0_12 = arith.constant 0 : index
      %c0_13 = arith.constant 0 : index
      %13 = vector.load %arg5[%c0_12, %c0_13] : memref<1x128xf32, #tpu.memory_space<vmem>>, vector<1x128xf32>
      %14 = vector.broadcast %13 : vector<1x128xf32> to vector<128x128xf32>
      %15 = arith.addf %12, %14 : vector<128x128xf32>
      %cst_14 = arith.constant 0.000000e+00 : f32
      %16 = vector.broadcast %cst_14 : f32 to vector<128x128xf32>
      %17 = arith.maximumf %15, %16 : vector<128x128xf32>
      %18 = arith.truncf %17 : vector<128x128xf32> to vector<128x128xbf16>
      %c0_15 = arith.constant 0 : index
      %c0_16 = arith.constant 0 : index
      %19 = vector.load %arg6[%c0_15, %c0_16] : memref<128x128xbf16, #tpu.memory_space<vmem>>, vector<128x128xbf16>
      tpu.vector_store %arg6[%c0_15, %c0_16], %18 {strides = array<i32>} : memref<128x128xbf16, #tpu.memory_space<vmem>>, vector<128x128xbf16>,
    } else {
    }
    return
  }
  func.func @transform_0(%arg0: i32, %arg1: i32, %arg2: i32) -> (i32, i32) {
    %c0_i32 = arith.constant 0 : i32
    return %arg0, %arg2 : i32, i32
  }
  func.func @transform_1(%arg0: i32, %arg1: i32, %arg2: i32) -> (i32, i32) {
    %c0_i32 = arith.constant 0 : i32
    return %arg2, %arg1 : i32, i32
  }
  func.func @transform_2(%arg0: i32, %arg1: i32, %arg2: i32) -> (i32, i32) {
    %c0_i32 = arith.constant 0 : i32
    %c0_i32_0 = arith.constant 0 : i32
    return %c0_i32, %arg1 : i32, i32
  }
  func.func @transform_3(%arg0: i32, %arg1: i32, %arg2: i32) -> (i32, i32) {
    %c0_i32 = arith.constant 0 : i32
    return %arg0, %arg1 : i32, i32
  }
}

module attributes {stable_mosaic.version = 11 : i64} {
  func.func @_maxpool_kernel(%arg0: i32, %arg1: memref<1x10x4x128xbf16, #tpu.memory_space<vmem>>, %arg2: memref<1x10x4x128xbf16, #tpu.memory_space<vmem>>, %arg3: memref<1x10x4x128xbf16, #tpu.memory_space<vmem>>, %arg4: memref<1x4x4x128xbf16, #tpu.memory_space<vmem>>) attributes {dimension_semantics = [#tpu.dimension_semantics<parallel>], iteration_bounds = array<i64: 2>, scalar_prefetch = 0 : i64, scratch_operands = 0 : i64, tpu.core_type = #tpu.core_type<tc>, window_params = [{transform_indices = @transform_0, window_bounds = array<i64: 1, 10, 4, 128>}, {transform_indices = @transform_1, window_bounds = array<i64: 1, 10, 4, 128>}, {transform_indices = @transform_2, window_bounds = array<i64: 1, 10, 4, 128>}, {transform_indices = @transform_3, window_bounds = array<i64: 1, 4, 4, 128>}]} {
    %c0 = arith.constant 0 : index
    %c0_0 = arith.constant 0 : index
    %c0_1 = arith.constant 0 : index
    %c0_2 = arith.constant 0 : index
    %0 = vector.load %arg1[%c0, %c0_0, %c0_1, %c0_2] : memref<1x10x4x128xbf16, #tpu.memory_space<vmem>>, vector<1x10x4x128xbf16>
    %1 = vector.shape_cast %0 : vector<1x10x4x128xbf16> to vector<10x4x128xbf16>
    %2 = arith.extf %1 : vector<10x4x128xbf16> to vector<10x4x128xf32>
    %c0_3 = arith.constant 0 : index
    %c0_4 = arith.constant 0 : index
    %c0_5 = arith.constant 0 : index
    %c0_6 = arith.constant 0 : index
    %3 = vector.load %arg2[%c0_3, %c0_4, %c0_5, %c0_6] : memref<1x10x4x128xbf16, #tpu.memory_space<vmem>>, vector<1x10x4x128xbf16>
    %4 = vector.shape_cast %3 : vector<1x10x4x128xbf16> to vector<10x4x128xbf16>
    %5 = arith.extf %4 : vector<10x4x128xbf16> to vector<10x4x128xf32>
    %6 = arith.maximumf %2, %5 : vector<10x4x128xf32>
    %c0_7 = arith.constant 0 : index
    %c0_8 = arith.constant 0 : index
    %c0_9 = arith.constant 0 : index
    %c0_10 = arith.constant 0 : index
    %7 = vector.load %arg3[%c0_7, %c0_8, %c0_9, %c0_10] : memref<1x10x4x128xbf16, #tpu.memory_space<vmem>>, vector<1x10x4x128xbf16>
    %8 = vector.shape_cast %7 : vector<1x10x4x128xbf16> to vector<10x4x128xbf16>
    %9 = arith.extf %8 : vector<10x4x128xbf16> to vector<10x4x128xf32>
    %10 = arith.maximumf %6, %9 : vector<10x4x128xf32>
    %11 = vector.shape_cast %10 : vector<10x4x128xf32> to vector<5x2x4x128xf32>
    %12 = vector.extract_strided_slice %11 {offsets = [0, 0, 0, 0], sizes = [5, 1, 4, 128], strides = [1, 1, 1, 1]} : vector<5x2x4x128xf32> to vector<5x1x4x128xf32>
    %13 = vector.shape_cast %12 : vector<5x1x4x128xf32> to vector<5x4x128xf32>
    %14 = vector.extract_strided_slice %11 {offsets = [0, 1, 0, 0], sizes = [5, 1, 4, 128], strides = [1, 1, 1, 1]} : vector<5x2x4x128xf32> to vector<5x1x4x128xf32>
    %15 = vector.shape_cast %14 : vector<5x1x4x128xf32> to vector<5x4x128xf32>
    %16 = vector.extract_strided_slice %13 {offsets = [0, 0, 0], sizes = [4, 4, 128], strides = [1, 1, 1]} : vector<5x4x128xf32> to vector<4x4x128xf32>
    %17 = vector.extract_strided_slice %15 {offsets = [0, 0, 0], sizes = [4, 4, 128], strides = [1, 1, 1]} : vector<5x4x128xf32> to vector<4x4x128xf32>
    %18 = arith.maximumf %16, %17 : vector<4x4x128xf32>
    %19 = vector.extract_strided_slice %13 {offsets = [1, 0, 0], sizes = [4, 4, 128], strides = [1, 1, 1]} : vector<5x4x128xf32> to vector<4x4x128xf32>
    %20 = arith.maximumf %18, %19 : vector<4x4x128xf32>
    %21 = arith.truncf %20 : vector<4x4x128xf32> to vector<4x4x128xbf16>
    %c0_11 = arith.constant 0 : index
    %c0_12 = arith.constant 0 : index
    %c0_13 = arith.constant 0 : index
    %c0_14 = arith.constant 0 : index
    %22 = vector.load %arg4[%c0_11, %c0_12, %c0_13, %c0_14] : memref<1x4x4x128xbf16, #tpu.memory_space<vmem>>, vector<1x4x4x128xbf16>
    %23 = vector.shape_cast %22 : vector<1x4x4x128xbf16> to vector<4x4x128xbf16>
    %24 = vector.shape_cast %21 : vector<4x4x128xbf16> to vector<1x4x4x128xbf16>
    tpu.vector_store %arg4[%c0_11, %c0_12, %c0_13, %c0_14], %24 {strides = array<i32>} : memref<1x4x4x128xbf16, #tpu.memory_space<vmem>>, vector<1x4x4x128xbf16>,
    return
  }
  func.func @transform_0(%arg0: i32) -> (i32, i32, i32, i32) {
    %c0_i32 = arith.constant 0 : i32
    %c0_i32_0 = arith.constant 0 : i32
    %c0_i32_1 = arith.constant 0 : i32
    %c0_i32_2 = arith.constant 0 : i32
    return %arg0, %c0_i32, %c0_i32_0, %c0_i32_1 : i32, i32, i32, i32
  }
  func.func @transform_1(%arg0: i32) -> (i32, i32, i32, i32) {
    %c0_i32 = arith.constant 0 : i32
    %c0_i32_0 = arith.constant 0 : i32
    %c0_i32_1 = arith.constant 0 : i32
    %c0_i32_2 = arith.constant 0 : i32
    return %arg0, %c0_i32, %c0_i32_0, %c0_i32_1 : i32, i32, i32, i32
  }
  func.func @transform_2(%arg0: i32) -> (i32, i32, i32, i32) {
    %c0_i32 = arith.constant 0 : i32
    %c0_i32_0 = arith.constant 0 : i32
    %c0_i32_1 = arith.constant 0 : i32
    %c0_i32_2 = arith.constant 0 : i32
    return %arg0, %c0_i32, %c0_i32_0, %c0_i32_1 : i32, i32, i32, i32
  }
  func.func @transform_3(%arg0: i32) -> (i32, i32, i32, i32) {
    %c0_i32 = arith.constant 0 : i32
    %c0_i32_0 = arith.constant 0 : i32
    %c0_i32_1 = arith.constant 0 : i32
    %c0_i32_2 = arith.constant 0 : i32
    return %arg0, %c0_i32, %c0_i32_0, %c0_i32_1 : i32, i32, i32, i32
  }
}

module attributes {stable_mosaic.version = 11 : i64} {
  func.func @_matmul_kernel(%arg0: i32, %arg1: i32, %arg2: i32, %arg3: memref<32x128xbf16, #tpu.memory_space<vmem>>, %arg4: memref<128x128xbf16, #tpu.memory_space<vmem>>, %arg5: memref<1x128xf32, #tpu.memory_space<vmem>>, %arg6: memref<32x128xbf16, #tpu.memory_space<vmem>>, %arg7: memref<32x128xf32, #tpu.memory_space<vmem>>) attributes {dimension_semantics = [#tpu.dimension_semantics<parallel>, #tpu.dimension_semantics<parallel>, #tpu.dimension_semantics<arbitrary>], iteration_bounds = array<i64: 1, 1, 1>, scalar_prefetch = 0 : i64, scratch_operands = 1 : i64, tpu.core_type = #tpu.core_type<tc>, window_params = [{transform_indices = @transform_0, window_bounds = array<i64: 32, 128>}, {transform_indices = @transform_1, window_bounds = array<i64: 128, 128>}, {transform_indices = @transform_2, window_bounds = array<i64: 1, 128>}, {transform_indices = @transform_3, window_bounds = array<i64: 32, 128>}]} {
    %c0_i32 = arith.constant 0 : i32
    %0 = arith.cmpi eq, %arg2, %c0_i32 : i32
    %1 = arith.extui %0 : i1 to i32
    %c0_i32_0 = arith.constant 0 : i32
    %2 = arith.cmpi ne, %1, %c0_i32_0 : i32
    scf.if %2 {
      %cst_10 = arith.constant 0.000000e+00 : f32
      %12 = vector.broadcast %cst_10 : f32 to vector<32x128xf32>
      %c0_11 = arith.constant 0 : index
      %c0_12 = arith.constant 0 : index
      %13 = vector.load %arg7[%c0_11, %c0_12] : memref<32x128xf32, #tpu.memory_space<vmem>>, vector<32x128xf32>
      tpu.vector_store %arg7[%c0_11, %c0_12], %12 {strides = array<i32>} : memref<32x128xf32, #tpu.memory_space<vmem>>, vector<32x128xf32>,
    } else {
    }
    %c0 = arith.constant 0 : index
    %c0_1 = arith.constant 0 : index
    %3 = vector.load %arg7[%c0, %c0_1] : memref<32x128xf32, #tpu.memory_space<vmem>>, vector<32x128xf32>
    %c0_2 = arith.constant 0 : index
    %c0_3 = arith.constant 0 : index
    %4 = vector.load %arg3[%c0_2, %c0_3] : memref<32x128xbf16, #tpu.memory_space<vmem>>, vector<32x128xbf16>
    %c0_4 = arith.constant 0 : index
    %c0_5 = arith.constant 0 : index
    %5 = vector.load %arg4[%c0_4, %c0_5] : memref<128x128xbf16, #tpu.memory_space<vmem>>, vector<128x128xbf16>
    %cst = arith.constant dense<0.000000e+00> : vector<32x128xf32>
    %6 = tpu.matmul %4, %5, %cst {dimension_numbers = #tpu.dot_dimension_numbers<[1], [0], [0], [1], [0, 0, 1, 1], [], []>} : vector<32x128xbf16>, vector<128x128xbf16>, vector<32x128xf32> -> vector<32x128xf32>
    %7 = arith.addf %3, %6 : vector<32x128xf32>
    %c0_6 = arith.constant 0 : index
    %c0_7 = arith.constant 0 : index
    %8 = vector.load %arg7[%c0_6, %c0_7] : memref<32x128xf32, #tpu.memory_space<vmem>>, vector<32x128xf32>
    tpu.vector_store %arg7[%c0_6, %c0_7], %7 {strides = array<i32>} : memref<32x128xf32, #tpu.memory_space<vmem>>, vector<32x128xf32>,
    %c0_i32_8 = arith.constant 0 : i32
    %9 = arith.cmpi eq, %arg2, %c0_i32_8 : i32
    %10 = arith.extui %9 : i1 to i32
    %c0_i32_9 = arith.constant 0 : i32
    %11 = arith.cmpi ne, %10, %c0_i32_9 : i32
    scf.if %11 {
      %c0_10 = arith.constant 0 : index
      %c0_11 = arith.constant 0 : index
      %12 = vector.load %arg7[%c0_10, %c0_11] : memref<32x128xf32, #tpu.memory_space<vmem>>, vector<32x128xf32>
      %c0_12 = arith.constant 0 : index
      %c0_13 = arith.constant 0 : index
      %13 = vector.load %arg5[%c0_12, %c0_13] : memref<1x128xf32, #tpu.memory_space<vmem>>, vector<1x128xf32>
      %14 = vector.broadcast %13 : vector<1x128xf32> to vector<32x128xf32>
      %15 = arith.addf %12, %14 : vector<32x128xf32>
      %cst_14 = arith.constant 0.000000e+00 : f32
      %16 = vector.broadcast %cst_14 : f32 to vector<32x128xf32>
      %17 = arith.maximumf %15, %16 : vector<32x128xf32>
      %18 = arith.truncf %17 : vector<32x128xf32> to vector<32x128xbf16>
      %c0_15 = arith.constant 0 : index
      %c0_16 = arith.constant 0 : index
      %19 = vector.load %arg6[%c0_15, %c0_16] : memref<32x128xbf16, #tpu.memory_space<vmem>>, vector<32x128xbf16>
      tpu.vector_store %arg6[%c0_15, %c0_16], %18 {strides = array<i32>} : memref<32x128xbf16, #tpu.memory_space<vmem>>, vector<32x128xbf16>,
    } else {
    }
    return
  }
  func.func @transform_0(%arg0: i32, %arg1: i32, %arg2: i32) -> (i32, i32) {
    %c0_i32 = arith.constant 0 : i32
    return %arg0, %arg2 : i32, i32
  }
  func.func @transform_1(%arg0: i32, %arg1: i32, %arg2: i32) -> (i32, i32) {
    %c0_i32 = arith.constant 0 : i32
    return %arg2, %arg1 : i32, i32
  }
  func.func @transform_2(%arg0: i32, %arg1: i32, %arg2: i32) -> (i32, i32) {
    %c0_i32 = arith.constant 0 : i32
    %c0_i32_0 = arith.constant 0 : i32
    return %c0_i32, %arg1 : i32, i32
  }
  func.func @transform_3(%arg0: i32, %arg1: i32, %arg2: i32) -> (i32, i32) {
    %c0_i32 = arith.constant 0 : i32
    return %arg0, %arg1 : i32, i32
  }
}

module attributes {stable_mosaic.version = 11 : i64} {
  func.func @_matmul_kernel(%arg0: i32, %arg1: i32, %arg2: i32, %arg3: memref<32x128xbf16, #tpu.memory_space<vmem>>, %arg4: memref<128x128xbf16, #tpu.memory_space<vmem>>, %arg5: memref<1x128xf32, #tpu.memory_space<vmem>>, %arg6: memref<32x128xbf16, #tpu.memory_space<vmem>>, %arg7: memref<32x128xf32, #tpu.memory_space<vmem>>) attributes {dimension_semantics = [#tpu.dimension_semantics<parallel>, #tpu.dimension_semantics<parallel>, #tpu.dimension_semantics<arbitrary>], iteration_bounds = array<i64: 1, 1, 1>, scalar_prefetch = 0 : i64, scratch_operands = 1 : i64, tpu.core_type = #tpu.core_type<tc>, window_params = [{transform_indices = @transform_0, window_bounds = array<i64: 32, 128>}, {transform_indices = @transform_1, window_bounds = array<i64: 128, 128>}, {transform_indices = @transform_2, window_bounds = array<i64: 1, 128>}, {transform_indices = @transform_3, window_bounds = array<i64: 32, 128>}]} {
    %c0_i32 = arith.constant 0 : i32
    %0 = arith.cmpi eq, %arg2, %c0_i32 : i32
    %1 = arith.extui %0 : i1 to i32
    %c0_i32_0 = arith.constant 0 : i32
    %2 = arith.cmpi ne, %1, %c0_i32_0 : i32
    scf.if %2 {
      %cst_10 = arith.constant 0.000000e+00 : f32
      %12 = vector.broadcast %cst_10 : f32 to vector<32x128xf32>
      %c0_11 = arith.constant 0 : index
      %c0_12 = arith.constant 0 : index
      %13 = vector.load %arg7[%c0_11, %c0_12] : memref<32x128xf32, #tpu.memory_space<vmem>>, vector<32x128xf32>
      tpu.vector_store %arg7[%c0_11, %c0_12], %12 {strides = array<i32>} : memref<32x128xf32, #tpu.memory_space<vmem>>, vector<32x128xf32>,
    } else {
    }
    %c0 = arith.constant 0 : index
    %c0_1 = arith.constant 0 : index
    %3 = vector.load %arg7[%c0, %c0_1] : memref<32x128xf32, #tpu.memory_space<vmem>>, vector<32x128xf32>
    %c0_2 = arith.constant 0 : index
    %c0_3 = arith.constant 0 : index
    %4 = vector.load %arg3[%c0_2, %c0_3] : memref<32x128xbf16, #tpu.memory_space<vmem>>, vector<32x128xbf16>
    %c0_4 = arith.constant 0 : index
    %c0_5 = arith.constant 0 : index
    %5 = vector.load %arg4[%c0_4, %c0_5] : memref<128x128xbf16, #tpu.memory_space<vmem>>, vector<128x128xbf16>
    %cst = arith.constant dense<0.000000e+00> : vector<32x128xf32>
    %6 = tpu.matmul %4, %5, %cst {dimension_numbers = #tpu.dot_dimension_numbers<[1], [0], [0], [1], [0, 0, 1, 1], [], []>} : vector<32x128xbf16>, vector<128x128xbf16>, vector<32x128xf32> -> vector<32x128xf32>
    %7 = arith.addf %3, %6 : vector<32x128xf32>
    %c0_6 = arith.constant 0 : index
    %c0_7 = arith.constant 0 : index
    %8 = vector.load %arg7[%c0_6, %c0_7] : memref<32x128xf32, #tpu.memory_space<vmem>>, vector<32x128xf32>
    tpu.vector_store %arg7[%c0_6, %c0_7], %7 {strides = array<i32>} : memref<32x128xf32, #tpu.memory_space<vmem>>, vector<32x128xf32>,
    %c0_i32_8 = arith.constant 0 : i32
    %9 = arith.cmpi eq, %arg2, %c0_i32_8 : i32
    %10 = arith.extui %9 : i1 to i32
    %c0_i32_9 = arith.constant 0 : i32
    %11 = arith.cmpi ne, %10, %c0_i32_9 : i32
    scf.if %11 {
      %c0_10 = arith.constant 0 : index
      %c0_11 = arith.constant 0 : index
      %12 = vector.load %arg7[%c0_10, %c0_11] : memref<32x128xf32, #tpu.memory_space<vmem>>, vector<32x128xf32>
      %c0_12 = arith.constant 0 : index
      %c0_13 = arith.constant 0 : index
      %13 = vector.load %arg5[%c0_12, %c0_13] : memref<1x128xf32, #tpu.memory_space<vmem>>, vector<1x128xf32>
      %14 = vector.broadcast %13 : vector<1x128xf32> to vector<32x128xf32>
      %15 = arith.addf %12, %14 : vector<32x128xf32>
      %16 = arith.truncf %15 : vector<32x128xf32> to vector<32x128xbf16>
      %c0_14 = arith.constant 0 : index
      %c0_15 = arith.constant 0 : index
      %17 = vector.load %arg6[%c0_14, %c0_15] : memref<32x128xbf16, #tpu.memory_space<vmem>>, vector<32x128xbf16>
      tpu.vector_store %arg6[%c0_14, %c0_15], %16 {strides = array<i32>} : memref<32x128xbf16, #tpu.memory_space<vmem>>, vector<32x128xbf16>,
    } else {
    }
    return
  }
  func.func @transform_0(%arg0: i32, %arg1: i32, %arg2: i32) -> (i32, i32) {
    %c0_i32 = arith.constant 0 : i32
    return %arg0, %arg2 : i32, i32
  }
  func.func @transform_1(%arg0: i32, %arg1: i32, %arg2: i32) -> (i32, i32) {
    %c0_i32 = arith.constant 0 : i32
    return %arg2, %arg1 : i32, i32
  }
  func.func @transform_2(%arg0: i32, %arg1: i32, %arg2: i32) -> (i32, i32) {
    %c0_i32 = arith.constant 0 : i32
    %c0_i32_0 = arith.constant 0 : i32
    return %c0_i32, %arg1 : i32, i32
  }
  func.func @transform_3(%arg0: i32, %arg1: i32, %arg2: i32) -> (i32, i32) {
    %c0_i32 = arith.constant 0 : i32
    return %arg0, %arg1 : i32, i32
  }
}

module attributes {stable_mosaic.version = 11 : i64} {
  func.func @_conv3x3_kernel(%arg0: i32, %arg1: memref<1x24x128xbf16, #tpu.memory_space<vmem>>, %arg2: memref<1x24x128xbf16, #tpu.memory_space<vmem>>, %arg3: memref<1x24x128xbf16, #tpu.memory_space<vmem>>, %arg4: memref<9x128x128xbf16, #tpu.memory_space<vmem>>, %arg5: memref<1x128xf32, #tpu.memory_space<vmem>>, %arg6: memref<1x16x128xbf16, #tpu.memory_space<vmem>>) attributes {dimension_semantics = [#tpu.dimension_semantics<parallel>], iteration_bounds = array<i64: 2>, scalar_prefetch = 0 : i64, scratch_operands = 0 : i64, tpu.core_type = #tpu.core_type<tc>, window_params = [{transform_indices = @transform_0, window_bounds = array<i64: 1, 24, 128>}, {transform_indices = @transform_1, window_bounds = array<i64: 1, 24, 128>}, {transform_indices = @transform_2, window_bounds = array<i64: 1, 24, 128>}, {pipeline_mode = #tpu.pipeline_mode<synchronous>, transform_indices = @transform_3, window_bounds = array<i64: 9, 128, 128>}, {pipeline_mode = #tpu.pipeline_mode<synchronous>, transform_indices = @transform_4, window_bounds = array<i64: 1, 128>}, {transform_indices = @transform_5, window_bounds = array<i64: 1, 16, 128>}]} {
    %cst = arith.constant 0.000000e+00 : f32
    %0 = vector.broadcast %cst : f32 to vector<16x128xf32>
    %c0 = arith.constant 0 : index
    %c0_0 = arith.constant 0 : index
    %c0_1 = arith.constant 0 : index
    %1 = vector.load %arg1[%c0, %c0_0, %c0_1] : memref<1x24x128xbf16, #tpu.memory_space<vmem>>, vector<1x16x128xbf16>
    %2 = vector.shape_cast %1 : vector<1x16x128xbf16> to vector<16x128xbf16>
    %c0_2 = arith.constant 0 : index
    %c0_3 = arith.constant 0 : index
    %c0_4 = arith.constant 0 : index
    %3 = vector.load %arg4[%c0_2, %c0_3, %c0_4] : memref<9x128x128xbf16, #tpu.memory_space<vmem>>, vector<1x128x128xbf16>
    %4 = vector.shape_cast %3 : vector<1x128x128xbf16> to vector<128x128xbf16>
    %cst_5 = arith.constant dense<0.000000e+00> : vector<16x128xf32>
    %5 = tpu.matmul %2, %4, %cst_5 {dimension_numbers = #tpu.dot_dimension_numbers<[1], [0], [0], [1], [0, 0, 1, 1], [], []>} : vector<16x128xbf16>, vector<128x128xbf16>, vector<16x128xf32> -> vector<16x128xf32>
    %6 = arith.addf %0, %5 : vector<16x128xf32>
    %c0_6 = arith.constant 0 : index
    %c0_7 = arith.constant 0 : index
    %c0_8 = arith.constant 0 : index
    %7 = vector.load %arg2[%c0_6, %c0_7, %c0_8] : memref<1x24x128xbf16, #tpu.memory_space<vmem>>, vector<1x16x128xbf16>
    %8 = vector.shape_cast %7 : vector<1x16x128xbf16> to vector<16x128xbf16>
    %c1 = arith.constant 1 : index
    %c0_9 = arith.constant 0 : index
    %c0_10 = arith.constant 0 : index
    %9 = vector.load %arg4[%c1, %c0_9, %c0_10] : memref<9x128x128xbf16, #tpu.memory_space<vmem>>, vector<1x128x128xbf16>
    %10 = vector.shape_cast %9 : vector<1x128x128xbf16> to vector<128x128xbf16>
    %cst_11 = arith.constant dense<0.000000e+00> : vector<16x128xf32>
    %11 = tpu.matmul %8, %10, %cst_11 {dimension_numbers = #tpu.dot_dimension_numbers<[1], [0], [0], [1], [0, 0, 1, 1], [], []>} : vector<16x128xbf16>, vector<128x128xbf16>, vector<16x128xf32> -> vector<16x128xf32>
    %12 = arith.addf %6, %11 : vector<16x128xf32>
    %c0_12 = arith.constant 0 : index
    %c0_13 = arith.constant 0 : index
    %c0_14 = arith.constant 0 : index
    %13 = vector.load %arg3[%c0_12, %c0_13, %c0_14] : memref<1x24x128xbf16, #tpu.memory_space<vmem>>, vector<1x16x128xbf16>
    %14 = vector.shape_cast %13 : vector<1x16x128xbf16> to vector<16x128xbf16>
    %c2 = arith.constant 2 : index
    %c0_15 = arith.constant 0 : index
    %c0_16 = arith.constant 0 : index
    %15 = vector.load %arg4[%c2, %c0_15, %c0_16] : memref<9x128x128xbf16, #tpu.memory_space<vmem>>, vector<1x128x128xbf16>
    %16 = vector.shape_cast %15 : vector<1x128x128xbf16> to vector<128x128xbf16>
    %cst_17 = arith.constant dense<0.000000e+00> : vector<16x128xf32>
    %17 = tpu.matmul %14, %16, %cst_17 {dimension_numbers = #tpu.dot_dimension_numbers<[1], [0], [0], [1], [0, 0, 1, 1], [], []>} : vector<16x128xbf16>, vector<128x128xbf16>, vector<16x128xf32> -> vector<16x128xf32>
    %18 = arith.addf %12, %17 : vector<16x128xf32>
    %c0_18 = arith.constant 0 : index
    %c4 = arith.constant 4 : index
    %c0_19 = arith.constant 0 : index
    %19 = vector.load %arg1[%c0_18, %c4, %c0_19] : memref<1x24x128xbf16, #tpu.memory_space<vmem>>, vector<1x16x128xbf16>
    %20 = vector.shape_cast %19 : vector<1x16x128xbf16> to vector<16x128xbf16>
    %c3 = arith.constant 3 : index
    %c0_20 = arith.constant 0 : index
    %c0_21 = arith.constant 0 : index
    %21 = vector.load %arg4[%c3, %c0_20, %c0_21] : memref<9x128x128xbf16, #tpu.memory_space<vmem>>, vector<1x128x128xbf16>
    %22 = vector.shape_cast %21 : vector<1x128x128xbf16> to vector<128x128xbf16>
    %cst_22 = arith.constant dense<0.000000e+00> : vector<16x128xf32>
    %23 = tpu.matmul %20, %22, %cst_22 {dimension_numbers = #tpu.dot_dimension_numbers<[1], [0], [0], [1], [0, 0, 1, 1], [], []>} : vector<16x128xbf16>, vector<128x128xbf16>, vector<16x128xf32> -> vector<16x128xf32>
    %24 = arith.addf %18, %23 : vector<16x128xf32>
    %c0_23 = arith.constant 0 : index
    %c4_24 = arith.constant 4 : index
    %c0_25 = arith.constant 0 : index
    %25 = vector.load %arg2[%c0_23, %c4_24, %c0_25] : memref<1x24x128xbf16, #tpu.memory_space<vmem>>, vector<1x16x128xbf16>
    %26 = vector.shape_cast %25 : vector<1x16x128xbf16> to vector<16x128xbf16>
    %c4_26 = arith.constant 4 : index
    %c0_27 = arith.constant 0 : index
    %c0_28 = arith.constant 0 : index
    %27 = vector.load %arg4[%c4_26, %c0_27, %c0_28] : memref<9x128x128xbf16, #tpu.memory_space<vmem>>, vector<1x128x128xbf16>
    %28 = vector.shape_cast %27 : vector<1x128x128xbf16> to vector<128x128xbf16>
    %cst_29 = arith.constant dense<0.000000e+00> : vector<16x128xf32>
    %29 = tpu.matmul %26, %28, %cst_29 {dimension_numbers = #tpu.dot_dimension_numbers<[1], [0], [0], [1], [0, 0, 1, 1], [], []>} : vector<16x128xbf16>, vector<128x128xbf16>, vector<16x128xf32> -> vector<16x128xf32>
    %30 = arith.addf %24, %29 : vector<16x128xf32>
    %c0_30 = arith.constant 0 : index
    %c4_31 = arith.constant 4 : index
    %c0_32 = arith.constant 0 : index
    %31 = vector.load %arg3[%c0_30, %c4_31, %c0_32] : memref<1x24x128xbf16, #tpu.memory_space<vmem>>, vector<1x16x128xbf16>
    %32 = vector.shape_cast %31 : vector<1x16x128xbf16> to vector<16x128xbf16>
    %c5 = arith.constant 5 : index
    %c0_33 = arith.constant 0 : index
    %c0_34 = arith.constant 0 : index
    %33 = vector.load %arg4[%c5, %c0_33, %c0_34] : memref<9x128x128xbf16, #tpu.memory_space<vmem>>, vector<1x128x128xbf16>
    %34 = vector.shape_cast %33 : vector<1x128x128xbf16> to vector<128x128xbf16>
    %cst_35 = arith.constant dense<0.000000e+00> : vector<16x128xf32>
    %35 = tpu.matmul %32, %34, %cst_35 {dimension_numbers = #tpu.dot_dimension_numbers<[1], [0], [0], [1], [0, 0, 1, 1], [], []>} : vector<16x128xbf16>, vector<128x128xbf16>, vector<16x128xf32> -> vector<16x128xf32>
    %36 = arith.addf %30, %35 : vector<16x128xf32>
    %c0_36 = arith.constant 0 : index
    %c8 = arith.constant 8 : index
    %c0_37 = arith.constant 0 : index
    %37 = vector.load %arg1[%c0_36, %c8, %c0_37] : memref<1x24x128xbf16, #tpu.memory_space<vmem>>, vector<1x16x128xbf16>
    %38 = vector.shape_cast %37 : vector<1x16x128xbf16> to vector<16x128xbf16>
    %c6 = arith.constant 6 : index
    %c0_38 = arith.constant 0 : index
    %c0_39 = arith.constant 0 : index
    %39 = vector.load %arg4[%c6, %c0_38, %c0_39] : memref<9x128x128xbf16, #tpu.memory_space<vmem>>, vector<1x128x128xbf16>
    %40 = vector.shape_cast %39 : vector<1x128x128xbf16> to vector<128x128xbf16>
    %cst_40 = arith.constant dense<0.000000e+00> : vector<16x128xf32>
    %41 = tpu.matmul %38, %40, %cst_40 {dimension_numbers = #tpu.dot_dimension_numbers<[1], [0], [0], [1], [0, 0, 1, 1], [], []>} : vector<16x128xbf16>, vector<128x128xbf16>, vector<16x128xf32> -> vector<16x128xf32>
    %42 = arith.addf %36, %41 : vector<16x128xf32>
    %c0_41 = arith.constant 0 : index
    %c8_42 = arith.constant 8 : index
    %c0_43 = arith.constant 0 : index
    %43 = vector.load %arg2[%c0_41, %c8_42, %c0_43] : memref<1x24x128xbf16, #tpu.memory_space<vmem>>, vector<1x16x128xbf16>
    %44 = vector.shape_cast %43 : vector<1x16x128xbf16> to vector<16x128xbf16>
    %c7 = arith.constant 7 : index
    %c0_44 = arith.constant 0 : index
    %c0_45 = arith.constant 0 : index
    %45 = vector.load %arg4[%c7, %c0_44, %c0_45] : memref<9x128x128xbf16, #tpu.memory_space<vmem>>, vector<1x128x128xbf16>
    %46 = vector.shape_cast %45 : vector<1x128x128xbf16> to vector<128x128xbf16>
    %cst_46 = arith.constant dense<0.000000e+00> : vector<16x128xf32>
    %47 = tpu.matmul %44, %46, %cst_46 {dimension_numbers = #tpu.dot_dimension_numbers<[1], [0], [0], [1], [0, 0, 1, 1], [], []>} : vector<16x128xbf16>, vector<128x128xbf16>, vector<16x128xf32> -> vector<16x128xf32>
    %48 = arith.addf %42, %47 : vector<16x128xf32>
    %c0_47 = arith.constant 0 : index
    %c8_48 = arith.constant 8 : index
    %c0_49 = arith.constant 0 : index
    %49 = vector.load %arg3[%c0_47, %c8_48, %c0_49] : memref<1x24x128xbf16, #tpu.memory_space<vmem>>, vector<1x16x128xbf16>
    %50 = vector.shape_cast %49 : vector<1x16x128xbf16> to vector<16x128xbf16>
    %c8_50 = arith.constant 8 : index
    %c0_51 = arith.constant 0 : index
    %c0_52 = arith.constant 0 : index
    %51 = vector.load %arg4[%c8_50, %c0_51, %c0_52] : memref<9x128x128xbf16, #tpu.memory_space<vmem>>, vector<1x128x128xbf16>
    %52 = vector.shape_cast %51 : vector<1x128x128xbf16> to vector<128x128xbf16>
    %cst_53 = arith.constant dense<0.000000e+00> : vector<16x128xf32>
    %53 = tpu.matmul %50, %52, %cst_53 {dimension_numbers = #tpu.dot_dimension_numbers<[1], [0], [0], [1], [0, 0, 1, 1], [], []>} : vector<16x128xbf16>, vector<128x128xbf16>, vector<16x128xf32> -> vector<16x128xf32>
    %54 = arith.addf %48, %53 : vector<16x128xf32>
    %c0_54 = arith.constant 0 : index
    %c0_55 = arith.constant 0 : index
    %55 = vector.load %arg5[%c0_54, %c0_55] : memref<1x128xf32, #tpu.memory_space<vmem>>, vector<1x128xf32>
    %56 = vector.broadcast %55 : vector<1x128xf32> to vector<16x128xf32>
    %57 = arith.addf %54, %56 : vector<16x128xf32>
    %cst_56 = arith.constant 0.000000e+00 : f32
    %58 = vector.broadcast %cst_56 : f32 to vector<16x128xf32>
    %59 = arith.maximumf %57, %58 : vector<16x128xf32>
    %60 = arith.truncf %59 : vector<16x128xf32> to vector<16x128xbf16>
    %c0_57 = arith.constant 0 : index
    %c0_58 = arith.constant 0 : index
    %c0_59 = arith.constant 0 : index
    %61 = vector.load %arg6[%c0_57, %c0_58, %c0_59] : memref<1x16x128xbf16, #tpu.memory_space<vmem>>, vector<1x16x128xbf16>
    %62 = vector.shape_cast %61 : vector<1x16x128xbf16> to vector<16x128xbf16>
    %63 = vector.shape_cast %60 : vector<16x128xbf16> to vector<1x16x128xbf16>
    tpu.vector_store %arg6[%c0_57, %c0_58, %c0_59], %63 {strides = array<i32>} : memref<1x16x128xbf16, #tpu.memory_space<vmem>>, vector<1x16x128xbf16>,
    return
  }
  func.func @transform_0(%arg0: i32) -> (i32, i32, i32) {
    %c0_i32 = arith.constant 0 : i32
    %c0_i32_0 = arith.constant 0 : i32
    %c0_i32_1 = arith.constant 0 : i32
    return %arg0, %c0_i32, %c0_i32_0 : i32, i32, i32
  }
  func.func @transform_1(%arg0: i32) -> (i32, i32, i32) {
    %c0_i32 = arith.constant 0 : i32
    %c0_i32_0 = arith.constant 0 : i32
    %c0_i32_1 = arith.constant 0 : i32
    return %arg0, %c0_i32, %c0_i32_0 : i32, i32, i32
  }
  func.func @transform_2(%arg0: i32) -> (i32, i32, i32) {
    %c0_i32 = arith.constant 0 : i32
    %c0_i32_0 = arith.constant 0 : i32
    %c0_i32_1 = arith.constant 0 : i32
    return %arg0, %c0_i32, %c0_i32_0 : i32, i32, i32
  }
  func.func @transform_3(%arg0: i32) -> (i32, i32, i32) {
    %c0_i32 = arith.constant 0 : i32
    %c0_i32_0 = arith.constant 0 : i32
    %c0_i32_1 = arith.constant 0 : i32
    %c0_i32_2 = arith.constant 0 : i32
    return %c0_i32, %c0_i32_0, %c0_i32_1 : i32, i32, i32
  }
  func.func @transform_4(%arg0: i32) -> (i32, i32) {
    %c0_i32 = arith.constant 0 : i32
    %c0_i32_0 = arith.constant 0 : i32
    %c0_i32_1 = arith.constant 0 : i32
    return %c0_i32, %c0_i32_0 : i32, i32
  }
  func.func @transform_5(%arg0: i32) -> (i32, i32, i32) {
    %c0_i32 = arith.constant 0 : i32
    %c0_i32_0 = arith.constant 0 : i32
    %c0_i32_1 = arith.constant 0 : i32
    return %arg0, %c0_i32, %c0_i32_0 : i32, i32, i32
  }
}

module attributes {stable_mosaic.version = 11 : i64} {
  func.func @_gap_kernel(%arg0: i32, %arg1: memref<2x16x128xbf16, #tpu.memory_space<vmem>>, %arg2: memref<2x128xf32, #tpu.memory_space<vmem>>, %arg3: memref<2x128xf32, #tpu.memory_space<vmem>>) attributes {dimension_semantics = [#tpu.dimension_semantics<arbitrary>], iteration_bounds = array<i64: 1>, scalar_prefetch = 0 : i64, scratch_operands = 1 : i64, tpu.core_type = #tpu.core_type<tc>, window_params = [{transform_indices = @transform_0, window_bounds = array<i64: 2, 16, 128>}, {pipeline_mode = #tpu.pipeline_mode<synchronous>, transform_indices = @transform_1, window_bounds = array<i64: 2, 128>}]} {
    %c0_i32 = arith.constant 0 : i32
    %0 = arith.cmpi eq, %arg0, %c0_i32 : i32
    %1 = arith.extui %0 : i1 to i32
    %c0_i32_0 = arith.constant 0 : i32
    %2 = arith.cmpi ne, %1, %c0_i32_0 : i32
    scf.if %2 {
      %cst_9 = arith.constant 0.000000e+00 : f32
      %12 = vector.broadcast %cst_9 : f32 to vector<2x128xf32>
      %c0_10 = arith.constant 0 : index
      %c0_11 = arith.constant 0 : index
      %13 = vector.load %arg3[%c0_10, %c0_11] : memref<2x128xf32, #tpu.memory_space<vmem>>, vector<2x128xf32>
      tpu.vector_store %arg3[%c0_10, %c0_11], %12 {strides = array<i32>} : memref<2x128xf32, #tpu.memory_space<vmem>>, vector<2x128xf32>,
    } else {
    }
    %c0 = arith.constant 0 : index
    %c0_1 = arith.constant 0 : index
    %3 = vector.load %arg3[%c0, %c0_1] : memref<2x128xf32, #tpu.memory_space<vmem>>, vector<2x128xf32>
    %c0_2 = arith.constant 0 : index
    %c0_3 = arith.constant 0 : index
    %c0_4 = arith.constant 0 : index
    %4 = vector.load %arg1[%c0_2, %c0_3, %c0_4] : memref<2x16x128xbf16, #tpu.memory_space<vmem>>, vector<2x16x128xbf16>
    %5 = arith.extf %4 : vector<2x16x128xbf16> to vector<2x16x128xf32>
    %cst = arith.constant dense<0.000000e+00> : vector<2x128xf32>
    %6 = vector.multi_reduction <add>, %5, %cst [1] : vector<2x16x128xf32> to vector<2x128xf32>
    %7 = arith.addf %3, %6 : vector<2x128xf32>
    %c0_5 = arith.constant 0 : index
    %c0_6 = arith.constant 0 : index
    %8 = vector.load %arg3[%c0_5, %c0_6] : memref<2x128xf32, #tpu.memory_space<vmem>>, vector<2x128xf32>
    tpu.vector_store %arg3[%c0_5, %c0_6], %7 {strides = array<i32>} : memref<2x128xf32, #tpu.memory_space<vmem>>, vector<2x128xf32>,
    %c0_i32_7 = arith.constant 0 : i32
    %9 = arith.cmpi eq, %arg0, %c0_i32_7 : i32
    %10 = arith.extui %9 : i1 to i32
    %c0_i32_8 = arith.constant 0 : i32
    %11 = arith.cmpi ne, %10, %c0_i32_8 : i32
    scf.if %11 {
      %c0_9 = arith.constant 0 : index
      %c0_10 = arith.constant 0 : index
      %12 = vector.load %arg3[%c0_9, %c0_10] : memref<2x128xf32, #tpu.memory_space<vmem>>, vector<2x128xf32>
      %cst_11 = arith.constant 6.250000e-02 : f32
      %13 = vector.broadcast %cst_11 : f32 to vector<2x128xf32>
      %14 = arith.mulf %12, %13 : vector<2x128xf32>
      %c0_12 = arith.constant 0 : index
      %c0_13 = arith.constant 0 : index
      %15 = vector.load %arg2[%c0_12, %c0_13] : memref<2x128xf32, #tpu.memory_space<vmem>>, vector<2x128xf32>
      tpu.vector_store %arg2[%c0_12, %c0_13], %14 {strides = array<i32>} : memref<2x128xf32, #tpu.memory_space<vmem>>, vector<2x128xf32>,
    } else {
    }
    return
  }
  func.func @transform_0(%arg0: i32) -> (i32, i32, i32) {
    %c0_i32 = arith.constant 0 : i32
    %c0_i32_0 = arith.constant 0 : i32
    %c0_i32_1 = arith.constant 0 : i32
    return %c0_i32, %arg0, %c0_i32_0 : i32, i32, i32
  }
  func.func @transform_1(%arg0: i32) -> (i32, i32) {
    %c0_i32 = arith.constant 0 : i32
    %c0_i32_0 = arith.constant 0 : i32
    %c0_i32_1 = arith.constant 0 : i32
    return %c0_i32, %c0_i32_0 : i32, i32
  }
}

module attributes {stable_mosaic.version = 11 : i64} {
  func.func @_matmul_kernel(%arg0: i32, %arg1: i32, %arg2: i32, %arg3: memref<32x128xbf16, #tpu.memory_space<vmem>>, %arg4: memref<128x128xbf16, #tpu.memory_space<vmem>>, %arg5: memref<1x128xf32, #tpu.memory_space<vmem>>, %arg6: memref<32x128xbf16, #tpu.memory_space<vmem>>, %arg7: memref<32x128xbf16, #tpu.memory_space<vmem>>, %arg8: memref<32x128xf32, #tpu.memory_space<vmem>>) attributes {dimension_semantics = [#tpu.dimension_semantics<parallel>, #tpu.dimension_semantics<parallel>, #tpu.dimension_semantics<arbitrary>], iteration_bounds = array<i64: 1, 1, 1>, scalar_prefetch = 0 : i64, scratch_operands = 1 : i64, tpu.core_type = #tpu.core_type<tc>, window_params = [{transform_indices = @transform_0, window_bounds = array<i64: 32, 128>}, {transform_indices = @transform_1, window_bounds = array<i64: 128, 128>}, {transform_indices = @transform_2, window_bounds = array<i64: 1, 128>}, {transform_indices = @transform_3, window_bounds = array<i64: 32, 128>}, {transform_indices = @transform_4, window_bounds = array<i64: 32, 128>}]} {
    %c0_i32 = arith.constant 0 : i32
    %0 = arith.cmpi eq, %arg2, %c0_i32 : i32
    %1 = arith.extui %0 : i1 to i32
    %c0_i32_0 = arith.constant 0 : i32
    %2 = arith.cmpi ne, %1, %c0_i32_0 : i32
    scf.if %2 {
      %cst_10 = arith.constant 0.000000e+00 : f32
      %12 = vector.broadcast %cst_10 : f32 to vector<32x128xf32>
      %c0_11 = arith.constant 0 : index
      %c0_12 = arith.constant 0 : index
      %13 = vector.load %arg8[%c0_11, %c0_12] : memref<32x128xf32, #tpu.memory_space<vmem>>, vector<32x128xf32>
      tpu.vector_store %arg8[%c0_11, %c0_12], %12 {strides = array<i32>} : memref<32x128xf32, #tpu.memory_space<vmem>>, vector<32x128xf32>,
    } else {
    }
    %c0 = arith.constant 0 : index
    %c0_1 = arith.constant 0 : index
    %3 = vector.load %arg8[%c0, %c0_1] : memref<32x128xf32, #tpu.memory_space<vmem>>, vector<32x128xf32>
    %c0_2 = arith.constant 0 : index
    %c0_3 = arith.constant 0 : index
    %4 = vector.load %arg3[%c0_2, %c0_3] : memref<32x128xbf16, #tpu.memory_space<vmem>>, vector<32x128xbf16>
    %c0_4 = arith.constant 0 : index
    %c0_5 = arith.constant 0 : index
    %5 = vector.load %arg4[%c0_4, %c0_5] : memref<128x128xbf16, #tpu.memory_space<vmem>>, vector<128x128xbf16>
    %cst = arith.constant dense<0.000000e+00> : vector<32x128xf32>
    %6 = tpu.matmul %4, %5, %cst {dimension_numbers = #tpu.dot_dimension_numbers<[1], [0], [0], [1], [0, 0, 1, 1], [], []>} : vector<32x128xbf16>, vector<128x128xbf16>, vector<32x128xf32> -> vector<32x128xf32>
    %7 = arith.addf %3, %6 : vector<32x128xf32>
    %c0_6 = arith.constant 0 : index
    %c0_7 = arith.constant 0 : index
    %8 = vector.load %arg8[%c0_6, %c0_7] : memref<32x128xf32, #tpu.memory_space<vmem>>, vector<32x128xf32>
    tpu.vector_store %arg8[%c0_6, %c0_7], %7 {strides = array<i32>} : memref<32x128xf32, #tpu.memory_space<vmem>>, vector<32x128xf32>,
    %c0_i32_8 = arith.constant 0 : i32
    %9 = arith.cmpi eq, %arg2, %c0_i32_8 : i32
    %10 = arith.extui %9 : i1 to i32
    %c0_i32_9 = arith.constant 0 : i32
    %11 = arith.cmpi ne, %10, %c0_i32_9 : i32
    scf.if %11 {
      %c0_10 = arith.constant 0 : index
      %c0_11 = arith.constant 0 : index
      %12 = vector.load %arg8[%c0_10, %c0_11] : memref<32x128xf32, #tpu.memory_space<vmem>>, vector<32x128xf32>
      %c0_12 = arith.constant 0 : index
      %c0_13 = arith.constant 0 : index
      %13 = vector.load %arg5[%c0_12, %c0_13] : memref<1x128xf32, #tpu.memory_space<vmem>>, vector<1x128xf32>
      %14 = vector.broadcast %13 : vector<1x128xf32> to vector<32x128xf32>
      %15 = arith.addf %12, %14 : vector<32x128xf32>
      %c0_14 = arith.constant 0 : index
      %c0_15 = arith.constant 0 : index
      %16 = vector.load %arg6[%c0_14, %c0_15] : memref<32x128xbf16, #tpu.memory_space<vmem>>, vector<32x128xbf16>
      %17 = arith.extf %16 : vector<32x128xbf16> to vector<32x128xf32>
      %18 = arith.addf %15, %17 : vector<32x128xf32>
      %cst_16 = arith.constant 0.000000e+00 : f32
      %19 = vector.broadcast %cst_16 : f32 to vector<32x128xf32>
      %20 = arith.maximumf %18, %19 : vector<32x128xf32>
      %21 = arith.truncf %20 : vector<32x128xf32> to vector<32x128xbf16>
      %c0_17 = arith.constant 0 : index
      %c0_18 = arith.constant 0 : index
      %22 = vector.load %arg7[%c0_17, %c0_18] : memref<32x128xbf16, #tpu.memory_space<vmem>>, vector<32x128xbf16>
      tpu.vector_store %arg7[%c0_17, %c0_18], %21 {strides = array<i32>} : memref<32x128xbf16, #tpu.memory_space<vmem>>, vector<32x128xbf16>,
    } else {
    }
    return
  }
  func.func @transform_0(%arg0: i32, %arg1: i32, %arg2: i32) -> (i32, i32) {
    %c0_i32 = arith.constant 0 : i32
    return %arg0, %arg2 : i32, i32
  }
  func.func @transform_1(%arg0: i32, %arg1: i32, %arg2: i32) -> (i32, i32) {
    %c0_i32 = arith.constant 0 : i32
    return %arg2, %arg1 : i32, i32
  }
  func.func @transform_2(%arg0: i32, %arg1: i32, %arg2: i32) -> (i32, i32) {
    %c0_i32 = arith.constant 0 : i32
    %c0_i32_0 = arith.constant 0 : i32
    return %c0_i32, %arg1 : i32, i32
  }
  func.func @transform_3(%arg0: i32, %arg1: i32, %arg2: i32) -> (i32, i32) {
    %c0_i32 = arith.constant 0 : i32
    return %arg0, %arg1 : i32, i32
  }
  func.func @transform_4(%arg0: i32, %arg1: i32, %arg2: i32) -> (i32, i32) {
    %c0_i32 = arith.constant 0 : i32
    return %arg0, %arg1 : i32, i32
  }
}

</mosaic_0001>

<llo_original>
// kernel: backbone_forward.11
$region0: #{backbone_forward.11}
  #allocation0 [shape = 'u32[]', space=smem, size = 0x4, offset = 0x4, fixed_abs, tag = 'smem constant byte address 0x4 - core index']
  #allocation1 [shape = 'u32[144,128]{1,0:T(1,128)}', space=vmem, size = 0x12000, scoped, tag = 'internal scratch']
  %s0 = inlined_call_operand.vmem [shape: bf16[2,10,4,128], index: 0, kind: input, shape index: {}]
  %s1 = inlined_call_operand.vmem [shape: bf16[2,10,4,128], index: 1, kind: input, shape index: {}]
  %s2 = inlined_call_operand.vmem [shape: bf16[2,10,4,128], index: 2, kind: input, shape index: {}]
  %s3 = inlined_call_operand.vmem [shape: bf16[2,4,4,128], index: 3, kind: output, shape index: {}]
  %s4 = sld [smem:[#allocation0]]
  $region45: #{backbone_forward.11} parent=0
    _
  %s6 = ssub.s32 1, %s4
  %s7 = scalar_select 0, %s6, %s4
  loop: start=0, step=1, limit=4
  $region2: #{backbone_forward.11} parent=0 // loop_pre_header
    _
  $region3: #{backbone_forward.11} parent=0 // loop_header
    %s9 = sphi 0, %s13
    %p10 = scmp.ge.s32.totalorder %s9, 4
    %s19 = sphi 0, %s21
    %s22 = sphi 0, %s19
    %s23 = sphi 0, %s22
    %s39 = sphi 0, %s23
    %s45 = sphi 0, %s47
    %s48 = sphi 0, %s45
    %s49 = sphi 0, %s48
    %s65 = sphi 0, %s49
    %s71 = sphi 0, %s73
    %s74 = sphi 0, %s71
    %s75 = sphi 0, %s74
    %s91 = sphi 0, %s75
    %s97 = sphi 0, %s99
    %s100 = sphi 0, %s97
    %s101 = sphi 0, %s100
    %s117 = sphi 0, %s101
  $region4: #{backbone_forward.11} parent=0 // loop_header_branch
    %12 = sbr.rel (%p10) target = $region8
  $region5: #{backbone_forward.11} parent=0 // loop_body
    %s14 = ssub.s32 %s9, 1
    %s15 = ssub.s32 %s9, 2
    %s16 = sadd.s32 %s9, 1
    %s17 = ssub.s32 %s9, %s16
    %p18 = scmp.eq.s32.totalorder %s17, 0
    %s20 = sadd.s32 %s19, 1
    %s21 = scalar_select %p18, %s19, %s20
    %p24 = pneg %p18
    %p25 = scmp.eq.s32.totalorder %s9, 1
    %p26 = por %p24, %p25
    %p27 = scmp.ne.s32.totalorder %s19, %s22
    %p28 = scmp.eq.s32.totalorder %s9, 0
    %p29 = por %p27, %p28
    %p30 = scmp.ne.s32.totalorder %s19, %s22
    %p31 = scmp.eq.s32.totalorder %s14, 1
    %p32 = por %p30, %p31
    %p33 = scmp.ne.s32.totalorder %s22, %s23
    %p34 = scmp.eq.s32.totalorder %s14, 0
    %p35 = por %p33, %p34
    %p36 = scmp.ne.s32.totalorder %s22, %s23
    %p37 = scmp.eq.s32.totalorder %s15, 1
    %p38 = por %p36, %p37
    %p40 = scmp.ne.s32.totalorder %s23, %s39
    %p41 = scmp.eq.s32.totalorder %s15, 0
    %p42 = por %p40, %p41
    %s43 = ssub.s32 %s9, %s16
    %p44 = scmp.eq.s32.totalorder %s43, 0
    %s46 = sadd.s32 %s45, 1
    %s47 = scalar_select %p44, %s45, %s46
    %p50 = pneg %p44
    %p51 = scmp.eq.s32.totalorder %s9, 1
    %p52 = por %p50, %p51
    %p53 = scmp.ne.s32.totalorder %s45, %s48
    %p54 = scmp.eq.s32.totalorder %s9, 0
    %p55 = por %p53, %p54
    %p56 = scmp.ne.s32.totalorder %s45, %s48
    %p57 = scmp.eq.s32.totalorder %s14, 1
    %p58 = por %p56, %p57
    %p59 = scmp.ne.s32.totalorder %s48, %s49
    %p60 = scmp.eq.s32.totalorder %s14, 0
    %p61 = por %p59, %p60
    %p62 = scmp.ne.s32.totalorder %s48, %s49
    %p63 = scmp.eq.s32.totalorder %s15, 1
    %p64 = por %p62, %p63
    %p66 = scmp.ne.s32.totalorder %s49, %s65
    %p67 = scmp.eq.s32.totalorder %s15, 0
    %p68 = por %p66, %p67
    %s69 = ssub.s32 %s9, %s16
    %p70 = scmp.eq.s32.totalorder %s69, 0
    %s72 = sadd.s32 %s71, 1
    %s73 = scalar_select %p70, %s71, %s72
    %p76 = pneg %p70
    %p77 = scmp.eq.s32.totalorder %s9, 1
    %p78 = por %p76, %p77
    %p79 = scmp.ne.s32.totalorder %s71, %s74
    %p80 = scmp.eq.s32.totalorder %s9, 0
    %p81 = por %p79, %p80
    %p82 = scmp.ne.s32.totalorder %s71, %s74
    %p83 = scmp.eq.s32.totalorder %s14, 1
    %p84 = por %p82, %p83
    %p85 = scmp.ne.s32.totalorder %s74, %s75
    %p86 = scmp.eq.s32.totalorder %s14, 0
    %p87 = por %p85, %p86
    %p88 = scmp.ne.s32.totalorder %s74, %s75
    %p89 = scmp.eq.s32.totalorder %s15, 1
    %p90 = por %p88, %p89
    %p92 = scmp.ne.s32.totalorder %s75, %s91
    %p93 = scmp.eq.s32.totalorder %s15, 0
    %p94 = por %p92, %p93
    %s95 = ssub.s32 %s9, %s16
    %p96 = scmp.eq.s32.totalorder %s95, 0
    %s98 = sadd.s32 %s97, 1
    %s99 = scalar_select %p96, %s97, %s98
    %p102 = pneg %p96
    %p103 = scmp.eq.s32.totalorder %s9, 1
    %p104 = por %p102, %p103
    %p105 = scmp.ne.s32.totalorder %s97, %s100
    %p106 = scmp.eq.s32.totalorder %s9, 0
    %p107 = por %p105, %p106
    %p108 = scmp.ne.s32.totalorder %s97, %s100
    %p109 = scmp.eq.s32.totalorder %s14, 1
    %p110 = por %p108, %p109
    %p111 = scmp.ne.s32.totalorder %s100, %s101
    %p112 = scmp.eq.s32.totalorder %s14, 0
    %p113 = por %p111, %p112
    %p114 = scmp.ne.s32.totalorder %s100, %s101
    %p115 = scmp.eq.s32.totalorder %s15, 1
    %p116 = por %p114, %p115
    %p118 = scmp.ne.s32.totalorder %s101, %s117
    %p119 = scmp.eq.s32.totalorder %s15, 0
    %p120 = por %p118, %p119
    %p121 = scmp.le.s32.totalorder 1, %s9
    %p122 = scmp.lt.s32.totalorder %s9, 3
    %p123 = pnand %p121, %p122
    %p124 = pneg %p123
    // Predicated region
    $region9: #{backbone_forward.11} parent=5 // pred_check
      _
    $region10: #{backbone_forward.11} parent=5 // pred_check_branch
      %126 = sbr.rel (%p123) target = $region12
    $region11: #{backbone_forward.11} parent=5 // pred_region
      %s127 = ssub.s32 %s9, 1
    $region12: #{backbone_forward.11} parent=5 // pred_fallthru
      _
    %p128 = scmp.lt.s32.totalorder %s9, 2
    // Predicated region
    $region13: #{backbone_forward.11} parent=5 // pred_check
      %p129 = pneg %p128
    $region14: #{backbone_forward.11} parent=5 // pred_check_branch
      %131 = sbr.rel (%p129) target = $region16
    $region15: #{backbone_forward.11} parent=5 // pred_region
      // Predicated region
      $region17: #{backbone_forward.11} parent=15 // pred_check
        %p132 = pneg %p29
      $region18: #{backbone_forward.11} parent=15 // pred_check_branch
        %134 = sbr.rel (%p132) target = $region20
      $region19: #{backbone_forward.11} parent=15 // pred_region
        %p135 = scmp.lt.s32.totalorder %s9, 1
        %s136 = scalar_select %p135, %s9, 1
        %s137 = smul.addr %s136, 10
        %s138 = smul.addr %s137, 2
        %s139 = scalar_lea.vmem %s0, %s138
      $region20: #{backbone_forward.11} parent=15 // pred_fallthru
        _
      // Predicated region
      $region21: #{backbone_forward.11} parent=15 // pred_check
        %p140 = pneg %p55
      $region22: #{backbone_forward.11} parent=15 // pred_check_branch
        %142 = sbr.rel (%p140) target = $region24
      $region23: #{backbone_forward.11} parent=15 // pred_region
        %p143 = scmp.lt.s32.totalorder %s9, 1
        %s144 = scalar_select %p143, %s9, 1
        %s145 = smul.addr %s144, 10
        %s146 = smul.addr %s145, 2
        %s147 = scalar_lea.vmem %s1, %s146
      $region24: #{backbone_forward.11} parent=15 // pred_fallthru
        _
      // Predicated region
      $region25: #{backbone_forward.11} parent=15 // pred_check
        %p148 = pneg %p81
      $region26: #{backbone_forward.11} parent=15 // pred_check_branch
        %150 = sbr.rel (%p148) target = $region28
      $region27: #{backbone_forward.11} parent=15 // pred_region
        %p151 = scmp.lt.s32.totalorder %s9, 1
        %s152 = scalar_select %p151, %s9, 1
        %s153 = smul.addr %s152, 10
        %s154 = smul.addr %s153, 2
        %s155 = scalar_lea.vmem %s2, %s154
      $region28: #{backbone_forward.11} parent=15 // pred_fallthru
        _
    $region16: #{backbone_forward.11} parent=5 // pred_fallthru
      _
    %p156 = scmp.le.s32.totalorder 1, %s9
    %p157 = scmp.lt.s32.totalorder %s9, 3
    %p158 = pnand %p156, %p157
    %p159 = pneg %p158
    // Predicated region
    $region29: #{backbone_forward.11} parent=5 // pred_check
      _
    $region30: #{backbone_forward.11} parent=5 // pred_check_branch
      %161 = sbr.rel (%p158) target = $region32
    $region31: #{backbone_forward.11} parent=5 // pred_region
      %s162 = ssub.s32 %s9, 1
      %p163 = scmp.lt.s32.totalorder %s14, 1
      %s164 = scalar_select %p163, %s14, 1
      %s165 = smul.addr %s164, 10
      %s166 = smul.addr %s165, 2
      %s167 = scalar_lea.vmem %s0, %s166
      %p168 = pneg %p35
      %p169 = pneg %p32
      %p170 = scmp.lt.s32.totalorder %s14, 1
      %s171 = scalar_select %p170, %s14, 1
      %s172 = smul.addr %s171, 10
      %s173 = smul.addr %s172, 2
      %s174 = scalar_lea.vmem %s1, %s173
      %p175 = pneg %p61
      %p176 = pneg %p58
      %p177 = scmp.lt.s32.totalorder %s14, 1
      %s178 = scalar_select %p177, %s14, 1
      %s179 = smul.addr %s178, 10
      %s180 = smul.addr %s179, 2
      %s181 = scalar_lea.vmem %s2, %s180
      %p182 = pneg %p87
      %p183 = pneg %p84
      %p184 = pneg %p113
      %p185 = pneg %p110
      %p186 = scmp.lt.s32.totalorder %s14, 1
      %s187 = scalar_select %p186, %s14, 1
      %s188 = smul.addr %s187, 4
      %s189 = smul.addr %s188, 2
      %s190 = scalar_lea.vmem %s3, %s189
      %p191 = scmp.lt.s32.totalorder %s14, 1
      %s192 = scalar_select %p191, %s14, 1
      %s193 = smul.addr %s192, 10
      %s194 = smul.addr %s193, 2
      %s195 = scalar_lea.vmem %s0, %s194
      %p196 = scmp.lt.s32.totalorder %s14, 1
      %s197 = scalar_select %p196, %s14, 1
      %s198 = smul.addr %s197, 10
      %s199 = smul.addr %s198, 2
      %s200 = scalar_lea.vmem %s1, %s199
      %p201 = scmp.lt.s32.totalorder %s14, 1
      %s202 = scalar_select %p201, %s14, 1
      %s203 = smul.addr %s202, 10
      %s204 = smul.addr %s203, 2
      %s205 = scalar_lea.vmem %s2, %s204
      %p206 = scmp.lt.s32.totalorder %s14, 1
      %s207 = scalar_select %p206, %s14, 1
      %s208 = smul.addr %s207, 4
      %s209 = smul.addr %s208, 2
      %s210 = scalar_lea.vmem %s3, %s209
      %v211 = vld [vmem:[%s195] sm:$0x3]
      %v212 = vld [vmem:[%s195 + $0x2] sm:$0x3]
      %v213 = vld [vmem:[%s195 + $0x4] sm:$0x3]
      %v214 = vld [vmem:[%s195 + $0x6] sm:$0x3]
      %v215 = vld [vmem:[%s195 + $0x8] sm:$0x3]
      %v216 = vld [vmem:[%s195 + $0xa] sm:$0x3]
      %v217 = vld [vmem:[%s195 + $0xc] sm:$0x3]
      %v218 = vld [vmem:[%s195 + $0xe] sm:$0x3]
      %v219 = vld [vmem:[%s195 + $0x10] sm:$0x3]
      %v220 = vunpack.c.l.bf16 %v211
      %v221 = vunpack.c.l.bf16 %v212
      %v222 = vunpack.c.l.bf16 %v213
      %v223 = vunpack.c.l.bf16 %v214
      %v224 = vunpack.c.l.bf16 %v215
      %v225 = vunpack.c.l.bf16 %v216
      %v226 = vunpack.c.l.bf16 %v217
      %v227 = vunpack.c.l.bf16 %v218
      %v228 = vunpack.c.l.bf16 %v219
      %v229 = vld [vmem:[%s200] sm:$0x3]
      %v230 = vld [vmem:[%s200 + $0x2] sm:$0x3]
      %v231 = vld [vmem:[%s200 + $0x4] sm:$0x3]
      %v232 = vld [vmem:[%s200 + $0x6] sm:$0x3]
      %v233 = vld [vmem:[%s200 + $0x8] sm:$0x3]
      %v234 = vld [vmem:[%s200 + $0xa] sm:$0x3]
      %v235 = vld [vmem:[%s200 + $0xc] sm:$0x3]
      %v236 = vld [vmem:[%s200 + $0xe] sm:$0x3]
      %v237 = vld [vmem:[%s200 + $0x10] sm:$0x3]
      %v238 = vunpack.c.l.bf16 %v229
      %v239 = vunpack.c.l.bf16 %v230
      %v240 = vunpack.c.l.bf16 %v231
      %v241 = vunpack.c.l.bf16 %v232
      %v242 = vunpack.c.l.bf16 %v233
      %v243 = vunpack.c.l.bf16 %v234
      %v244 = vunpack.c.l.bf16 %v235
      %v245 = vunpack.c.l.bf16 %v236
      %v246 = vunpack.c.l.bf16 %v237
      %v247 = vmax.f32 %v220, %v238
      %v248 = vmax.f32 %v221, %v239
      %v249 = vmax.f32 %v222, %v240
      %v250 = vmax.f32 %v223, %v241
      %v251 = vmax.f32 %v224, %v242
      %v252 = vmax.f32 %v225, %v243
      %v253 = vmax.f32 %v226, %v244
      %v254 = vmax.f32 %v227, %v245
      %v255 = vmax.f32 %v228, %v246
      %v256 = vld [vmem:[%s205] sm:$0x3]
      %v257 = vld [vmem:[%s205 + $0x2] sm:$0x3]
      %v258 = vld [vmem:[%s205 + $0x4] sm:$0x3]
      %v259 = vld [vmem:[%s205 + $0x6] sm:$0x3]
      %v260 = vld [vmem:[%s205 + $0x8] sm:$0x3]
      %v261 = vld [vmem:[%s205 + $0xa] sm:$0x3]
      %v262 = vld [vmem:[%s205 + $0xc] sm:$0x3]
      %v263 = vld [vmem:[%s205 + $0xe] sm:$0x3]
      %v264 = vld [vmem:[%s205 + $0x10] sm:$0x3]
      %v265 = vunpack.c.l.bf16 %v256
      %v266 = vunpack.c.l.bf16 %v257
      %v267 = vunpack.c.l.bf16 %v258
      %v268 = vunpack.c.l.bf16 %v259
      %v269 = vunpack.c.l.bf16 %v260
      %v270 = vunpack.c.l.bf16 %v261
      %v271 = vunpack.c.l.bf16 %v262
      %v272 = vunpack.c.l.bf16 %v263
      %v273 = vunpack.c.l.bf16 %v264
      %v274 = vmax.f32 %v247, %v265
      %v275 = vmax.f32 %v248, %v266
      %v276 = vmax.f32 %v249, %v267
      %v277 = vmax.f32 %v250, %v268
      %v278 = vmax.f32 %v251, %v269
      %v279 = vmax.f32 %v252, %v270
      %v280 = vmax.f32 %v253, %v271
      %v281 = vmax.f32 %v254, %v272
      %v282 = vmax.f32 %v255, %v273
      %v283 = vmax.f32 %v274, %v275
      %v284 = vmax.f32 %v276, %v277
      %v285 = vmax.f32 %v278, %v279
      %v286 = vmax.f32 %v280, %v281
      %v287 = vmax.f32 %v283, %v276
      %v288 = vmax.f32 %v284, %v278
      %v289 = vmax.f32 %v285, %v280
      %v290 = vmax.f32 %v286, %v282
      %v291 = vpack.c.bf16 %v287, %v287
      %v292 = vpack.c.bf16 %v288, %v288
      %v293 = vpack.c.bf16 %v289, %v289
      %v294 = vpack.c.bf16 %v290, %v290
      %295 = vst [vmem:[%s210] sm:$0x3] %v291
      %296 = vst [vmem:[%s210 + $0x2] sm:$0x3] %v292
      %297 = vst [vmem:[%s210 + $0x4] sm:$0x3] %v293
      %298 = vst [vmem:[%s210 + $0x6] sm:$0x3] %v294
      %p299 = scmp.lt.s32.totalorder %s14, 1
      %s300 = scalar_select %p299, %s14, 1
      %s301 = smul.addr %s300, 4
      %s302 = smul.addr %s301, 2
      %s303 = scalar_lea.vmem %s3, %s302
      // Predicated region
      $region33: #{backbone_forward.11} parent=31 // pred_check
        %p304 = pneg %p110
      $region34: #{backbone_forward.11} parent=31 // pred_check_branch
        %306 = sbr.rel (%p304) target = $region36
      $region35: #{backbone_forward.11} parent=31 // pred_region
        _
      $region36: #{backbone_forward.11} parent=31 // pred_fallthru
        _
    $region32: #{backbone_forward.11} parent=5 // pred_fallthru
      _
    %p307 = scmp.le.s32.totalorder 2, %s9
    // Predicated region
    $region37: #{backbone_forward.11} parent=5 // pred_check
      %p308 = pneg %p307
    $region38: #{backbone_forward.11} parent=5 // pred_check_branch
      %310 = sbr.rel (%p308) target = $region40
    $region39: #{backbone_forward.11} parent=5 // pred_region
      %s311 = ssub.s32 %s9, 2
      // Predicated region
      $region41: #{backbone_forward.11} parent=39 // pred_check
        %p312 = pneg %p116
      $region42: #{backbone_forward.11} parent=39 // pred_check_branch
        %314 = sbr.rel (%p312) target = $region44
      $region43: #{backbone_forward.11} parent=39 // pred_region
        %p315 = scmp.lt.s32.totalorder %s15, 1
        %s316 = scalar_select %p315, %s15, 1
        %s317 = smul.addr %s316, 4
        %s318 = smul.addr %s317, 2
        %s319 = scalar_lea.vmem %s3, %s318
      $region44: #{backbone_forward.11} parent=39 // pred_fallthru
        _
    $region40: #{backbone_forward.11} parent=5 // pred_fallthru
      _
  $region6: #{backbone_forward.11} parent=0 // loop_footer
    %s13 = sadd.s32 1, %s9
  $region7: #{backbone_forward.11} parent=0 // loop_footer_branch
    %8 = sbr.rel target = $region3
  $region8: #{backbone_forward.11} parent=0 // loop_exit
    _

// kernel: backbone_forward.10
$region0: #{backbone_forward.10}
  #allocation0 [shape = 'u32[]', space=smem, size = 0x4, offset = 0x4, fixed_abs, tag = 'smem constant byte address 0x4 - core index']
  #allocation1 [shape = 'u32[144,128]{1,0:T(1,128)}', space=vmem, size = 0x12000, scoped, tag = 'internal scratch']
  #allocation2 [shape = 'f32[128,128]{1,0:T(8,128)}', space=vmem, size = 0x10000, scoped, tag = 'scratch operand']
  %s0 = inlined_call_operand.vmem [shape: bf16[128,147], index: 0, kind: input, shape index: {}]
  %s1 = inlined_call_operand.vmem [shape: bf16[147,128], index: 1, kind: input, shape index: {}]
  %s2 = inlined_call_operand.vmem [shape: f32[1,128], index: 2, kind: input, shape index: {}]
  %s3 = inlined_call_operand.vmem [shape: bf16[128,128], index: 3, kind: output, shape index: {}]
  %s4 = sld [smem:[#allocation0]]
  $region30: #{backbone_forward.10} parent=0
    _
  %s6 = ssub.s32 1, %s4
  %s7 = scalar_select 0, %s6, %s4
  // Predicated region
  $region2: #{backbone_forward.10} parent=0 // pred_check
    _
  $region3: #{backbone_forward.10} parent=0 // pred_check_branch
    %9 = sbr.rel (0) target = $region5
  $region4: #{backbone_forward.10} parent=0 // pred_region
    _
  $region5: #{backbone_forward.10} parent=0 // pred_fallthru
    _
  // Predicated region
  $region6: #{backbone_forward.10} parent=0 // pred_check
    _
  $region7: #{backbone_forward.10} parent=0 // pred_check_branch
    %11 = sbr.rel (0) target = $region9
  $region8: #{backbone_forward.10} parent=0 // pred_region
    _
  $region9: #{backbone_forward.10} parent=0 // pred_fallthru
    _
  // Predicated region
  $region10: #{backbone_forward.10} parent=0 // pred_check
    _
  $region11: #{backbone_forward.10} parent=0 // pred_check_branch
    %13 = sbr.rel (0) target = $region13
  $region12: #{backbone_forward.10} parent=0 // pred_region
    _
  $region13: #{backbone_forward.10} parent=0 // pred_fallthru
    _
  %p15 = scmp.eq.s32.totalorder 0, 0
  // Predicated region
  $region14: #{backbone_forward.10} parent=0 // pred_check
    %p16 = pneg %p15
  $region15: #{backbone_forward.10} parent=0 // pred_check_branch
    %18 = sbr.rel (%p16) target = $region17
  $region16: #{backbone_forward.10} parent=0 // pred_region
    %19 = vst [vmem:[#allocation2] sm:$0xff] 0.0
    %20 = vst [vmem:[#allocation2 + $0x8] sm:$0xff] 0.0
    %21 = vst [vmem:[#allocation2 + $0x10] sm:$0xff] 0.0
    %22 = vst [vmem:[#allocation2 + $0x18] sm:$0xff] 0.0
    %23 = vst [vmem:[#allocation2 + $0x20] sm:$0xff] 0.0
    %24 = vst [vmem:[#allocation2 + $0x28] sm:$0xff] 0.0
    %25 = vst [vmem:[#allocation2 + $0x30] sm:$0xff] 0.0
    %26 = vst [vmem:[#allocation2 + $0x38] sm:$0xff] 0.0
    %27 = vst [vmem:[#allocation2 + $0x40] sm:$0xff] 0.0
    %28 = vst [vmem:[#allocation2 + $0x48] sm:$0xff] 0.0
    %29 = vst [vmem:[#allocation2 + $0x50] sm:$0xff] 0.0
    %30 = vst [vmem:[#allocation2 + $0x58] sm:$0xff] 0.0
    %31 = vst [vmem:[#allocation2 + $0x60] sm:$0xff] 0.0
    %32 = vst [vmem:[#allocation2 + $0x68] sm:$0xff] 0.0
    %33 = vst [vmem:[#allocation2 + $0x70] sm:$0xff] 0.0
    %34 = vst [vmem:[#allocation2 + $0x78] sm:$0xff] 0.0
  $region17: #{backbone_forward.10} parent=0 // pred_fallthru
    _
  %v35 = vld [vmem:[#allocation2] sm:$0xff]
  %v36 = vld [vmem:[#allocation2 + $0x8] sm:$0xff]
  %v37 = vld [vmem:[#allocation2 + $0x10] sm:$0xff]
  %v38 = vld [vmem:[#allocation2 + $0x18] sm:$0xff]
  %v39 = vld [vmem:[#allocation2 + $0x20] sm:$0xff]
  %v40 = vld [vmem:[#allocation2 + $0x28] sm:$0xff]
  %v41 = vld [vmem:[#allocation2 + $0x30] sm:$0xff]
  %v42 = vld [vmem:[#allocation2 + $0x38] sm:$0xff]
  %v43 = vld [vmem:[#allocation2 + $0x40] sm:$0xff]
  %v44 = vld [vmem:[#allocation2 + $0x48] sm:$0xff]
  %v45 = vld [vmem:[#allocation2 + $0x50] sm:$0xff]
  %v46 = vld [vmem:[#allocation2 + $0x58] sm:$0xff]
  %v47 = vld [vmem:[#allocation2 + $0x60] sm:$0xff]
  %v48 = vld [vmem:[#allocation2 + $0x68] sm:$0xff]
  %v49 = vld [vmem:[#allocation2 + $0x70] sm:$0xff]
  %v50 = vld [vmem:[#allocation2 + $0x78] sm:$0xff]
  %v51 = vld [vmem:[%s0] sm:$0xff]
  %v52 = vld [vmem:[%s0 + $0x8] sm:$0xff]
  %v53 = vld [vmem:[%s0 + $0x10] sm:$0xff]
  %v54 = vld [vmem:[%s0 + $0x18] sm:$0xff]
  %v55 = vld [vmem:[%s0 + $0x20] sm:$0xff]
  %v56 = vld [vmem:[%s0 + $0x28] sm:$0xff]
  %v57 = vld [vmem:[%s0 + $0x30] sm:$0xff]
  %v58 = vld [vmem:[%s0 + $0x38] sm:$0xff]
  %v59 = vld [vmem:[%s0 + $0x40] sm:$0xff]
  %v60 = vld [vmem:[%s0 + $0x48] sm:$0xff]
  %v61 = vld [vmem:[%s0 + $0x50] sm:$0xff]
  %v62 = vld [vmem:[%s0 + $0x58] sm:$0xff]
  %v63 = vld [vmem:[%s0 + $0x60] sm:$0xff]
  %v64 = vld [vmem:[%s0 + $0x68] sm:$0xff]
  %v65 = vld [vmem:[%s0 + $0x70] sm:$0xff]
  %v66 = vld [vmem:[%s0 + $0x78] sm:$0xff]
  %v67 = vld [vmem:[%s1] sm:$0xf]
  %v68 = vld [vmem:[%s1 + $0x4] sm:$0xf]
  %v69 = vld [vmem:[%s1 + $0x8] sm:$0xf]
  %v70 = vld [vmem:[%s1 + $0xc] sm:$0xf]
  %v71 = vld [vmem:[%s1 + $0x10] sm:$0xf]
  %v72 = vld [vmem:[%s1 + $0x14] sm:$0xf]
  %v73 = vld [vmem:[%s1 + $0x18] sm:$0xf]
  %v74 = vld [vmem:[%s1 + $0x1c] sm:$0xf]
  %v75 = vld [vmem:[%s1 + $0x20] sm:$0xf]
  %v76 = vld [vmem:[%s1 + $0x24] sm:$0xf]
  %v77 = vld [vmem:[%s1 + $0x28] sm:$0xf]
  %v78 = vld [vmem:[%s1 + $0x2c] sm:$0xf]
  %v79 = vld [vmem:[%s1 + $0x30] sm:$0xf]
  %v80 = vld [vmem:[%s1 + $0x34] sm:$0xf]
  %v81 = vld [vmem:[%s1 + $0x38] sm:$0xf]
  %v82 = vld [vmem:[%s1 + $0x3c] sm:$0xf]
  %v83 = vld [vmem:[%s1 + $0x40] sm:$0xf]
  %v84 = vld [vmem:[%s1 + $0x44] sm:$0xf]
  %v85 = vld [vmem:[%s1 + $0x48] sm:$0x3]
  %v102 = vunpack.c.l.b16 %v51
  %v103 = vunpack.c.h.b16 %v51
  %v104 = vunpack.c.l.b16 %v52
  %v105 = vunpack.c.h.b16 %v52
  %v106 = vunpack.c.l.b16 %v53
  %v107 = vunpack.c.h.b16 %v53
  %v108 = vunpack.c.l.b16 %v54
  %v109 = vunpack.c.h.b16 %v54
  %v110 = vunpack.c.l.b16 %v55
  %v111 = vunpack.c.h.b16 %v55
  %v112 = vunpack.c.l.b16 %v56
  %v113 = vunpack.c.h.b16 %v56
  %v114 = vunpack.c.l.b16 %v57
  %v115 = vunpack.c.h.b16 %v57
  %v116 = vunpack.c.l.b16 %v58
  %v117 = vunpack.c.h.b16 %v58
  %v118 = vunpack.c.l.b16 %v59
  %v119 = vunpack.c.h.b16 %v59
  %v120 = vunpack.c.l.b16 %v60
  %v121 = vunpack.c.h.b16 %v60
  %v122 = vunpack.c.l.b16 %v61
  %v123 = vunpack.c.h.b16 %v61
  %v124 = vunpack.c.l.b16 %v62
  %v125 = vunpack.c.h.b16 %v62
  %v126 = vunpack.c.l.b16 %v63
  %v127 = vunpack.c.h.b16 %v63
  %v128 = vunpack.c.l.b16 %v64
  %v129 = vunpack.c.h.b16 %v64
  %v130 = vunpack.c.l.b16 %v65
  %v131 = vunpack.c.h.b16 %v65
  %v132 = vunpack.c.l.b16 %v66
  %v133 = vunpack.c.h.b16 %v66
  %v134 = vpack.c.b16 %v104, %v102
  %v135 = vpack.c.b16 %v105, %v103
  %v136 = vpack.c.b16 %v108, %v106
  %v137 = vpack.c.b16 %v109, %v107
  %v138 = vpack.c.b16 %v112, %v110
  %v139 = vpack.c.b16 %v113, %v111
  %v140 = vpack.c.b16 %v116, %v114
  %v141 = vpack.c.b16 %v117, %v115
  %v142 = vpack.c.b16 %v120, %v118
  %v143 = vpack.c.b16 %v121, %v119
  %v144 = vpack.c.b16 %v124, %v122
  %v145 = vpack.c.b16 %v125, %v123
  %v146 = vpack.c.b16 %v128, %v126
  %v147 = vpack.c.b16 %v129, %v127
  %v148 = vpack.c.b16 %v132, %v130
  %v149 = vpack.c.b16 %v133, %v131
  %v177 = vunpack.c.l.b16 %v67
  %v178 = vunpack.c.l.b16 %v68
  %v179 = vunpack.c.l.b16 %v69
  %v180 = vunpack.c.l.b16 %v70
  %v181 = vunpack.c.l.b16 %v71
  %v182 = vunpack.c.l.b16 %v72
  %v183 = vunpack.c.l.b16 %v73
  %v184 = vunpack.c.l.b16 %v74
  %v185 = vunpack.c.l.b16 %v75
  %v186 = vunpack.c.l.b16 %v76
  %v187 = vunpack.c.l.b16 %v77
  %v188 = vunpack.c.l.b16 %v78
  %v189 = vunpack.c.l.b16 %v79
  %v190 = vunpack.c.l.b16 %v80
  %v191 = vunpack.c.l.b16 %v81
  %v192 = vunpack.c.l.b16 %v82
  %v193 = vunpack.c.l.b16 %v83
  %v194 = vunpack.c.l.b16 %v84
  %v195 = vunpack.c.l.b16 %v85
  %v196 = vpack.c.b16 %v178, %v177
  %v197 = vpack.c.b16 %v180, %v179
  %v198 = vpack.c.b16 %v182, %v181
  %v199 = vpack.c.b16 %v184, %v183
  %v200 = vpack.c.b16 %v186, %v185
  %v201 = vpack.c.b16 %v188, %v187
  %v202 = vpack.c.b16 %v190, %v189
  %v203 = vpack.c.b16 %v192, %v191
  %v204 = vpack.c.b16 %v194, %v193
  %v205 = vpack.c.b16 %v195, %v195
  %vm215 = vcmask 154624
  %v217 = vsel %vm215, %v135, 0
  %v220 = vsel %vm215, %v137, 0
  %v223 = vsel %vm215, %v139, 0
  %v226 = vsel %vm215, %v141, 0
  %v229 = vsel %vm215, %v143, 0
  %v232 = vsel %vm215, %v145, 0
  %v235 = vsel %vm215, %v147, 0
  %v238 = vsel %vm215, %v149, 0
  %vm240 = vcmask 1040384
  %vm241 = vcmask 1041408
  %v242 = vsel %vm240, 4294967295, 65535
  %v243 = vsel %vm241, %v242, 0
  %v245 = vand.u32 %v205, %v243
  %247 = vmatprep.subr.bf16.mxu0 0
  %248 = vmatpush1.bf16.msra.mxu0 %v196
  %249 = vmatprep.subr.bf16.mxu0 0
  %250 = vmatpush1.bf16.msra.mxu0 %v197
  %251 = vmatprep.subr.bf16.mxu0 0
  %252 = vmatpush1.bf16.msra.mxu0 %v198
  %253 = vmatprep.subr.bf16.mxu0 0
  %254 = vmatpush1.bf16.msra.mxu0 %v199
  %255 = vmatprep.subr.bf16.mxu0 0
  %256 = vmatpush1.bf16.msra.mxu0 %v200
  %257 = vmatprep.subr.bf16.mxu0 0
  %258 = vmatpush1.bf16.msra.mxu0 %v201
  %259 = vmatprep.subr.bf16.mxu0 0
  %260 = vmatpush1.bf16.msra.mxu0 %v202
  %261 = vmatprep.subr.bf16.mxu0 0
  %262 = vmatpush1.bf16.msra.mxu0 %v203
  %263 = vmatprep.subr.bf16.mxu0 0
  %264 = vmatpush1.bf16.msra.mxu0 %v204
  %265 = vmatprep.subr.bf16.mxu0 0
  %266 = vmatpush1.bf16.msra.mxu0 %v245
  %267 = vmatprep.subr.bf16.mxu0 0
  %268 = vmatpush1.bf16.msra.mxu0 0
  %269 = vmatprep.subr.bf16.mxu0 0
  %270 = vmatpush1.bf16.msra.mxu0 0
  %271 = vmatprep.subr.bf16.mxu0 0
  %272 = vmatpush1.bf16.msra.mxu0 0
  %273 = vmatprep.subr.bf16.mxu0 0
  %274 = vmatpush1.bf16.msra.mxu0 0
  %275 = vmatprep.subr.bf16.mxu0 0
  %276 = vmatpush1.bf16.msra.mxu0 0
  %277 = vmatprep.subr.bf16.mxu0 0
  %278 = vmatpush1.bf16.msra.mxu0 0
  %279 = vmatprep.mubr.bf16.mxu0 %v217
  %280 = vmatmul.mubr.bf16.gmra.mrb[0].mxu0 %v134
  %v281 = vpop.f32.mrb[0].mxu0
  %v282 = vadd.f32 0.0, %v281
  %v283 = vpop.f32.mrb[0].mxu0
  %v284 = vpop.f32.mrb[0].mxu0
  %v285 = vadd.f32 0.0, %v284
  %v286 = vpop.f32.mrb[0].mxu0
  %287 = vmatprep.mubr.bf16.mxu0 %v220
  %288 = vmatmul.mubr.bf16.gmra.mrb[0].mxu0 %v136
  %v289 = vpop.f32.mrb[0].mxu0
  %v290 = vadd.f32 0.0, %v289
  %v291 = vpop.f32.mrb[0].mxu0
  %v292 = vpop.f32.mrb[0].mxu0
  %v293 = vadd.f32 0.0, %v292
  %v294 = vpop.f32.mrb[0].mxu0
  %295 = vmatprep.mubr.bf16.mxu0 %v223
  %296 = vmatmul.mubr.bf16.gmra.mrb[0].mxu0 %v138
  %v297 = vpop.f32.mrb[0].mxu0
  %v298 = vadd.f32 0.0, %v297
  %v299 = vpop.f32.mrb[0].mxu0
  %v300 = vpop.f32.mrb[0].mxu0
  %v301 = vadd.f32 0.0, %v300
  %v302 = vpop.f32.mrb[0].mxu0
  %303 = vmatprep.mubr.bf16.mxu0 %v226
  %304 = vmatmul.mubr.bf16.gmra.mrb[0].mxu0 %v140
  %v305 = vpop.f32.mrb[0].mxu0
  %v306 = vadd.f32 0.0, %v305
  %v307 = vpop.f32.mrb[0].mxu0
  %v308 = vpop.f32.mrb[0].mxu0
  %v309 = vadd.f32 0.0, %v308
  %v310 = vpop.f32.mrb[0].mxu0
  %311 = vmatprep.mubr.bf16.mxu0 %v229
  %312 = vmatmul.mubr.bf16.gmra.mrb[0].mxu0 %v142
  %v313 = vpop.f32.mrb[0].mxu0
  %v314 = vadd.f32 0.0, %v313
  %v315 = vpop.f32.mrb[0].mxu0
  %v316 = vpop.f32.mrb[0].mxu0
  %v317 = vadd.f32 0.0, %v316
  %v318 = vpop.f32.mrb[0].mxu0
  %319 = vmatprep.mubr.bf16.mxu0 %v232
  %320 = vmatmul.mubr.bf16.gmra.mrb[0].mxu0 %v144
  %v321 = vpop.f32.mrb[0].mxu0
  %v322 = vadd.f32 0.0, %v321
  %v323 = vpop.f32.mrb[0].mxu0
  %v324 = vpop.f32.mrb[0].mxu0
  %v325 = vadd.f32 0.0, %v324
  %v326 = vpop.f32.mrb[0].mxu0
  %327 = vmatprep.mubr.bf16.mxu0 %v235
  %328 = vmatmul.mubr.bf16.gmra.mrb[0].mxu0 %v146
  %v329 = vpop.f32.mrb[0].mxu0
  %v330 = vadd.f32 0.0, %v329
  %v331 = vpop.f32.mrb[0].mxu0
  %v332 = vpop.f32.mrb[0].mxu0
  %v333 = vadd.f32 0.0, %v332
  %v334 = vpop.f32.mrb[0].mxu0
  %335 = vmatprep.mubr.bf16.mxu0 %v238
  %336 = vmatmul.mubr.bf16.gmra.mrb[0].mxu0 %v148
  %v337 = vpop.f32.mrb[0].mxu0
  %v338 = vadd.f32 0.0, %v337
  %v339 = vpop.f32.mrb[0].mxu0
  %v340 = vpop.f32.mrb[0].mxu0
  %v341 = vadd.f32 0.0, %v340
  %v342 = vpop.f32.mrb[0].mxu0
  %343 = vdwg.mxu0
  %v344 = vadd.f32 %v35, %v282
  %v345 = vadd.f32 %v36, %v285
  %v346 = vadd.f32 %v37, %v290
  %v347 = vadd.f32 %v38, %v293
  %v348 = vadd.f32 %v39, %v298
  %v349 = vadd.f32 %v40, %v301
  %v350 = vadd.f32 %v41, %v306
  %v351 = vadd.f32 %v42, %v309
  %v352 = vadd.f32 %v43, %v314
  %v353 = vadd.f32 %v44, %v317
  %v354 = vadd.f32 %v45, %v322
  %v355 = vadd.f32 %v46, %v325
  %v356 = vadd.f32 %v47, %v330
  %v357 = vadd.f32 %v48, %v333
  %v358 = vadd.f32 %v49, %v338
  %v359 = vadd.f32 %v50, %v341
  %360 = vst [vmem:[#allocation2] sm:$0xff] %v344
  %361 = vst [vmem:[#allocation2 + $0x8] sm:$0xff] %v345
  %362 = vst [vmem:[#allocation2 + $0x10] sm:$0xff] %v346
  %363 = vst [vmem:[#allocation2 + $0x18] sm:$0xff] %v347
  %364 = vst [vmem:[#allocation2 + $0x20] sm:$0xff] %v348
  %365 = vst [vmem:[#allocation2 + $0x28] sm:$0xff] %v349
  %366 = vst [vmem:[#allocation2 + $0x30] sm:$0xff] %v350
  %367 = vst [vmem:[#allocation2 + $0x38] sm:$0xff] %v351
  %368 = vst [vmem:[#allocation2 + $0x40] sm:$0xff] %v352
  %369 = vst [vmem:[#allocation2 + $0x48] sm:$0xff] %v353
  %370 = vst [vmem:[#allocation2 + $0x50] sm:$0xff] %v354
  %371 = vst [vmem:[#allocation2 + $0x58] sm:$0xff] %v355
  %372 = vst [vmem:[#allocation2 + $0x60] sm:$0xff] %v356
  %373 = vst [vmem:[#allocation2 + $0x68] sm:$0xff] %v357
  %374 = vst [vmem:[#allocation2 + $0x70] sm:$0xff] %v358
  %375 = vst [vmem:[#allocation2 + $0x78] sm:$0xff] %v359
  // Predicated region
  $region18: #{backbone_forward.10} parent=0 // pred_check
    %p376 = pneg %p15
  $region19: #{backbone_forward.10} parent=0 // pred_check_branch
    %378 = sbr.rel (%p376) target = $region21
  $region20: #{backbone_forward.10} parent=0 // pred_region
    %v379 = vld [vmem:[#allocation2] sm:$0xff]
    %v380 = vld [vmem:[#allocation2 + $0x8] sm:$0xff]
    %v381 = vld [vmem:[#allocation2 + $0x10] sm:$0xff]
    %v382 = vld [vmem:[#allocation2 + $0x18] sm:$0xff]
    %v383 = vld [vmem:[#allocation2 + $0x20] sm:$0xff]
    %v384 = vld [vmem:[#allocation2 + $0x28] sm:$0xff]
    %v385 = vld [vmem:[#allocation2 + $0x30] sm:$0xff]
    %v386 = vld [vmem:[#allocation2 + $0x38] sm:$0xff]
    %v387 = vld [vmem:[#allocation2 + $0x40] sm:$0xff]
    %v388 = vld [vmem:[#allocation2 + $0x48] sm:$0xff]
    %v389 = vld [vmem:[#allocation2 + $0x50] sm:$0xff]
    %v390 = vld [vmem:[#allocation2 + $0x58] sm:$0xff]
    %v391 = vld [vmem:[#allocation2 + $0x60] sm:$0xff]
    %v392 = vld [vmem:[#allocation2 + $0x68] sm:$0xff]
    %v393 = vld [vmem:[#allocation2 + $0x70] sm:$0xff]
    %v394 = vld [vmem:[#allocation2 + $0x78] sm:$0xff]
    %v395 = vld [vmem:[%s2] sm:$0x1]
    %v397 = vlaneseq
    %v398 = vshrl.u32 %v397, 7
    %v399 = vsub.s32 0, %v398
    %v400 = vrot.slane %v395, %v399
    %v402 = vadd.f32 %v379, %v400
    %v403 = vadd.f32 %v380, %v400
    %v404 = vadd.f32 %v381, %v400
    %v405 = vadd.f32 %v382, %v400
    %v406 = vadd.f32 %v383, %v400
    %v407 = vadd.f32 %v384, %v400
    %v408 = vadd.f32 %v385, %v400
    %v409 = vadd.f32 %v386, %v400
    %v410 = vadd.f32 %v387, %v400
    %v411 = vadd.f32 %v388, %v400
    %v412 = vadd.f32 %v389, %v400
    %v413 = vadd.f32 %v390, %v400
    %v414 = vadd.f32 %v391, %v400
    %v415 = vadd.f32 %v392, %v400
    %v416 = vadd.f32 %v393, %v400
    %v417 = vadd.f32 %v394, %v400
    %v418 = vmax.f32 %v402, 0.0
    %v419 = vmax.f32 %v403, 0.0
    %v420 = vmax.f32 %v404, 0.0
    %v421 = vmax.f32 %v405, 0.0
    %v422 = vmax.f32 %v406, 0.0
    %v423 = vmax.f32 %v407, 0.0
    %v424 = vmax.f32 %v408, 0.0
    %v425 = vmax.f32 %v409, 0.0
    %v426 = vmax.f32 %v410, 0.0
    %v427 = vmax.f32 %v411, 0.0
    %v428 = vmax.f32 %v412, 0.0
    %v429 = vmax.f32 %v413, 0.0
    %v430 = vmax.f32 %v414, 0.0
    %v431 = vmax.f32 %v415, 0.0
    %v432 = vmax.f32 %v416, 0.0
    %v433 = vmax.f32 %v417, 0.0
    %v434 = vpack.c.bf16 %v419, %v418
    %v435 = vpack.c.bf16 %v421, %v420
    %v436 = vpack.c.bf16 %v423, %v422
    %v437 = vpack.c.bf16 %v425, %v424
    %v438 = vpack.c.bf16 %v427, %v426
    %v439 = vpack.c.bf16 %v429, %v428
    %v440 = vpack.c.bf16 %v431, %v430
    %v441 = vpack.c.bf16 %v433, %v432
    %v450 = vunpack.c.l.b16 %v434
    %v451 = vunpack.c.h.b16 %v434
    %v452 = vunpack.c.l.b16 %v435
    %v453 = vunpack.c.h.b16 %v435
    %v454 = vunpack.c.l.b16 %v436
    %v455 = vunpack.c.h.b16 %v436
    %v456 = vunpack.c.l.b16 %v437
    %v457 = vunpack.c.h.b16 %v437
    %v458 = vunpack.c.l.b16 %v438
    %v459 = vunpack.c.h.b16 %v438
    %v460 = vunpack.c.l.b16 %v439
    %v461 = vunpack.c.h.b16 %v439
    %v462 = vunpack.c.l.b16 %v440
    %v463 = vunpack.c.h.b16 %v440
    %v464 = vunpack.c.l.b16 %v441
    %v465 = vunpack.c.h.b16 %v441
    %v466 = vpack.c.b16 %v450, %v450
    %v467 = vpack.c.b16 %v451, %v451
    %v468 = vpack.c.b16 %v452, %v452
    %v469 = vpack.c.b16 %v453, %v453
    %v470 = vpack.c.b16 %v454, %v454
    %v471 = vpack.c.b16 %v455, %v455
    %v472 = vpack.c.b16 %v456, %v456
    %v473 = vpack.c.b16 %v457, %v457
    %v474 = vpack.c.b16 %v458, %v458
    %v475 = vpack.c.b16 %v459, %v459
    %v476 = vpack.c.b16 %v460, %v460
    %v477 = vpack.c.b16 %v461, %v461
    %v478 = vpack.c.b16 %v462, %v462
    %v479 = vpack.c.b16 %v463, %v463
    %v480 = vpack.c.b16 %v464, %v464
    %v481 = vpack.c.b16 %v465, %v465
    %498 = vst [vmem:[%s3] sm:$0xf] %v466
    %499 = vst [vmem:[%s3 + $0x4] sm:$0xf] %v467
    %500 = vst [vmem:[%s3 + $0x8] sm:$0xf] %v468
    %501 = vst [vmem:[%s3 + $0xc] sm:$0xf] %v469
    %502 = vst [vmem:[%s3 + $0x10] sm:$0xf] %v470
    %503 = vst [vmem:[%s3 + $0x14] sm:$0xf] %v471
    %504 = vst [vmem:[%s3 + $0x18] sm:$0xf] %v472
    %505 = vst [vmem:[%s3 + $0x1c] sm:$0xf] %v473
    %506 = vst [vmem:[%s3 + $0x20] sm:$0xf] %v474
    %507 = vst [vmem:[%s3 + $0x24] sm:$0xf] %v475
    %508 = vst [vmem:[%s3 + $0x28] sm:$0xf] %v476
    %509 = vst [vmem:[%s3 + $0x2c] sm:$0xf] %v477
    %510 = vst [vmem:[%s3 + $0x30] sm:$0xf] %v478
    %511 = vst [vmem:[%s3 + $0x34] sm:$0xf] %v479
    %512 = vst [vmem:[%s3 + $0x38] sm:$0xf] %v480
    %513 = vst [vmem:[%s3 + $0x3c] sm:$0xf] %v481
  $region21: #{backbone_forward.10} parent=0 // pred_fallthru
    _
  // Predicated region
  $region22: #{backbone_forward.10} parent=0 // pred_check
    _
  $region23: #{backbone_forward.10} parent=0 // pred_check_branch
    %515 = sbr.rel (0) target = $region25
  $region24: #{backbone_forward.10} parent=0 // pred_region
    _
  $region25: #{backbone_forward.10} parent=0 // pred_fallthru
    _
  // Predicated region
  $region26: #{backbone_forward.10} parent=0 // pred_check
    _
  $region27: #{backbone_forward.10} parent=0 // pred_check_branch
    %517 = sbr.rel (0) target = $region29
  $region28: #{backbone_forward.10} parent=0 // pred_region
    _
  $region29: #{backbone_forward.10} parent=0 // pred_fallthru
    _

// kernel: backbone_forward.13
$region0: #{backbone_forward.13}
  #allocation0 [shape = 'u32[]', space=smem, size = 0x4, offset = 0x4, fixed_abs, tag = 'smem constant byte address 0x4 - core index']
  #allocation1 [shape = 'u32[144,128]{1,0:T(1,128)}', space=vmem, size = 0x12000, scoped, tag = 'internal scratch']
  #allocation2 [shape = 'f32[32,128]{1,0:T(8,128)}', space=vmem, size = 0x4000, scoped, tag = 'scratch operand']
  %s0 = inlined_call_operand.vmem [shape: bf16[32,128], index: 0, kind: input, shape index: {}]
  %s1 = inlined_call_operand.vmem [shape: bf16[128,128], index: 1, kind: input, shape index: {}]
  %s2 = inlined_call_operand.vmem [shape: f32[1,128], index: 2, kind: input, shape index: {}]
  %s3 = inlined_call_operand.vmem [shape: bf16[32,128], index: 3, kind: output, shape index: {}]
  %s4 = sld [smem:[#allocation0]]
  $region30: #{backbone_forward.13} parent=0
    _
  %s6 = ssub.s32 1, %s4
  %s7 = scalar_select 0, %s6, %s4
  // Predicated region
  $region2: #{backbone_forward.13} parent=0 // pred_check
    _
  $region3: #{backbone_forward.13} parent=0 // pred_check_branch
    %9 = sbr.rel (0) target = $region5
  $region4: #{backbone_forward.13} parent=0 // pred_region
    _
  $region5: #{backbone_forward.13} parent=0 // pred_fallthru
    _
  // Predicated region
  $region6: #{backbone_forward.13} parent=0 // pred_check
    _
  $region7: #{backbone_forward.13} parent=0 // pred_check_branch
    %11 = sbr.rel (0) target = $region9
  $region8: #{backbone_forward.13} parent=0 // pred_region
    _
  $region9: #{backbone_forward.13} parent=0 // pred_fallthru
    _
  // Predicated region
  $region10: #{backbone_forward.13} parent=0 // pred_check
    _
  $region11: #{backbone_forward.13} parent=0 // pred_check_branch
    %13 = sbr.rel (0) target = $region13
  $region12: #{backbone_forward.13} parent=0 // pred_region
    _
  $region13: #{backbone_forward.13} parent=0 // pred_fallthru
    _
  %p15 = scmp.eq.s32.totalorder 0, 0
  // Predicated region
  $region14: #{backbone_forward.13} parent=0 // pred_check
    %p16 = pneg %p15
  $region15: #{backbone_forward.13} parent=0 // pred_check_branch
    %18 = sbr.rel (%p16) target = $region17
  $region16: #{backbone_forward.13} parent=0 // pred_region
    %19 = vst [vmem:[#allocation2] sm:$0xff] 0.0
    %20 = vst [vmem:[#allocation2 + $0x8] sm:$0xff] 0.0
    %21 = vst [vmem:[#allocation2 + $0x10] sm:$0xff] 0.0
    %22 = vst [vmem:[#allocation2 + $0x18] sm:$0xff] 0.0
  $region17: #{backbone_forward.13} parent=0 // pred_fallthru
    _
  %v23 = vld [vmem:[#allocation2] sm:$0xff]
  %v24 = vld [vmem:[#allocation2 + $0x8] sm:$0xff]
  %v25 = vld [vmem:[#allocation2 + $0x10] sm:$0xff]
  %v26 = vld [vmem:[#allocation2 + $0x18] sm:$0xff]
  %v27 = vld [vmem:[%s0] sm:$0xf]
  %v28 = vld [vmem:[%s0 + $0x4] sm:$0xf]
  %v29 = vld [vmem:[%s0 + $0x8] sm:$0xf]
  %v30 = vld [vmem:[%s0 + $0xc] sm:$0xf]
  %v31 = vld [vmem:[%s1] sm:$0xf]
  %v32 = vld [vmem:[%s1 + $0x4] sm:$0xf]
  %v33 = vld [vmem:[%s1 + $0x8] sm:$0xf]
  %v34 = vld [vmem:[%s1 + $0xc] sm:$0xf]
  %v35 = vld [vmem:[%s1 + $0x10] sm:$0xf]
  %v36 = vld [vmem:[%s1 + $0x14] sm:$0xf]
  %v37 = vld [vmem:[%s1 + $0x18] sm:$0xf]
  %v38 = vld [vmem:[%s1 + $0x1c] sm:$0xf]
  %v39 = vld [vmem:[%s1 + $0x20] sm:$0xf]
  %v40 = vld [vmem:[%s1 + $0x24] sm:$0xf]
  %v41 = vld [vmem:[%s1 + $0x28] sm:$0xf]
  %v42 = vld [vmem:[%s1 + $0x2c] sm:$0xf]
  %v43 = vld [vmem:[%s1 + $0x30] sm:$0xf]
  %v44 = vld [vmem:[%s1 + $0x34] sm:$0xf]
  %v45 = vld [vmem:[%s1 + $0x38] sm:$0xf]
  %v46 = vld [vmem:[%s1 + $0x3c] sm:$0xf]
  %v51 = vunpack.c.l.b16 %v27
  %v52 = vunpack.c.l.b16 %v28
  %v53 = vunpack.c.l.b16 %v29
  %v54 = vunpack.c.l.b16 %v30
  %v55 = vpack.c.b16 %v52, %v51
  %v56 = vpack.c.b16 %v54, %v53
  %v75 = vunpack.c.l.b16 %v31
  %v76 = vunpack.c.l.b16 %v32
  %v77 = vunpack.c.l.b16 %v33
  %v78 = vunpack.c.l.b16 %v34
  %v79 = vunpack.c.l.b16 %v35
  %v80 = vunpack.c.l.b16 %v36
  %v81 = vunpack.c.l.b16 %v37
  %v82 = vunpack.c.l.b16 %v38
  %v83 = vunpack.c.l.b16 %v39
  %v84 = vunpack.c.l.b16 %v40
  %v85 = vunpack.c.l.b16 %v41
  %v86 = vunpack.c.l.b16 %v42
  %v87 = vunpack.c.l.b16 %v43
  %v88 = vunpack.c.l.b16 %v44
  %v89 = vunpack.c.l.b16 %v45
  %v90 = vunpack.c.l.b16 %v46
  %v91 = vpack.c.b16 %v76, %v75
  %v92 = vpack.c.b16 %v78, %v77
  %v93 = vpack.c.b16 %v80, %v79
  %v94 = vpack.c.b16 %v82, %v81
  %v95 = vpack.c.b16 %v84, %v83
  %v96 = vpack.c.b16 %v86, %v85
  %v97 = vpack.c.b16 %v88, %v87
  %v98 = vpack.c.b16 %v90, %v89
  %107 = vmatprep.subr.bf16.mxu0 0
  %108 = vmatpush1.bf16.msra.mxu0 %v91
  %109 = vmatprep.subr.bf16.mxu0 0
  %110 = vmatpush1.bf16.msra.mxu0 %v92
  %111 = vmatprep.subr.bf16.mxu0 0
  %112 = vmatpush1.bf16.msra.mxu0 %v93
  %113 = vmatprep.subr.bf16.mxu0 0
  %114 = vmatpush1.bf16.msra.mxu0 %v94
  %115 = vmatprep.subr.bf16.mxu0 0
  %116 = vmatpush1.bf16.msra.mxu0 %v95
  %117 = vmatprep.subr.bf16.mxu0 0
  %118 = vmatpush1.bf16.msra.mxu0 %v96
  %119 = vmatprep.subr.bf16.mxu0 0
  %120 = vmatpush1.bf16.msra.mxu0 %v97
  %121 = vmatprep.subr.bf16.mxu0 0
  %122 = vmatpush1.bf16.msra.mxu0 %v98
  %123 = vmatprep.subr.bf16.mxu0 0
  %124 = vmatpush1.bf16.msra.mxu0 0
  %125 = vmatprep.subr.bf16.mxu0 0
  %126 = vmatpush1.bf16.msra.mxu0 0
  %127 = vmatprep.subr.bf16.mxu0 0
  %128 = vmatpush1.bf16.msra.mxu0 0
  %129 = vmatprep.subr.bf16.mxu0 0
  %130 = vmatpush1.bf16.msra.mxu0 0
  %131 = vmatprep.subr.bf16.mxu0 0
  %132 = vmatpush1.bf16.msra.mxu0 0
  %133 = vmatprep.subr.bf16.mxu0 0
  %134 = vmatpush1.bf16.msra.mxu0 0
  %135 = vmatprep.subr.bf16.mxu0 0
  %136 = vmatpush1.bf16.msra.mxu0 0
  %137 = vmatprep.subr.bf16.mxu0 0
  %138 = vmatpush1.bf16.msra.mxu0 0
  %139 = vmatprep.mubr.bf16.mxu0 0
  %140 = vmatmul.mubr.bf16.gmra.mrb[0].mxu0 %v55
  %v141 = vpop.f32.mrb[0].mxu0
  %v142 = vadd.f32 0.0, %v141
  %v143 = vpop.f32.mrb[0].mxu0
  %v144 = vpop.f32.mrb[0].mxu0
  %v145 = vadd.f32 0.0, %v144
  %v146 = vpop.f32.mrb[0].mxu0
  %147 = vmatprep.mubr.bf16.mxu0 0
  %148 = vmatmul.mubr.bf16.gmra.mrb[0].mxu0 %v56
  %v149 = vpop.f32.mrb[0].mxu0
  %v150 = vadd.f32 0.0, %v149
  %v151 = vpop.f32.mrb[0].mxu0
  %v152 = vpop.f32.mrb[0].mxu0
  %v153 = vadd.f32 0.0, %v152
  %v154 = vpop.f32.mrb[0].mxu0
  %155 = vdwg.mxu0
  %v156 = vadd.f32 %v23, %v142
  %v157 = vadd.f32 %v24, %v145
  %v158 = vadd.f32 %v25, %v150
  %v159 = vadd.f32 %v26, %v153
  %160 = vst [vmem:[#allocation2] sm:$0xff] %v156
  %161 = vst [vmem:[#allocation2 + $0x8] sm:$0xff] %v157
  %162 = vst [vmem:[#allocation2 + $0x10] sm:$0xff] %v158
  %163 = vst [vmem:[#allocation2 + $0x18] sm:$0xff] %v159
  // Predicated region
  $region18: #{backbone_forward.13} parent=0 // pred_check
    %p164 = pneg %p15
  $region19: #{backbone_forward.13} parent=0 // pred_check_branch
    %166 = sbr.rel (%p164) target = $region21
  $region20: #{backbone_forward.13} parent=0 // pred_region
    %v167 = vld [vmem:[#allocation2] sm:$0xff]
    %v168 = vld [vmem:[#allocation2 + $0x8] sm:$0xff]
    %v169 = vld [vmem:[#allocation2 + $0x10] sm:$0xff]
    %v170 = vld [vmem:[#allocation2 + $0x18] sm:$0xff]
    %v171 = vld [vmem:[%s2] sm:$0x1]
    %v173 = vlaneseq
    %v174 = vshrl.u32 %v173, 7
    %v175 = vsub.s32 0, %v174
    %v176 = vrot.slane %v171, %v175
    %v178 = vadd.f32 %v167, %v176
    %v179 = vadd.f32 %v168, %v176
    %v180 = vadd.f32 %v169, %v176
    %v181 = vadd.f32 %v170, %v176
    %v182 = vmax.f32 %v178, 0.0
    %v183 = vmax.f32 %v179, 0.0
    %v184 = vmax.f32 %v180, 0.0
    %v185 = vmax.f32 %v181, 0.0
    %v186 = vpack.c.bf16 %v183, %v182
    %v187 = vpack.c.bf16 %v185, %v184
    %v190 = vunpack.c.l.b16 %v186
    %v191 = vunpack.c.h.b16 %v186
    %v192 = vunpack.c.l.b16 %v187
    %v193 = vunpack.c.h.b16 %v187
    %v194 = vpack.c.b16 %v190, %v190
    %v195 = vpack.c.b16 %v191, %v191
    %v196 = vpack.c.b16 %v192, %v192
    %v197 = vpack.c.b16 %v193, %v193
    %202 = vst [vmem:[%s3] sm:$0xf] %v194
    %203 = vst [vmem:[%s3 + $0x4] sm:$0xf] %v195
    %204 = vst [vmem:[%s3 + $0x8] sm:$0xf] %v196
    %205 = vst [vmem:[%s3 + $0xc] sm:$0xf] %v197
  $region21: #{backbone_forward.13} parent=0 // pred_fallthru
    _
  // Predicated region
  $region22: #{backbone_forward.13} parent=0 // pred_check
    _
  $region23: #{backbone_forward.13} parent=0 // pred_check_branch
    %207 = sbr.rel (0) target = $region25
  $region24: #{backbone_forward.13} parent=0 // pred_region
    _
  $region25: #{backbone_forward.13} parent=0 // pred_fallthru
    _
  // Predicated region
  $region26: #{backbone_forward.13} parent=0 // pred_check
    _
  $region27: #{backbone_forward.13} parent=0 // pred_check_branch
    %209 = sbr.rel (0) target = $region29
  $region28: #{backbone_forward.13} parent=0 // pred_region
    _
  $region29: #{backbone_forward.13} parent=0 // pred_fallthru
    _

// kernel: backbone_forward.12
$region0: #{backbone_forward.12}
  #allocation0 [shape = 'u32[]', space=smem, size = 0x4, offset = 0x4, fixed_abs, tag = 'smem constant byte address 0x4 - core index']
  #allocation1 [shape = 'u32[144,128]{1,0:T(1,128)}', space=vmem, size = 0x12000, scoped, tag = 'internal scratch']
  #allocation2 [shape = 'f32[32,128]{1,0:T(8,128)}', space=vmem, size = 0x4000, scoped, tag = 'scratch operand']
  %s0 = inlined_call_operand.vmem [shape: bf16[32,128], index: 0, kind: input, shape index: {}]
  %s1 = inlined_call_operand.vmem [shape: bf16[128,128], index: 1, kind: input, shape index: {}]
  %s2 = inlined_call_operand.vmem [shape: f32[1,128], index: 2, kind: input, shape index: {}]
  %s3 = inlined_call_operand.vmem [shape: bf16[32,128], index: 3, kind: output, shape index: {}]
  %s4 = sld [smem:[#allocation0]]
  $region30: #{backbone_forward.12} parent=0
    _
  %s6 = ssub.s32 1, %s4
  %s7 = scalar_select 0, %s6, %s4
  // Predicated region
  $region2: #{backbone_forward.12} parent=0 // pred_check
    _
  $region3: #{backbone_forward.12} parent=0 // pred_check_branch
    %9 = sbr.rel (0) target = $region5
  $region4: #{backbone_forward.12} parent=0 // pred_region
    _
  $region5: #{backbone_forward.12} parent=0 // pred_fallthru
    _
  // Predicated region
  $region6: #{backbone_forward.12} parent=0 // pred_check
    _
  $region7: #{backbone_forward.12} parent=0 // pred_check_branch
    %11 = sbr.rel (0) target = $region9
  $region8: #{backbone_forward.12} parent=0 // pred_region
    _
  $region9: #{backbone_forward.12} parent=0 // pred_fallthru
    _
  // Predicated region
  $region10: #{backbone_forward.12} parent=0 // pred_check
    _
  $region11: #{backbone_forward.12} parent=0 // pred_check_branch
    %13 = sbr.rel (0) target = $region13
  $region12: #{backbone_forward.12} parent=0 // pred_region
    _
  $region13: #{backbone_forward.12} parent=0 // pred_fallthru
    _
  %p15 = scmp.eq.s32.totalorder 0, 0
  // Predicated region
  $region14: #{backbone_forward.12} parent=0 // pred_check
    %p16 = pneg %p15
  $region15: #{backbone_forward.12} parent=0 // pred_check_branch
    %18 = sbr.rel (%p16) target = $region17
  $region16: #{backbone_forward.12} parent=0 // pred_region
    %19 = vst [vmem:[#allocation2] sm:$0xff] 0.0
    %20 = vst [vmem:[#allocation2 + $0x8] sm:$0xff] 0.0
    %21 = vst [vmem:[#allocation2 + $0x10] sm:$0xff] 0.0
    %22 = vst [vmem:[#allocation2 + $0x18] sm:$0xff] 0.0
  $region17: #{backbone_forward.12} parent=0 // pred_fallthru
    _
  %v23 = vld [vmem:[#allocation2] sm:$0xff]
  %v24 = vld [vmem:[#allocation2 + $0x8] sm:$0xff]
  %v25 = vld [vmem:[#allocation2 + $0x10] sm:$0xff]
  %v26 = vld [vmem:[#allocation2 + $0x18] sm:$0xff]
  %v27 = vld [vmem:[%s0] sm:$0xf]
  %v28 = vld [vmem:[%s0 + $0x4] sm:$0xf]
  %v29 = vld [vmem:[%s0 + $0x8] sm:$0xf]
  %v30 = vld [vmem:[%s0 + $0xc] sm:$0xf]
  %v31 = vld [vmem:[%s1] sm:$0xf]
  %v32 = vld [vmem:[%s1 + $0x4] sm:$0xf]
  %v33 = vld [vmem:[%s1 + $0x8] sm:$0xf]
  %v34 = vld [vmem:[%s1 + $0xc] sm:$0xf]
  %v35 = vld [vmem:[%s1 + $0x10] sm:$0xf]
  %v36 = vld [vmem:[%s1 + $0x14] sm:$0xf]
  %v37 = vld [vmem:[%s1 + $0x18] sm:$0xf]
  %v38 = vld [vmem:[%s1 + $0x1c] sm:$0xf]
  %v39 = vld [vmem:[%s1 + $0x20] sm:$0xf]
  %v40 = vld [vmem:[%s1 + $0x24] sm:$0xf]
  %v41 = vld [vmem:[%s1 + $0x28] sm:$0xf]
  %v42 = vld [vmem:[%s1 + $0x2c] sm:$0xf]
  %v43 = vld [vmem:[%s1 + $0x30] sm:$0xf]
  %v44 = vld [vmem:[%s1 + $0x34] sm:$0xf]
  %v45 = vld [vmem:[%s1 + $0x38] sm:$0xf]
  %v46 = vld [vmem:[%s1 + $0x3c] sm:$0xf]
  %v51 = vunpack.c.l.b16 %v27
  %v52 = vunpack.c.l.b16 %v28
  %v53 = vunpack.c.l.b16 %v29
  %v54 = vunpack.c.l.b16 %v30
  %v55 = vpack.c.b16 %v52, %v51
  %v56 = vpack.c.b16 %v54, %v53
  %v75 = vunpack.c.l.b16 %v31
  %v76 = vunpack.c.l.b16 %v32
  %v77 = vunpack.c.l.b16 %v33
  %v78 = vunpack.c.l.b16 %v34
  %v79 = vunpack.c.l.b16 %v35
  %v80 = vunpack.c.l.b16 %v36
  %v81 = vunpack.c.l.b16 %v37
  %v82 = vunpack.c.l.b16 %v38
  %v83 = vunpack.c.l.b16 %v39
  %v84 = vunpack.c.l.b16 %v40
  %v85 = vunpack.c.l.b16 %v41
  %v86 = vunpack.c.l.b16 %v42
  %v87 = vunpack.c.l.b16 %v43
  %v88 = vunpack.c.l.b16 %v44
  %v89 = vunpack.c.l.b16 %v45
  %v90 = vunpack.c.l.b16 %v46
  %v91 = vpack.c.b16 %v76, %v75
  %v92 = vpack.c.b16 %v78, %v77
  %v93 = vpack.c.b16 %v80, %v79
  %v94 = vpack.c.b16 %v82, %v81
  %v95 = vpack.c.b16 %v84, %v83
  %v96 = vpack.c.b16 %v86, %v85
  %v97 = vpack.c.b16 %v88, %v87
  %v98 = vpack.c.b16 %v90, %v89
  %107 = vmatprep.subr.bf16.mxu0 0
  %108 = vmatpush1.bf16.msra.mxu0 %v91
  %109 = vmatprep.subr.bf16.mxu0 0
  %110 = vmatpush1.bf16.msra.mxu0 %v92
  %111 = vmatprep.subr.bf16.mxu0 0
  %112 = vmatpush1.bf16.msra.mxu0 %v93
  %113 = vmatprep.subr.bf16.mxu0 0
  %114 = vmatpush1.bf16.msra.mxu0 %v94
  %115 = vmatprep.subr.bf16.mxu0 0
  %116 = vmatpush1.bf16.msra.mxu0 %v95
  %117 = vmatprep.subr.bf16.mxu0 0
  %118 = vmatpush1.bf16.msra.mxu0 %v96
  %119 = vmatprep.subr.bf16.mxu0 0
  %120 = vmatpush1.bf16.msra.mxu0 %v97
  %121 = vmatprep.subr.bf16.mxu0 0
  %122 = vmatpush1.bf16.msra.mxu0 %v98
  %123 = vmatprep.subr.bf16.mxu0 0
  %124 = vmatpush1.bf16.msra.mxu0 0
  %125 = vmatprep.subr.bf16.mxu0 0
  %126 = vmatpush1.bf16.msra.mxu0 0
  %127 = vmatprep.subr.bf16.mxu0 0
  %128 = vmatpush1.bf16.msra.mxu0 0
  %129 = vmatprep.subr.bf16.mxu0 0
  %130 = vmatpush1.bf16.msra.mxu0 0
  %131 = vmatprep.subr.bf16.mxu0 0
  %132 = vmatpush1.bf16.msra.mxu0 0
  %133 = vmatprep.subr.bf16.mxu0 0
  %134 = vmatpush1.bf16.msra.mxu0 0
  %135 = vmatprep.subr.bf16.mxu0 0
  %136 = vmatpush1.bf16.msra.mxu0 0
  %137 = vmatprep.subr.bf16.mxu0 0
  %138 = vmatpush1.bf16.msra.mxu0 0
  %139 = vmatprep.mubr.bf16.mxu0 0
  %140 = vmatmul.mubr.bf16.gmra.mrb[0].mxu0 %v55
  %v141 = vpop.f32.mrb[0].mxu0
  %v142 = vadd.f32 0.0, %v141
  %v143 = vpop.f32.mrb[0].mxu0
  %v144 = vpop.f32.mrb[0].mxu0
  %v145 = vadd.f32 0.0, %v144
  %v146 = vpop.f32.mrb[0].mxu0
  %147 = vmatprep.mubr.bf16.mxu0 0
  %148 = vmatmul.mubr.bf16.gmra.mrb[0].mxu0 %v56
  %v149 = vpop.f32.mrb[0].mxu0
  %v150 = vadd.f32 0.0, %v149
  %v151 = vpop.f32.mrb[0].mxu0
  %v152 = vpop.f32.mrb[0].mxu0
  %v153 = vadd.f32 0.0, %v152
  %v154 = vpop.f32.mrb[0].mxu0
  %155 = vdwg.mxu0
  %v156 = vadd.f32 %v23, %v142
  %v157 = vadd.f32 %v24, %v145
  %v158 = vadd.f32 %v25, %v150
  %v159 = vadd.f32 %v26, %v153
  %160 = vst [vmem:[#allocation2] sm:$0xff] %v156
  %161 = vst [vmem:[#allocation2 + $0x8] sm:$0xff] %v157
  %162 = vst [vmem:[#allocation2 + $0x10] sm:$0xff] %v158
  %163 = vst [vmem:[#allocation2 + $0x18] sm:$0xff] %v159
  // Predicated region
  $region18: #{backbone_forward.12} parent=0 // pred_check
    %p164 = pneg %p15
  $region19: #{backbone_forward.12} parent=0 // pred_check_branch
    %166 = sbr.rel (%p164) target = $region21
  $region20: #{backbone_forward.12} parent=0 // pred_region
    %v167 = vld [vmem:[#allocation2] sm:$0xff]
    %v168 = vld [vmem:[#allocation2 + $0x8] sm:$0xff]
    %v169 = vld [vmem:[#allocation2 + $0x10] sm:$0xff]
    %v170 = vld [vmem:[#allocation2 + $0x18] sm:$0xff]
    %v171 = vld [vmem:[%s2] sm:$0x1]
    %v173 = vlaneseq
    %v174 = vshrl.u32 %v173, 7
    %v175 = vsub.s32 0, %v174
    %v176 = vrot.slane %v171, %v175
    %v178 = vadd.f32 %v167, %v176
    %v179 = vadd.f32 %v168, %v176
    %v180 = vadd.f32 %v169, %v176
    %v181 = vadd.f32 %v170, %v176
    %v182 = vpack.c.bf16 %v179, %v178
    %v183 = vpack.c.bf16 %v181, %v180
    %v186 = vunpack.c.l.b16 %v182
    %v187 = vunpack.c.h.b16 %v182
    %v188 = vunpack.c.l.b16 %v183
    %v189 = vunpack.c.h.b16 %v183
    %v190 = vpack.c.b16 %v186, %v186
    %v191 = vpack.c.b16 %v187, %v187
    %v192 = vpack.c.b16 %v188, %v188
    %v193 = vpack.c.b16 %v189, %v189
    %198 = vst [vmem:[%s3] sm:$0xf] %v190
    %199 = vst [vmem:[%s3 + $0x4] sm:$0xf] %v191
    %200 = vst [vmem:[%s3 + $0x8] sm:$0xf] %v192
    %201 = vst [vmem:[%s3 + $0xc] sm:$0xf] %v193
  $region21: #{backbone_forward.12} parent=0 // pred_fallthru
    _
  // Predicated region
  $region22: #{backbone_forward.12} parent=0 // pred_check
    _
  $region23: #{backbone_forward.12} parent=0 // pred_check_branch
    %203 = sbr.rel (0) target = $region25
  $region24: #{backbone_forward.12} parent=0 // pred_region
    _
  $region25: #{backbone_forward.12} parent=0 // pred_fallthru
    _
  // Predicated region
  $region26: #{backbone_forward.12} parent=0 // pred_check
    _
  $region27: #{backbone_forward.12} parent=0 // pred_check_branch
    %205 = sbr.rel (0) target = $region29
  $region28: #{backbone_forward.12} parent=0 // pred_region
    _
  $region29: #{backbone_forward.12} parent=0 // pred_fallthru
    _

// kernel: backbone_forward.19
$region0: #{backbone_forward.19}
  #allocation0 [shape = 'u32[]', space=smem, size = 0x4, offset = 0x4, fixed_abs, tag = 'smem constant byte address 0x4 - core index']
  #allocation1 [shape = 'u32[144,128]{1,0:T(1,128)}', space=vmem, size = 0x12000, scoped, tag = 'internal scratch']
  #allocation2 [shape = 'f32[2,128]{1,0:T(2,128)}', space=vmem, size = 0x400, scoped, tag = 'scratch operand']
  %s0 = inlined_call_operand.vmem [shape: bf16[2,16,128], index: 0, kind: input, shape index: {}]
  %s1 = inlined_call_operand.hbm [shape: f32[2,128], index: 1, kind: output, shape index: {}]
  %s2 = sld [smem:[#allocation0]]
  $region22: #{backbone_forward.19} parent=0
    _
  %s4 = ssub.s32 1, %s2
  %s5 = scalar_select 0, %s4, %s2
  $region1: #{backbone_forward.19} parent=0
    #allocation3 [shape = 'u8[1024]{0}', space=vmem, size = 0x400, scoped, tag = 'output window, operand 0, single buffered']
    #allocation4 [shape = 's32[1]{0}', space=sflag, size = 0x4, scoped, tag = 'scoped memory for backbone_forward.19']
    %6 = vsyncpa [#allocation4], 0
    // Predicated region
    $region2: #{backbone_forward.19} parent=1 // pred_check
      _
    $region3: #{backbone_forward.19} parent=1 // pred_check_branch
      %8 = sbr.rel (0) target = $region5
    $region4: #{backbone_forward.19} parent=1 // pred_region
      _
    $region5: #{backbone_forward.19} parent=1 // pred_fallthru
      _
    %p9 = scmp.eq.s32.totalorder 0, 0
    // Predicated region
    $region6: #{backbone_forward.19} parent=1 // pred_check
      %p10 = pneg %p9
    $region7: #{backbone_forward.19} parent=1 // pred_check_branch
      %12 = sbr.rel (%p10) target = $region9
    $region8: #{backbone_forward.19} parent=1 // pred_region
      %13 = vst [vmem:[#allocation2] sm:$0x3] 0.0
    $region9: #{backbone_forward.19} parent=1 // pred_fallthru
      _
    %v14 = vld [vmem:[#allocation2] sm:$0x3]
    %v15 = vld [vmem:[%s0] sm:$0xf]
    %v16 = vld [vmem:[%s0 + $0x4] sm:$0xf]
    %v17 = vld [vmem:[%s0 + $0x8] sm:$0xf]
    %v18 = vld [vmem:[%s0 + $0xc] sm:$0xf]
    %v19 = vunpack.c.l.bf16 %v15
    %v20 = vunpack.c.l.bf16 %v16
    %v21 = vunpack.c.l.bf16 %v17
    %v22 = vunpack.c.l.bf16 %v18
    %v23 = vadd.f32 %v19, %v20
    %v24 = vrot.slane %v23, 4
    %v25 = vadd.f32 %v23, %v24
    %v26 = vrot.slane %v25, 2
    %v27 = vadd.f32 %v25, %v26
    %v28 = vrot.slane %v27, 1
    %v29 = vadd.f32 %v27, %v28
    %v30 = vadd.f32 %v21, %v22
    %v31 = vrot.slane %v30, 4
    %v32 = vadd.f32 %v30, %v31
    %v33 = vrot.slane %v32, 2
    %v34 = vadd.f32 %v32, %v33
    %v35 = vrot.slane %v34, 1
    %v36 = vadd.f32 %v34, %v35
    %vm39 = vcmask 1041409
    %v40 = vsel %vm39, %v36, %v29
    %v42 = vadd.f32 %v14, %v40
    %43 = vst [vmem:[#allocation2] sm:$0x3] %v42
    // Predicated region
    $region10: #{backbone_forward.19} parent=1 // pred_check
      %p44 = pneg %p9
    $region11: #{backbone_forward.19} parent=1 // pred_check_branch
      %46 = sbr.rel (%p44) target = $region13
    $region12: #{backbone_forward.19} parent=1 // pred_region
      %v47 = vld [vmem:[#allocation2] sm:$0x3]
      %v48 = vmul.f32 %v47, 0.0625
      %49 = vst [vmem:[#allocation3] sm:$0x3] %v48
    $region13: #{backbone_forward.19} parent=1 // pred_fallthru
      _
    // Predicated region
    $region14: #{backbone_forward.19} parent=1 // pred_check
      _
    $region15: #{backbone_forward.19} parent=1 // pred_check_branch
      %51 = sbr.rel (0) target = $region17
    $region16: #{backbone_forward.19} parent=1 // pred_region
      %s53 = ssub.s32 32, 32
      %54 = vsyncadd [#allocation4], %s53
      %s56 = sshll.u32 [#allocation3], 4
      %s57 = int_to_ptr.vmem [resolvable:$true] %s56
      %59 = dma.vmem_to_hbm [thread:$0]  %s57, 32, %s1, [#allocation4]
    $region17: #{backbone_forward.19} parent=1 // pred_fallthru
      _
    // Predicated region
    $region18: #{backbone_forward.19} parent=1 // pred_check
      _
    $region19: #{backbone_forward.19} parent=1 // pred_check_branch
      %61 = sbr.rel (0) target = $region21
    $region20: #{backbone_forward.19} parent=1 // pred_region
      %62 = dma.done [#allocation4], 32
    $region21: #{backbone_forward.19} parent=1 // pred_fallthru
      _
    %63 = vsyncpa [#allocation4], 1

// kernel: backbone_forward.15
$region0: #{backbone_forward.15}
  #allocation0 [shape = 'u32[]', space=smem, size = 0x4, offset = 0x4, fixed_abs, tag = 'smem constant byte address 0x4 - core index']
  #allocation1 [shape = 'u32[144,128]{1,0:T(1,128)}', space=vmem, size = 0x12000, scoped, tag = 'internal scratch']
  #allocation2 [shape = 'f32[32,128]{1,0:T(8,128)}', space=vmem, size = 0x4000, scoped, tag = 'scratch operand']
  %s0 = inlined_call_operand.vmem [shape: bf16[32,128], index: 0, kind: input, shape index: {}]
  %s1 = inlined_call_operand.vmem [shape: bf16[128,128], index: 1, kind: input, shape index: {}]
  %s2 = inlined_call_operand.vmem [shape: f32[1,128], index: 2, kind: input, shape index: {}]
  %s3 = inlined_call_operand.vmem [shape: bf16[32,128], index: 3, kind: input, shape index: {}]
  %s4 = inlined_call_operand.vmem [shape: bf16[32,128], index: 4, kind: output, shape index: {}]
  %s5 = sld [smem:[#allocation0]]
  $region34: #{backbone_forward.15} parent=0
    _
  %s7 = ssub.s32 1, %s5
  %s8 = scalar_select 0, %s7, %s5
  // Predicated region
  $region2: #{backbone_forward.15} parent=0 // pred_check
    _
  $region3: #{backbone_forward.15} parent=0 // pred_check_branch
    %10 = sbr.rel (0) target = $region5
  $region4: #{backbone_forward.15} parent=0 // pred_region
    _
  $region5: #{backbone_forward.15} parent=0 // pred_fallthru
    _
  // Predicated region
  $region6: #{backbone_forward.15} parent=0 // pred_check
    _
  $region7: #{backbone_forward.15} parent=0 // pred_check_branch
    %12 = sbr.rel (0) target = $region9
  $region8: #{backbone_forward.15} parent=0 // pred_region
    _
  $region9: #{backbone_forward.15} parent=0 // pred_fallthru
    _
  // Predicated region
  $region10: #{backbone_forward.15} parent=0 // pred_check
    _
  $region11: #{backbone_forward.15} parent=0 // pred_check_branch
    %14 = sbr.rel (0) target = $region13
  $region12: #{backbone_forward.15} parent=0 // pred_region
    _
  $region13: #{backbone_forward.15} parent=0 // pred_fallthru
    _
  // Predicated region
  $region14: #{backbone_forward.15} parent=0 // pred_check
    _
  $region15: #{backbone_forward.15} parent=0 // pred_check_branch
    %16 = sbr.rel (0) target = $region17
  $region16: #{backbone_forward.15} parent=0 // pred_region
    _
  $region17: #{backbone_forward.15} parent=0 // pred_fallthru
    _
  %p18 = scmp.eq.s32.totalorder 0, 0
  // Predicated region
  $region18: #{backbone_forward.15} parent=0 // pred_check
    %p19 = pneg %p18
  $region19: #{backbone_forward.15} parent=0 // pred_check_branch
    %21 = sbr.rel (%p19) target = $region21
  $region20: #{backbone_forward.15} parent=0 // pred_region
    %22 = vst [vmem:[#allocation2] sm:$0xff] 0.0
    %23 = vst [vmem:[#allocation2 + $0x8] sm:$0xff] 0.0
    %24 = vst [vmem:[#allocation2 + $0x10] sm:$0xff] 0.0
    %25 = vst [vmem:[#allocation2 + $0x18] sm:$0xff] 0.0
  $region21: #{backbone_forward.15} parent=0 // pred_fallthru
    _
  %v26 = vld [vmem:[#allocation2] sm:$0xff]
  %v27 = vld [vmem:[#allocation2 + $0x8] sm:$0xff]
  %v28 = vld [vmem:[#allocation2 + $0x10] sm:$0xff]
  %v29 = vld [vmem:[#allocation2 + $0x18] sm:$0xff]
  %v30 = vld [vmem:[%s0] sm:$0xf]
  %v31 = vld [vmem:[%s0 + $0x4] sm:$0xf]
  %v32 = vld [vmem:[%s0 + $0x8] sm:$0xf]
  %v33 = vld [vmem:[%s0 + $0xc] sm:$0xf]
  %v34 = vld [vmem:[%s1] sm:$0xf]
  %v35 = vld [vmem:[%s1 + $0x4] sm:$0xf]
  %v36 = vld [vmem:[%s1 + $0x8] sm:$0xf]
  %v37 = vld [vmem:[%s1 + $0xc] sm:$0xf]
  %v38 = vld [vmem:[%s1 + $0x10] sm:$0xf]
  %v39 = vld [vmem:[%s1 + $0x14] sm:$0xf]
  %v40 = vld [vmem:[%s1 + $0x18] sm:$0xf]
  %v41 = vld [vmem:[%s1 + $0x1c] sm:$0xf]
  %v42 = vld [vmem:[%s1 + $0x20] sm:$0xf]
  %v43 = vld [vmem:[%s1 + $0x24] sm:$0xf]
  %v44 = vld [vmem:[%s1 + $0x28] sm:$0xf]
  %v45 = vld [vmem:[%s1 + $0x2c] sm:$0xf]
  %v46 = vld [vmem:[%s1 + $0x30] sm:$0xf]
  %v47 = vld [vmem:[%s1 + $0x34] sm:$0xf]
  %v48 = vld [vmem:[%s1 + $0x38] sm:$0xf]
  %v49 = vld [vmem:[%s1 + $0x3c] sm:$0xf]
  %v54 = vunpack.c.l.b16 %v30
  %v55 = vunpack.c.l.b16 %v31
  %v56 = vunpack.c.l.b16 %v32
  %v57 = vunpack.c.l.b16 %v33
  %v58 = vpack.c.b16 %v55, %v54
  %v59 = vpack.c.b16 %v57, %v56
  %v78 = vunpack.c.l.b16 %v34
  %v79 = vunpack.c.l.b16 %v35
  %v80 = vunpack.c.l.b16 %v36
  %v81 = vunpack.c.l.b16 %v37
  %v82 = vunpack.c.l.b16 %v38
  %v83 = vunpack.c.l.b16 %v39
  %v84 = vunpack.c.l.b16 %v40
  %v85 = vunpack.c.l.b16 %v41
  %v86 = vunpack.c.l.b16 %v42
  %v87 = vunpack.c.l.b16 %v43
  %v88 = vunpack.c.l.b16 %v44
  %v89 = vunpack.c.l.b16 %v45
  %v90 = vunpack.c.l.b16 %v46
  %v91 = vunpack.c.l.b16 %v47
  %v92 = vunpack.c.l.b16 %v48
  %v93 = vunpack.c.l.b16 %v49
  %v94 = vpack.c.b16 %v79, %v78
  %v95 = vpack.c.b16 %v81, %v80
  %v96 = vpack.c.b16 %v83, %v82
  %v97 = vpack.c.b16 %v85, %v84
  %v98 = vpack.c.b16 %v87, %v86
  %v99 = vpack.c.b16 %v89, %v88
  %v100 = vpack.c.b16 %v91, %v90
  %v101 = vpack.c.b16 %v93, %v92
  %110 = vmatprep.subr.bf16.mxu0 0
  %111 = vmatpush1.bf16.msra.mxu0 %v94
  %112 = vmatprep.subr.bf16.mxu0 0
  %113 = vmatpush1.bf16.msra.mxu0 %v95
  %114 = vmatprep.subr.bf16.mxu0 0
  %115 = vmatpush1.bf16.msra.mxu0 %v96
  %116 = vmatprep.subr.bf16.mxu0 0
  %117 = vmatpush1.bf16.msra.mxu0 %v97
  %118 = vmatprep.subr.bf16.mxu0 0
  %119 = vmatpush1.bf16.msra.mxu0 %v98
  %120 = vmatprep.subr.bf16.mxu0 0
  %121 = vmatpush1.bf16.msra.mxu0 %v99
  %122 = vmatprep.subr.bf16.mxu0 0
  %123 = vmatpush1.bf16.msra.mxu0 %v100
  %124 = vmatprep.subr.bf16.mxu0 0
  %125 = vmatpush1.bf16.msra.mxu0 %v101
  %126 = vmatprep.subr.bf16.mxu0 0
  %127 = vmatpush1.bf16.msra.mxu0 0
  %128 = vmatprep.subr.bf16.mxu0 0
  %129 = vmatpush1.bf16.msra.mxu0 0
  %130 = vmatprep.subr.bf16.mxu0 0
  %131 = vmatpush1.bf16.msra.mxu0 0
  %132 = vmatprep.subr.bf16.mxu0 0
  %133 = vmatpush1.bf16.msra.mxu0 0
  %134 = vmatprep.subr.bf16.mxu0 0
  %135 = vmatpush1.bf16.msra.mxu0 0
  %136 = vmatprep.subr.bf16.mxu0 0
  %137 = vmatpush1.bf16.msra.mxu0 0
  %138 = vmatprep.subr.bf16.mxu0 0
  %139 = vmatpush1.bf16.msra.mxu0 0
  %140 = vmatprep.subr.bf16.mxu0 0
  %141 = vmatpush1.bf16.msra.mxu0 0
  %142 = vmatprep.mubr.bf16.mxu0 0
  %143 = vmatmul.mubr.bf16.gmra.mrb[0].mxu0 %v58
  %v144 = vpop.f32.mrb[0].mxu0
  %v145 = vadd.f32 0.0, %v144
  %v146 = vpop.f32.mrb[0].mxu0
  %v147 = vpop.f32.mrb[0].mxu0
  %v148 = vadd.f32 0.0, %v147
  %v149 = vpop.f32.mrb[0].mxu0
  %150 = vmatprep.mubr.bf16.mxu0 0
  %151 = vmatmul.mubr.bf16.gmra.mrb[0].mxu0 %v59
  %v152 = vpop.f32.mrb[0].mxu0
  %v153 = vadd.f32 0.0, %v152
  %v154 = vpop.f32.mrb[0].mxu0
  %v155 = vpop.f32.mrb[0].mxu0
  %v156 = vadd.f32 0.0, %v155
  %v157 = vpop.f32.mrb[0].mxu0
  %158 = vdwg.mxu0
  %v159 = vadd.f32 %v26, %v145
  %v160 = vadd.f32 %v27, %v148
  %v161 = vadd.f32 %v28, %v153
  %v162 = vadd.f32 %v29, %v156
  %163 = vst [vmem:[#allocation2] sm:$0xff] %v159
  %164 = vst [vmem:[#allocation2 + $0x8] sm:$0xff] %v160
  %165 = vst [vmem:[#allocation2 + $0x10] sm:$0xff] %v161
  %166 = vst [vmem:[#allocation2 + $0x18] sm:$0xff] %v162
  // Predicated region
  $region22: #{backbone_forward.15} parent=0 // pred_check
    %p167 = pneg %p18
  $region23: #{backbone_forward.15} parent=0 // pred_check_branch
    %169 = sbr.rel (%p167) target = $region25
  $region24: #{backbone_forward.15} parent=0 // pred_region
    %v170 = vld [vmem:[#allocation2] sm:$0xff]
    %v171 = vld [vmem:[#allocation2 + $0x8] sm:$0xff]
    %v172 = vld [vmem:[#allocation2 + $0x10] sm:$0xff]
    %v173 = vld [vmem:[#allocation2 + $0x18] sm:$0xff]
    %v174 = vld [vmem:[%s2] sm:$0x1]
    %v176 = vlaneseq
    %v177 = vshrl.u32 %v176, 7
    %v178 = vsub.s32 0, %v177
    %v179 = vrot.slane %v174, %v178
    %v181 = vadd.f32 %v170, %v179
    %v182 = vadd.f32 %v171, %v179
    %v183 = vadd.f32 %v172, %v179
    %v184 = vadd.f32 %v173, %v179
    %v185 = vld [vmem:[%s3] sm:$0xf]
    %v186 = vld [vmem:[%s3 + $0x4] sm:$0xf]
    %v187 = vld [vmem:[%s3 + $0x8] sm:$0xf]
    %v188 = vld [vmem:[%s3 + $0xc] sm:$0xf]
    %v189 = vunpack.c.l.bf16 %v185
    %v190 = vunpack.c.l.bf16 %v186
    %v191 = vunpack.c.l.bf16 %v187
    %v192 = vunpack.c.l.bf16 %v188
    %v193 = vadd.f32 %v181, %v189
    %v194 = vadd.f32 %v182, %v190
    %v195 = vadd.f32 %v183, %v191
    %v196 = vadd.f32 %v184, %v192
    %v197 = vmax.f32 %v193, 0.0
    %v198 = vmax.f32 %v194, 0.0
    %v199 = vmax.f32 %v195, 0.0
    %v200 = vmax.f32 %v196, 0.0
    %v201 = vpack.c.bf16 %v198, %v197
    %v202 = vpack.c.bf16 %v200, %v199
    %v205 = vunpack.c.l.b16 %v201
    %v206 = vunpack.c.h.b16 %v201
    %v207 = vunpack.c.l.b16 %v202
    %v208 = vunpack.c.h.b16 %v202
    %v209 = vpack.c.b16 %v205, %v205
    %v210 = vpack.c.b16 %v206, %v206
    %v211 = vpack.c.b16 %v207, %v207
    %v212 = vpack.c.b16 %v208, %v208
    %217 = vst [vmem:[%s4] sm:$0xf] %v209
    %218 = vst [vmem:[%s4 + $0x4] sm:$0xf] %v210
    %219 = vst [vmem:[%s4 + $0x8] sm:$0xf] %v211
    %220 = vst [vmem:[%s4 + $0xc] sm:$0xf] %v212
  $region25: #{backbone_forward.15} parent=0 // pred_fallthru
    _
  // Predicated region
  $region26: #{backbone_forward.15} parent=0 // pred_check
    _
  $region27: #{backbone_forward.15} parent=0 // pred_check_branch
    %222 = sbr.rel (0) target = $region29
  $region28: #{backbone_forward.15} parent=0 // pred_region
    _
  $region29: #{backbone_forward.15} parent=0 // pred_fallthru
    _
  // Predicated region
  $region30: #{backbone_forward.15} parent=0 // pred_check
    _
  $region31: #{backbone_forward.15} parent=0 // pred_check_branch
    %224 = sbr.rel (0) target = $region33
  $region32: #{backbone_forward.15} parent=0 // pred_region
    _
  $region33: #{backbone_forward.15} parent=0 // pred_fallthru
    _

// kernel: backbone_forward.14
$region0: #{backbone_forward.14}
  #allocation0 [shape = 'u32[]', space=smem, size = 0x4, offset = 0x4, fixed_abs, tag = 'smem constant byte address 0x4 - core index']
  #allocation1 [shape = 'u32[144,128]{1,0:T(1,128)}', space=vmem, size = 0x12000, scoped, tag = 'internal scratch']
  %s0 = inlined_call_operand.vmem [shape: bf16[2,24,128], index: 0, kind: input, shape index: {}]
  %s1 = inlined_call_operand.vmem [shape: bf16[2,24,128], index: 1, kind: input, shape index: {}]
  %s2 = inlined_call_operand.vmem [shape: bf16[2,24,128], index: 2, kind: input, shape index: {}]
  %s3 = inlined_call_operand.vmem [shape: bf16[9,128,128], index: 3, kind: input, shape index: {}]
  %s4 = inlined_call_operand.vmem [shape: f32[1,128], index: 4, kind: input, shape index: {}]
  %s5 = inlined_call_operand.vmem [shape: bf16[2,16,128], index: 5, kind: output, shape index: {}]
  %s6 = sld [smem:[#allocation0]]
  $region53: #{backbone_forward.14} parent=0
    _
  %s8 = ssub.s32 1, %s6
  %s9 = scalar_select 0, %s8, %s6
  loop: start=0, step=1, limit=4
  $region2: #{backbone_forward.14} parent=0 // loop_pre_header
    _
  $region3: #{backbone_forward.14} parent=0 // loop_header
    %s11 = sphi 0, %s15
    %p12 = scmp.ge.s32.totalorder %s11, 4
    %s21 = sphi 0, %s23
    %s24 = sphi 0, %s21
    %s25 = sphi 0, %s24
    %s41 = sphi 0, %s25
    %s47 = sphi 0, %s49
    %s50 = sphi 0, %s47
    %s51 = sphi 0, %s50
    %s67 = sphi 0, %s51
    %s73 = sphi 0, %s75
    %s76 = sphi 0, %s73
    %s77 = sphi 0, %s76
    %s93 = sphi 0, %s77
    %s97 = sphi 0, %s97
    %s99 = sphi 0, %s97
    %s100 = sphi 0, %s99
    %s114 = sphi 0, %s100
    %s118 = sphi 0, %s118
    %s120 = sphi 0, %s118
    %s121 = sphi 0, %s120
    %s135 = sphi 0, %s121
    %s141 = sphi 0, %s143
    %s144 = sphi 0, %s141
    %s145 = sphi 0, %s144
    %s161 = sphi 0, %s145
  $region4: #{backbone_forward.14} parent=0 // loop_header_branch
    %14 = sbr.rel (%p12) target = $region8
  $region5: #{backbone_forward.14} parent=0 // loop_body
    %s16 = ssub.s32 %s11, 1
    %s17 = ssub.s32 %s11, 2
    %s18 = sadd.s32 %s11, 1
    %s19 = ssub.s32 %s11, %s18
    %p20 = scmp.eq.s32.totalorder %s19, 0
    %s22 = sadd.s32 %s21, 1
    %s23 = scalar_select %p20, %s21, %s22
    %p26 = pneg %p20
    %p27 = scmp.eq.s32.totalorder %s11, 1
    %p28 = por %p26, %p27
    %p29 = scmp.ne.s32.totalorder %s21, %s24
    %p30 = scmp.eq.s32.totalorder %s11, 0
    %p31 = por %p29, %p30
    %p32 = scmp.ne.s32.totalorder %s21, %s24
    %p33 = scmp.eq.s32.totalorder %s16, 1
    %p34 = por %p32, %p33
    %p35 = scmp.ne.s32.totalorder %s24, %s25
    %p36 = scmp.eq.s32.totalorder %s16, 0
    %p37 = por %p35, %p36
    %p38 = scmp.ne.s32.totalorder %s24, %s25
    %p39 = scmp.eq.s32.totalorder %s17, 1
    %p40 = por %p38, %p39
    %p42 = scmp.ne.s32.totalorder %s25, %s41
    %p43 = scmp.eq.s32.totalorder %s17, 0
    %p44 = por %p42, %p43
    %s45 = ssub.s32 %s11, %s18
    %p46 = scmp.eq.s32.totalorder %s45, 0
    %s48 = sadd.s32 %s47, 1
    %s49 = scalar_select %p46, %s47, %s48
    %p52 = pneg %p46
    %p53 = scmp.eq.s32.totalorder %s11, 1
    %p54 = por %p52, %p53
    %p55 = scmp.ne.s32.totalorder %s47, %s50
    %p56 = scmp.eq.s32.totalorder %s11, 0
    %p57 = por %p55, %p56
    %p58 = scmp.ne.s32.totalorder %s47, %s50
    %p59 = scmp.eq.s32.totalorder %s16, 1
    %p60 = por %p58, %p59
    %p61 = scmp.ne.s32.totalorder %s50, %s51
    %p62 = scmp.eq.s32.totalorder %s16, 0
    %p63 = por %p61, %p62
    %p64 = scmp.ne.s32.totalorder %s50, %s51
    %p65 = scmp.eq.s32.totalorder %s17, 1
    %p66 = por %p64, %p65
    %p68 = scmp.ne.s32.totalorder %s51, %s67
    %p69 = scmp.eq.s32.totalorder %s17, 0
    %p70 = por %p68, %p69
    %s71 = ssub.s32 %s11, %s18
    %p72 = scmp.eq.s32.totalorder %s71, 0
    %s74 = sadd.s32 %s73, 1
    %s75 = scalar_select %p72, %s73, %s74
    %p78 = pneg %p72
    %p79 = scmp.eq.s32.totalorder %s11, 1
    %p80 = por %p78, %p79
    %p81 = scmp.ne.s32.totalorder %s73, %s76
    %p82 = scmp.eq.s32.totalorder %s11, 0
    %p83 = por %p81, %p82
    %p84 = scmp.ne.s32.totalorder %s73, %s76
    %p85 = scmp.eq.s32.totalorder %s16, 1
    %p86 = por %p84, %p85
    %p87 = scmp.ne.s32.totalorder %s76, %s77
    %p88 = scmp.eq.s32.totalorder %s16, 0
    %p89 = por %p87, %p88
    %p90 = scmp.ne.s32.totalorder %s76, %s77
    %p91 = scmp.eq.s32.totalorder %s17, 1
    %p92 = por %p90, %p91
    %p94 = scmp.ne.s32.totalorder %s77, %s93
    %p95 = scmp.eq.s32.totalorder %s17, 0
    %p96 = por %p94, %p95
    %s98 = sadd.s32 %s97, 1
    %p101 = scmp.eq.s32.totalorder %s11, 1
    %p102 = scmp.ne.s32.totalorder %s97, %s99
    %p103 = scmp.eq.s32.totalorder %s11, 0
    %p104 = por %p102, %p103
    %p105 = scmp.ne.s32.totalorder %s97, %s99
    %p106 = scmp.eq.s32.totalorder %s16, 1
    %p107 = por %p105, %p106
    %p108 = scmp.ne.s32.totalorder %s99, %s100
    %p109 = scmp.eq.s32.totalorder %s16, 0
    %p110 = por %p108, %p109
    %p111 = scmp.ne.s32.totalorder %s99, %s100
    %p112 = scmp.eq.s32.totalorder %s17, 1
    %p113 = por %p111, %p112
    %p115 = scmp.ne.s32.totalorder %s100, %s114
    %p116 = scmp.eq.s32.totalorder %s17, 0
    %p117 = por %p115, %p116
    %s119 = sadd.s32 %s118, 1
    %p122 = scmp.eq.s32.totalorder %s11, 1
    %p123 = scmp.ne.s32.totalorder %s118, %s120
    %p124 = scmp.eq.s32.totalorder %s11, 0
    %p125 = por %p123, %p124
    %p126 = scmp.ne.s32.totalorder %s118, %s120
    %p127 = scmp.eq.s32.totalorder %s16, 1
    %p128 = por %p126, %p127
    %p129 = scmp.ne.s32.totalorder %s120, %s121
    %p130 = scmp.eq.s32.totalorder %s16, 0
    %p131 = por %p129, %p130
    %p132 = scmp.ne.s32.totalorder %s120, %s121
    %p133 = scmp.eq.s32.totalorder %s17, 1
    %p134 = por %p132, %p133
    %p136 = scmp.ne.s32.totalorder %s121, %s135
    %p137 = scmp.eq.s32.totalorder %s17, 0
    %p138 = por %p136, %p137
    %s139 = ssub.s32 %s11, %s18
    %p140 = scmp.eq.s32.totalorder %s139, 0
    %s142 = sadd.s32 %s141, 1
    %s143 = scalar_select %p140, %s141, %s142
    %p146 = pneg %p140
    %p147 = scmp.eq.s32.totalorder %s11, 1
    %p148 = por %p146, %p147
    %p149 = scmp.ne.s32.totalorder %s141, %s144
    %p150 = scmp.eq.s32.totalorder %s11, 0
    %p151 = por %p149, %p150
    %p152 = scmp.ne.s32.totalorder %s141, %s144
    %p153 = scmp.eq.s32.totalorder %s16, 1
    %p154 = por %p152, %p153
    %p155 = scmp.ne.s32.totalorder %s144, %s145
    %p156 = scmp.eq.s32.totalorder %s16, 0
    %p157 = por %p155, %p156
    %p158 = scmp.ne.s32.totalorder %s144, %s145
    %p159 = scmp.eq.s32.totalorder %s17, 1
    %p160 = por %p158, %p159
    %p162 = scmp.ne.s32.totalorder %s145, %s161
    %p163 = scmp.eq.s32.totalorder %s17, 0
    %p164 = por %p162, %p163
    %p165 = scmp.le.s32.totalorder 1, %s11
    %p166 = scmp.lt.s32.totalorder %s11, 3
    %p167 = pnand %p165, %p166
    %p168 = pneg %p167
    // Predicated region
    $region9: #{backbone_forward.14} parent=5 // pred_check
      _
    $region10: #{backbone_forward.14} parent=5 // pred_check_branch
      %170 = sbr.rel (%p167) target = $region12
    $region11: #{backbone_forward.14} parent=5 // pred_region
      %s171 = ssub.s32 %s11, 1
      // Predicated region
      $region13: #{backbone_forward.14} parent=11 // pred_check
        %p172 = pneg %p110
      $region14: #{backbone_forward.14} parent=11 // pred_check_branch
        %174 = sbr.rel (%p172) target = $region16
      $region15: #{backbone_forward.14} parent=11 // pred_region
        _
      $region16: #{backbone_forward.14} parent=11 // pred_fallthru
        _
      // Predicated region
      $region17: #{backbone_forward.14} parent=11 // pred_check
        %p175 = pneg %p131
      $region18: #{backbone_forward.14} parent=11 // pred_check_branch
        %177 = sbr.rel (%p175) target = $region20
      $region19: #{backbone_forward.14} parent=11 // pred_region
        _
      $region20: #{backbone_forward.14} parent=11 // pred_fallthru
        _
    $region12: #{backbone_forward.14} parent=5 // pred_fallthru
      _
    %p178 = scmp.lt.s32.totalorder %s11, 2
    // Predicated region
    $region21: #{backbone_forward.14} parent=5 // pred_check
      %p179 = pneg %p178
    $region22: #{backbone_forward.14} parent=5 // pred_check_branch
      %181 = sbr.rel (%p179) target = $region24
    $region23: #{backbone_forward.14} parent=5 // pred_region
      // Predicated region
      $region25: #{backbone_forward.14} parent=23 // pred_check
        %p182 = pneg %p31
      $region26: #{backbone_forward.14} parent=23 // pred_check_branch
        %184 = sbr.rel (%p182) target = $region28
      $region27: #{backbone_forward.14} parent=23 // pred_region
        %p185 = scmp.lt.s32.totalorder %s11, 1
        %s186 = scalar_select %p185, %s11, 1
        %s187 = smul.addr %s186, 3
        %s188 = smul.addr %s187, 4
        %s189 = scalar_lea.vmem %s0, %s188
      $region28: #{backbone_forward.14} parent=23 // pred_fallthru
        _
      // Predicated region
      $region29: #{backbone_forward.14} parent=23 // pred_check
        %p190 = pneg %p57
      $region30: #{backbone_forward.14} parent=23 // pred_check_branch
        %192 = sbr.rel (%p190) target = $region32
      $region31: #{backbone_forward.14} parent=23 // pred_region
        %p193 = scmp.lt.s32.totalorder %s11, 1
        %s194 = scalar_select %p193, %s11, 1
        %s195 = smul.addr %s194, 3
        %s196 = smul.addr %s195, 4
        %s197 = scalar_lea.vmem %s1, %s196
      $region32: #{backbone_forward.14} parent=23 // pred_fallthru
        _
      // Predicated region
      $region33: #{backbone_forward.14} parent=23 // pred_check
        %p198 = pneg %p83
      $region34: #{backbone_forward.14} parent=23 // pred_check_branch
        %200 = sbr.rel (%p198) target = $region36
      $region35: #{backbone_forward.14} parent=23 // pred_region
        %p201 = scmp.lt.s32.totalorder %s11, 1
        %s202 = scalar_select %p201, %s11, 1
        %s203 = smul.addr %s202, 3
        %s204 = smul.addr %s203, 4
        %s205 = scalar_lea.vmem %s2, %s204
      $region36: #{backbone_forward.14} parent=23 // pred_fallthru
        _
    $region24: #{backbone_forward.14} parent=5 // pred_fallthru
      _
    %p206 = scmp.le.s32.totalorder 1, %s11
    %p207 = scmp.lt.s32.totalorder %s11, 3
    %p208 = pnand %p206, %p207
    %p209 = pneg %p208
    // Predicated region
    $region37: #{backbone_forward.14} parent=5 // pred_check
      _
    $region38: #{backbone_forward.14} parent=5 // pred_check_branch
      %211 = sbr.rel (%p208) target = $region40
    $region39: #{backbone_forward.14} parent=5 // pred_region
      %s212 = ssub.s32 %s11, 1
      %p213 = scmp.lt.s32.totalorder %s16, 1
      %s214 = scalar_select %p213, %s16, 1
      %s215 = smul.addr %s214, 3
      %s216 = smul.addr %s215, 4
      %s217 = scalar_lea.vmem %s0, %s216
      %p218 = pneg %p37
      %p219 = pneg %p34
      %p220 = scmp.lt.s32.totalorder %s16, 1
      %s221 = scalar_select %p220, %s16, 1
      %s222 = smul.addr %s221, 3
      %s223 = smul.addr %s222, 4
      %s224 = scalar_lea.vmem %s1, %s223
      %p225 = pneg %p63
      %p226 = pneg %p60
      %p227 = scmp.lt.s32.totalorder %s16, 1
      %s228 = scalar_select %p227, %s16, 1
      %s229 = smul.addr %s228, 3
      %s230 = smul.addr %s229, 4
      %s231 = scalar_lea.vmem %s2, %s230
      %p232 = pneg %p89
      %p233 = pneg %p86
      %p234 = pneg %p110
      %p235 = pneg %p107
      %p236 = pneg %p131
      %p237 = pneg %p128
      %p238 = pneg %p157
      %p239 = pneg %p154
      %p240 = scmp.lt.s32.totalorder %s16, 1
      %s241 = scalar_select %p240, %s16, 1
      %s242 = smul.addr %s241, 2
      %s243 = smul.addr %s242, 4
      %s244 = scalar_lea.vmem %s5, %s243
      %p245 = scmp.lt.s32.totalorder %s16, 1
      %s246 = scalar_select %p245, %s16, 1
      %s247 = smul.addr %s246, 3
      %s248 = smul.addr %s247, 4
      %s249 = scalar_lea.vmem %s0, %s248
      %p250 = scmp.lt.s32.totalorder %s16, 1
      %s251 = scalar_select %p250, %s16, 1
      %s252 = smul.addr %s251, 3
      %s253 = smul.addr %s252, 4
      %s254 = scalar_lea.vmem %s1, %s253
      %p255 = scmp.lt.s32.totalorder %s16, 1
      %s256 = scalar_select %p255, %s16, 1
      %s257 = smul.addr %s256, 3
      %s258 = smul.addr %s257, 4
      %s259 = scalar_lea.vmem %s2, %s258
      %p260 = scmp.lt.s32.totalorder %s16, 1
      %s261 = scalar_select %p260, %s16, 1
      %s262 = smul.addr %s261, 2
      %s263 = smul.addr %s262, 4
      %s264 = scalar_lea.vmem %s5, %s263
      %v266 = vld [vmem:[%s249] sm:$0xf]
      %v267 = vld [vmem:[%s249 + $0x4] sm:$0xf]
      %v268 = vld [vmem:[%s3] sm:$0xf]
      %v269 = vld [vmem:[%s3 + $0x4] sm:$0xf]
      %v270 = vld [vmem:[%s3 + $0x8] sm:$0xf]
      %v271 = vld [vmem:[%s3 + $0xc] sm:$0xf]
      %v272 = vld [vmem:[%s3 + $0x10] sm:$0xf]
      %v273 = vld [vmem:[%s3 + $0x14] sm:$0xf]
      %v274 = vld [vmem:[%s3 + $0x18] sm:$0xf]
      %v275 = vld [vmem:[%s3 + $0x1c] sm:$0xf]
      %v276 = vld [vmem:[%s3 + $0x20] sm:$0xf]
      %v277 = vld [vmem:[%s3 + $0x24] sm:$0xf]
      %v278 = vld [vmem:[%s3 + $0x28] sm:$0xf]
      %v279 = vld [vmem:[%s3 + $0x2c] sm:$0xf]
      %v280 = vld [vmem:[%s3 + $0x30] sm:$0xf]
      %v281 = vld [vmem:[%s3 + $0x34] sm:$0xf]
      %v282 = vld [vmem:[%s3 + $0x38] sm:$0xf]
      %v283 = vld [vmem:[%s3 + $0x3c] sm:$0xf]
      %v284 = vld [vmem:[%s254] sm:$0xf]
      %v285 = vld [vmem:[%s254 + $0x4] sm:$0xf]
      %s286 = scalar_lea.vmem %s3, 64
      %v287 = vld [vmem:[%s286] sm:$0xf]
      %v288 = vld [vmem:[%s286 + $0x4] sm:$0xf]
      %v289 = vld [vmem:[%s286 + $0x8] sm:$0xf]
      %v290 = vld [vmem:[%s286 + $0xc] sm:$0xf]
      %v291 = vld [vmem:[%s286 + $0x10] sm:$0xf]
      %v292 = vld [vmem:[%s286 + $0x14] sm:$0xf]
      %v293 = vld [vmem:[%s286 + $0x18] sm:$0xf]
      %v294 = vld [vmem:[%s286 + $0x1c] sm:$0xf]
      %v295 = vld [vmem:[%s286 + $0x20] sm:$0xf]
      %v296 = vld [vmem:[%s286 + $0x24] sm:$0xf]
      %v297 = vld [vmem:[%s286 + $0x28] sm:$0xf]
      %v298 = vld [vmem:[%s286 + $0x2c] sm:$0xf]
      %v299 = vld [vmem:[%s286 + $0x30] sm:$0xf]
      %v300 = vld [vmem:[%s286 + $0x34] sm:$0xf]
      %v301 = vld [vmem:[%s286 + $0x38] sm:$0xf]
      %v302 = vld [vmem:[%s286 + $0x3c] sm:$0xf]
      %v305 = vunpack.c.l.b16 %v284
      %v306 = vunpack.c.l.b16 %v285
      %v307 = vpack.c.b16 %v306, %v305
      %v325 = vunpack.c.l.b16 %v287
      %v326 = vunpack.c.l.b16 %v288
      %v327 = vunpack.c.l.b16 %v289
      %v328 = vunpack.c.l.b16 %v290
      %v329 = vunpack.c.l.b16 %v291
      %v330 = vunpack.c.l.b16 %v292
      %v331 = vunpack.c.l.b16 %v293
      %v332 = vunpack.c.l.b16 %v294
      %v333 = vunpack.c.l.b16 %v295
      %v334 = vunpack.c.l.b16 %v296
      %v335 = vunpack.c.l.b16 %v297
      %v336 = vunpack.c.l.b16 %v298
      %v337 = vunpack.c.l.b16 %v299
      %v338 = vunpack.c.l.b16 %v300
      %v339 = vunpack.c.l.b16 %v301
      %v340 = vunpack.c.l.b16 %v302
      %v341 = vpack.c.b16 %v326, %v325
      %v342 = vpack.c.b16 %v328, %v327
      %v343 = vpack.c.b16 %v330, %v329
      %v344 = vpack.c.b16 %v332, %v331
      %v345 = vpack.c.b16 %v334, %v333
      %v346 = vpack.c.b16 %v336, %v335
      %v347 = vpack.c.b16 %v338, %v337
      %v348 = vpack.c.b16 %v340, %v339
      %357 = vmatprep.subr.bf16.mxu0 0
      %358 = vmatpush1.bf16.msra.mxu0 %v341
      %359 = vmatprep.subr.bf16.mxu0 0
      %360 = vmatpush1.bf16.msra.mxu0 %v342
      %361 = vmatprep.subr.bf16.mxu0 0
      %362 = vmatpush1.bf16.msra.mxu0 %v343
      %363 = vmatprep.subr.bf16.mxu0 0
      %364 = vmatpush1.bf16.msra.mxu0 %v344
      %365 = vmatprep.subr.bf16.mxu0 0
      %366 = vmatpush1.bf16.msra.mxu0 %v345
      %367 = vmatprep.subr.bf16.mxu0 0
      %368 = vmatpush1.bf16.msra.mxu0 %v346
      %369 = vmatprep.subr.bf16.mxu0 0
      %370 = vmatpush1.bf16.msra.mxu0 %v347
      %371 = vmatprep.subr.bf16.mxu0 0
      %372 = vmatpush1.bf16.msra.mxu0 %v348
      %373 = vmatprep.subr.bf16.mxu0 0
      %374 = vmatpush1.bf16.msra.mxu0 0
      %375 = vmatprep.subr.bf16.mxu0 0
      %376 = vmatpush1.bf16.msra.mxu0 0
      %377 = vmatprep.subr.bf16.mxu0 0
      %378 = vmatpush1.bf16.msra.mxu0 0
      %379 = vmatprep.subr.bf16.mxu0 0
      %380 = vmatpush1.bf16.msra.mxu0 0
      %381 = vmatprep.subr.bf16.mxu0 0
      %382 = vmatpush1.bf16.msra.mxu0 0
      %383 = vmatprep.subr.bf16.mxu0 0
      %384 = vmatpush1.bf16.msra.mxu0 0
      %385 = vmatprep.subr.bf16.mxu0 0
      %386 = vmatpush1.bf16.msra.mxu0 0
      %387 = vmatprep.subr.bf16.mxu0 0
      %388 = vmatpush1.bf16.msra.mxu0 0
      %389 = vmatprep.mubr.bf16.mxu0 0
      %390 = vmatmul.mubr.bf16.gmra.mrb[0].mxu0 %v307
      %v391 = vpop.f32.mrb[0].mxu0
      %v392 = vadd.f32 0.0, %v391
      %v393 = vpop.f32.mrb[0].mxu0
      %v394 = vpop.f32.mrb[0].mxu0
      %v395 = vadd.f32 0.0, %v394
      %v396 = vpop.f32.mrb[0].mxu0
      %397 = vdwg.mxu0
      %v400 = vunpack.c.l.b16 %v266
      %v401 = vunpack.c.l.b16 %v267
      %v402 = vpack.c.b16 %v401, %v400
      %v420 = vunpack.c.l.b16 %v268
      %v421 = vunpack.c.l.b16 %v269
      %v422 = vunpack.c.l.b16 %v270
      %v423 = vunpack.c.l.b16 %v271
      %v424 = vunpack.c.l.b16 %v272
      %v425 = vunpack.c.l.b16 %v273
      %v426 = vunpack.c.l.b16 %v274
      %v427 = vunpack.c.l.b16 %v275
      %v428 = vunpack.c.l.b16 %v276
      %v429 = vunpack.c.l.b16 %v277
      %v430 = vunpack.c.l.b16 %v278
      %v431 = vunpack.c.l.b16 %v279
      %v432 = vunpack.c.l.b16 %v280
      %v433 = vunpack.c.l.b16 %v281
      %v434 = vunpack.c.l.b16 %v282
      %v435 = vunpack.c.l.b16 %v283
      %v436 = vpack.c.b16 %v421, %v420
      %v437 = vpack.c.b16 %v423, %v422
      %v438 = vpack.c.b16 %v425, %v424
      %v439 = vpack.c.b16 %v427, %v426
      %v440 = vpack.c.b16 %v429, %v428
      %v441 = vpack.c.b16 %v431, %v430
      %v442 = vpack.c.b16 %v433, %v432
      %v443 = vpack.c.b16 %v435, %v434
      %452 = vmatprep.subr.bf16.mxu0 0
      %453 = vmatpush1.bf16.msra.mxu0 %v436
      %454 = vmatprep.subr.bf16.mxu0 0
      %455 = vmatpush1.bf16.msra.mxu0 %v437
      %456 = vmatprep.subr.bf16.mxu0 0
      %457 = vmatpush1.bf16.msra.mxu0 %v438
      %458 = vmatprep.subr.bf16.mxu0 0
      %459 = vmatpush1.bf16.msra.mxu0 %v439
      %460 = vmatprep.subr.bf16.mxu0 0
      %461 = vmatpush1.bf16.msra.mxu0 %v440
      %462 = vmatprep.subr.bf16.mxu0 0
      %463 = vmatpush1.bf16.msra.mxu0 %v441
      %464 = vmatprep.subr.bf16.mxu0 0
      %465 = vmatpush1.bf16.msra.mxu0 %v442
      %466 = vmatprep.subr.bf16.mxu0 0
      %467 = vmatpush1.bf16.msra.mxu0 %v443
      %468 = vmatprep.subr.bf16.mxu0 0
      %469 = vmatpush1.bf16.msra.mxu0 0
      %470 = vmatprep.subr.bf16.mxu0 0
      %471 = vmatpush1.bf16.msra.mxu0 0
      %472 = vmatprep.subr.bf16.mxu0 0
      %473 = vmatpush1.bf16.msra.mxu0 0
      %474 = vmatprep.subr.bf16.mxu0 0
      %475 = vmatpush1.bf16.msra.mxu0 0
      %476 = vmatprep.subr.bf16.mxu0 0
      %477 = vmatpush1.bf16.msra.mxu0 0
      %478 = vmatprep.subr.bf16.mxu0 0
      %479 = vmatpush1.bf16.msra.mxu0 0
      %480 = vmatprep.subr.bf16.mxu0 0
      %481 = vmatpush1.bf16.msra.mxu0 0
      %482 = vmatprep.subr.bf16.mxu0 0
      %483 = vmatpush1.bf16.msra.mxu0 0
      %484 = vmatprep.mubr.bf16.mxu0 0
      %485 = vmatmul.mubr.bf16.gmra.mrb[0].mxu0 %v402
      %v486 = vpop.f32.mrb[0].mxu0
      %v487 = vadd.f32 %v392, %v486
      %v488 = vpop.f32.mrb[0].mxu0
      %v489 = vpop.f32.mrb[0].mxu0
      %v490 = vadd.f32 %v395, %v489
      %v491 = vpop.f32.mrb[0].mxu0
      %492 = vdwg.mxu0
      %v493 = vld [vmem:[%s259] sm:$0xf]
      %v494 = vld [vmem:[%s259 + $0x4] sm:$0xf]
      %s495 = scalar_lea.vmem %s3, 128
      %v496 = vld [vmem:[%s495] sm:$0xf]
      %v497 = vld [vmem:[%s495 + $0x4] sm:$0xf]
      %v498 = vld [vmem:[%s495 + $0x8] sm:$0xf]
      %v499 = vld [vmem:[%s495 + $0xc] sm:$0xf]
      %v500 = vld [vmem:[%s495 + $0x10] sm:$0xf]
      %v501 = vld [vmem:[%s495 + $0x14] sm:$0xf]
      %v502 = vld [vmem:[%s495 + $0x18] sm:$0xf]
      %v503 = vld [vmem:[%s495 + $0x1c] sm:$0xf]
      %v504 = vld [vmem:[%s495 + $0x20] sm:$0xf]
      %v505 = vld [vmem:[%s495 + $0x24] sm:$0xf]
      %v506 = vld [vmem:[%s495 + $0x28] sm:$0xf]
      %v507 = vld [vmem:[%s495 + $0x2c] sm:$0xf]
      %v508 = vld [vmem:[%s495 + $0x30] sm:$0xf]
      %v509 = vld [vmem:[%s495 + $0x34] sm:$0xf]
      %v510 = vld [vmem:[%s495 + $0x38] sm:$0xf]
      %v511 = vld [vmem:[%s495 + $0x3c] sm:$0xf]
      %v514 = vunpack.c.l.b16 %v493
      %v515 = vunpack.c.l.b16 %v494
      %v516 = vpack.c.b16 %v515, %v514
      %v534 = vunpack.c.l.b16 %v496
      %v535 = vunpack.c.l.b16 %v497
      %v536 = vunpack.c.l.b16 %v498
      %v537 = vunpack.c.l.b16 %v499
      %v538 = vunpack.c.l.b16 %v500
      %v539 = vunpack.c.l.b16 %v501
      %v540 = vunpack.c.l.b16 %v502
      %v541 = vunpack.c.l.b16 %v503
      %v542 = vunpack.c.l.b16 %v504
      %v543 = vunpack.c.l.b16 %v505
      %v544 = vunpack.c.l.b16 %v506
      %v545 = vunpack.c.l.b16 %v507
      %v546 = vunpack.c.l.b16 %v508
      %v547 = vunpack.c.l.b16 %v509
      %v548 = vunpack.c.l.b16 %v510
      %v549 = vunpack.c.l.b16 %v511
      %v550 = vpack.c.b16 %v535, %v534
      %v551 = vpack.c.b16 %v537, %v536
      %v552 = vpack.c.b16 %v539, %v538
      %v553 = vpack.c.b16 %v541, %v540
      %v554 = vpack.c.b16 %v543, %v542
      %v555 = vpack.c.b16 %v545, %v544
      %v556 = vpack.c.b16 %v547, %v546
      %v557 = vpack.c.b16 %v549, %v548
      %566 = vmatprep.subr.bf16.mxu0 0
      %567 = vmatpush1.bf16.msra.mxu0 %v550
      %568 = vmatprep.subr.bf16.mxu0 0
      %569 = vmatpush1.bf16.msra.mxu0 %v551
      %570 = vmatprep.subr.bf16.mxu0 0
      %571 = vmatpush1.bf16.msra.mxu0 %v552
      %572 = vmatprep.subr.bf16.mxu0 0
      %573 = vmatpush1.bf16.msra.mxu0 %v553
      %574 = vmatprep.subr.bf16.mxu0 0
      %575 = vmatpush1.bf16.msra.mxu0 %v554
      %576 = vmatprep.subr.bf16.mxu0 0
      %577 = vmatpush1.bf16.msra.mxu0 %v555
      %578 = vmatprep.subr.bf16.mxu0 0
      %579 = vmatpush1.bf16.msra.mxu0 %v556
      %580 = vmatprep.subr.bf16.mxu0 0
      %581 = vmatpush1.bf16.msra.mxu0 %v557
      %582 = vmatprep.subr.bf16.mxu0 0
      %583 = vmatpush1.bf16.msra.mxu0 0
      %584 = vmatprep.subr.bf16.mxu0 0
      %585 = vmatpush1.bf16.msra.mxu0 0
      %586 = vmatprep.subr.bf16.mxu0 0
      %587 = vmatpush1.bf16.msra.mxu0 0
      %588 = vmatprep.subr.bf16.mxu0 0
      %589 = vmatpush1.bf16.msra.mxu0 0
      %590 = vmatprep.subr.bf16.mxu0 0
      %591 = vmatpush1.bf16.msra.mxu0 0
      %592 = vmatprep.subr.bf16.mxu0 0
      %593 = vmatpush1.bf16.msra.mxu0 0
      %594 = vmatprep.subr.bf16.mxu0 0
      %595 = vmatpush1.bf16.msra.mxu0 0
      %596 = vmatprep.subr.bf16.mxu0 0
      %597 = vmatpush1.bf16.msra.mxu0 0
      %598 = vmatprep.mubr.bf16.mxu0 0
      %599 = vmatmul.mubr.bf16.gmra.mrb[0].mxu0 %v516
      %v600 = vpop.f32.mrb[0].mxu0
      %v601 = vadd.f32 0.0, %v600
      %v602 = vpop.f32.mrb[0].mxu0
      %v603 = vpop.f32.mrb[0].mxu0
      %v604 = vadd.f32 0.0, %v603
      %v605 = vpop.f32.mrb[0].mxu0
      %606 = vdwg.mxu0
      %v607 = vadd.f32 %v487, %v601
      %v608 = vadd.f32 %v490, %v604
      %v609 = vld [vmem:[%s249] sm:$0xc]
      %v610 = vld [vmem:[%s249 + $0x4] sm:$0xf]
      %v611 = vld [vmem:[%s249 + $0x8] sm:$0x3]
      %s612 = scalar_lea.vmem %s3, 192
      %v613 = vld [vmem:[%s612] sm:$0xf]
      %v614 = vld [vmem:[%s612 + $0x4] sm:$0xf]
      %v615 = vld [vmem:[%s612 + $0x8] sm:$0xf]
      %v616 = vld [vmem:[%s612 + $0xc] sm:$0xf]
      %v617 = vld [vmem:[%s612 + $0x10] sm:$0xf]
      %v618 = vld [vmem:[%s612 + $0x14] sm:$0xf]
      %v619 = vld [vmem:[%s612 + $0x18] sm:$0xf]
      %v620 = vld [vmem:[%s612 + $0x1c] sm:$0xf]
      %v621 = vld [vmem:[%s612 + $0x20] sm:$0xf]
      %v622 = vld [vmem:[%s612 + $0x24] sm:$0xf]
      %v623 = vld [vmem:[%s612 + $0x28] sm:$0xf]
      %v624 = vld [vmem:[%s612 + $0x2c] sm:$0xf]
      %v625 = vld [vmem:[%s612 + $0x30] sm:$0xf]
      %v626 = vld [vmem:[%s612 + $0x34] sm:$0xf]
      %v627 = vld [vmem:[%s612 + $0x38] sm:$0xf]
      %v628 = vld [vmem:[%s612 + $0x3c] sm:$0xf]
      %v632 = vunpack.c.l.b16 %v609
      %v633 = vunpack.c.l.b16 %v610
      %v634 = vunpack.c.l.b16 %v611
      %v635 = vpack.c.b16 %v633, %v632
      %v636 = vpack.c.b16 %v634, %v634
      %vm637 = vcmask 1045504
      %v638 = vrot.slane %v635, 2
      %v639 = vrot.slane %v636, 2
      %v640 = vsel %vm637, %v638, %v639
      %v658 = vunpack.c.l.b16 %v613
      %v659 = vunpack.c.l.b16 %v614
      %v660 = vunpack.c.l.b16 %v615
      %v661 = vunpack.c.l.b16 %v616
      %v662 = vunpack.c.l.b16 %v617
      %v663 = vunpack.c.l.b16 %v618
      %v664 = vunpack.c.l.b16 %v619
      %v665 = vunpack.c.l.b16 %v620
      %v666 = vunpack.c.l.b16 %v621
      %v667 = vunpack.c.l.b16 %v622
      %v668 = vunpack.c.l.b16 %v623
      %v669 = vunpack.c.l.b16 %v624
      %v670 = vunpack.c.l.b16 %v625
      %v671 = vunpack.c.l.b16 %v626
      %v672 = vunpack.c.l.b16 %v627
      %v673 = vunpack.c.l.b16 %v628
      %v674 = vpack.c.b16 %v659, %v658
      %v675 = vpack.c.b16 %v661, %v660
      %v676 = vpack.c.b16 %v663, %v662
      %v677 = vpack.c.b16 %v665, %v664
      %v678 = vpack.c.b16 %v667, %v666
      %v679 = vpack.c.b16 %v669, %v668
      %v680 = vpack.c.b16 %v671, %v670
      %v681 = vpack.c.b16 %v673, %v672
      %690 = vmatprep.subr.bf16.mxu0 0
      %691 = vmatpush1.bf16.msra.mxu0 %v674
      %692 = vmatprep.subr.bf16.mxu0 0
      %693 = vmatpush1.bf16.msra.mxu0 %v675
      %694 = vmatprep.subr.bf16.mxu0 0
      %695 = vmatpush1.bf16.msra.mxu0 %v676
      %696 = vmatprep.subr.bf16.mxu0 0
      %697 = vmatpush1.bf16.msra.mxu0 %v677
      %698 = vmatprep.subr.bf16.mxu0 0
      %699 = vmatpush1.bf16.msra.mxu0 %v678
      %700 = vmatprep.subr.bf16.mxu0 0
      %701 = vmatpush1.bf16.msra.mxu0 %v679
      %702 = vmatprep.subr.bf16.mxu0 0
      %703 = vmatpush1.bf16.msra.mxu0 %v680
      %704 = vmatprep.subr.bf16.mxu0 0
      %705 = vmatpush1.bf16.msra.mxu0 %v681
      %706 = vmatprep.subr.bf16.mxu0 0
      %707 = vmatpush1.bf16.msra.mxu0 0
      %708 = vmatprep.subr.bf16.mxu0 0
      %709 = vmatpush1.bf16.msra.mxu0 0
      %710 = vmatprep.subr.bf16.mxu0 0
      %711 = vmatpush1.bf16.msra.mxu0 0
      %712 = vmatprep.subr.bf16.mxu0 0
      %713 = vmatpush1.bf16.msra.mxu0 0
      %714 = vmatprep.subr.bf16.mxu0 0
      %715 = vmatpush1.bf16.msra.mxu0 0
      %716 = vmatprep.subr.bf16.mxu0 0
      %717 = vmatpush1.bf16.msra.mxu0 0
      %718 = vmatprep.subr.bf16.mxu0 0
      %719 = vmatpush1.bf16.msra.mxu0 0
      %720 = vmatprep.subr.bf16.mxu0 0
      %721 = vmatpush1.bf16.msra.mxu0 0
      %722 = vmatprep.mubr.bf16.mxu0 0
      %723 = vmatmul.mubr.bf16.gmra.mrb[0].mxu0 %v640
      %v724 = vpop.f32.mrb[0].mxu0
      %v725 = vadd.f32 0.0, %v724
      %v726 = vpop.f32.mrb[0].mxu0
      %v727 = vpop.f32.mrb[0].mxu0
      %v728 = vadd.f32 0.0, %v727
      %v729 = vpop.f32.mrb[0].mxu0
      %730 = vdwg.mxu0
      %v731 = vadd.f32 %v607, %v725
      %v732 = vadd.f32 %v608, %v728
      %v733 = vld [vmem:[%s254] sm:$0xc]
      %v734 = vld [vmem:[%s254 + $0x4] sm:$0xf]
      %v735 = vld [vmem:[%s254 + $0x8] sm:$0x3]
      %s736 = scalar_lea.vmem %s3, 256
      %v737 = vld [vmem:[%s736] sm:$0xf]
      %v738 = vld [vmem:[%s736 + $0x4] sm:$0xf]
      %v739 = vld [vmem:[%s736 + $0x8] sm:$0xf]
      %v740 = vld [vmem:[%s736 + $0xc] sm:$0xf]
      %v741 = vld [vmem:[%s736 + $0x10] sm:$0xf]
      %v742 = vld [vmem:[%s736 + $0x14] sm:$0xf]
      %v743 = vld [vmem:[%s736 + $0x18] sm:$0xf]
      %v744 = vld [vmem:[%s736 + $0x1c] sm:$0xf]
      %v745 = vld [vmem:[%s736 + $0x20] sm:$0xf]
      %v746 = vld [vmem:[%s736 + $0x24] sm:$0xf]
      %v747 = vld [vmem:[%s736 + $0x28] sm:$0xf]
      %v748 = vld [vmem:[%s736 + $0x2c] sm:$0xf]
      %v749 = vld [vmem:[%s736 + $0x30] sm:$0xf]
      %v750 = vld [vmem:[%s736 + $0x34] sm:$0xf]
      %v751 = vld [vmem:[%s736 + $0x38] sm:$0xf]
      %v752 = vld [vmem:[%s736 + $0x3c] sm:$0xf]
      %v756 = vunpack.c.l.b16 %v733
      %v757 = vunpack.c.l.b16 %v734
      %v758 = vunpack.c.l.b16 %v735
      %v759 = vpack.c.b16 %v757, %v756
      %v760 = vpack.c.b16 %v758, %v758
      %v761 = vrot.slane %v759, 2
      %v762 = vrot.slane %v760, 2
      %v763 = vsel %vm637, %v761, %v762
      %v781 = vunpack.c.l.b16 %v737
      %v782 = vunpack.c.l.b16 %v738
      %v783 = vunpack.c.l.b16 %v739
      %v784 = vunpack.c.l.b16 %v740
      %v785 = vunpack.c.l.b16 %v741
      %v786 = vunpack.c.l.b16 %v742
      %v787 = vunpack.c.l.b16 %v743
      %v788 = vunpack.c.l.b16 %v744
      %v789 = vunpack.c.l.b16 %v745
      %v790 = vunpack.c.l.b16 %v746
      %v791 = vunpack.c.l.b16 %v747
      %v792 = vunpack.c.l.b16 %v748
      %v793 = vunpack.c.l.b16 %v749
      %v794 = vunpack.c.l.b16 %v750
      %v795 = vunpack.c.l.b16 %v751
      %v796 = vunpack.c.l.b16 %v752
      %v797 = vpack.c.b16 %v782, %v781
      %v798 = vpack.c.b16 %v784, %v783
      %v799 = vpack.c.b16 %v786, %v785
      %v800 = vpack.c.b16 %v788, %v787
      %v801 = vpack.c.b16 %v790, %v789
      %v802 = vpack.c.b16 %v792, %v791
      %v803 = vpack.c.b16 %v794, %v793
      %v804 = vpack.c.b16 %v796, %v795
      %813 = vmatprep.subr.bf16.mxu0 0
      %814 = vmatpush1.bf16.msra.mxu0 %v797
      %815 = vmatprep.subr.bf16.mxu0 0
      %816 = vmatpush1.bf16.msra.mxu0 %v798
      %817 = vmatprep.subr.bf16.mxu0 0
      %818 = vmatpush1.bf16.msra.mxu0 %v799
      %819 = vmatprep.subr.bf16.mxu0 0
      %820 = vmatpush1.bf16.msra.mxu0 %v800
      %821 = vmatprep.subr.bf16.mxu0 0
      %822 = vmatpush1.bf16.msra.mxu0 %v801
      %823 = vmatprep.subr.bf16.mxu0 0
      %824 = vmatpush1.bf16.msra.mxu0 %v802
      %825 = vmatprep.subr.bf16.mxu0 0
      %826 = vmatpush1.bf16.msra.mxu0 %v803
      %827 = vmatprep.subr.bf16.mxu0 0
      %828 = vmatpush1.bf16.msra.mxu0 %v804
      %829 = vmatprep.subr.bf16.mxu0 0
      %830 = vmatpush1.bf16.msra.mxu0 0
      %831 = vmatprep.subr.bf16.mxu0 0
      %832 = vmatpush1.bf16.msra.mxu0 0
      %833 = vmatprep.subr.bf16.mxu0 0
      %834 = vmatpush1.bf16.msra.mxu0 0
      %835 = vmatprep.subr.bf16.mxu0 0
      %836 = vmatpush1.bf16.msra.mxu0 0
      %837 = vmatprep.subr.bf16.mxu0 0
      %838 = vmatpush1.bf16.msra.mxu0 0
      %839 = vmatprep.subr.bf16.mxu0 0
      %840 = vmatpush1.bf16.msra.mxu0 0
      %841 = vmatprep.subr.bf16.mxu0 0
      %842 = vmatpush1.bf16.msra.mxu0 0
      %843 = vmatprep.subr.bf16.mxu0 0
      %844 = vmatpush1.bf16.msra.mxu0 0
      %845 = vmatprep.mubr.bf16.mxu0 0
      %846 = vmatmul.mubr.bf16.gmra.mrb[0].mxu0 %v763
      %v847 = vpop.f32.mrb[0].mxu0
      %v848 = vadd.f32 0.0, %v847
      %v849 = vpop.f32.mrb[0].mxu0
      %v850 = vpop.f32.mrb[0].mxu0
      %v851 = vadd.f32 0.0, %v850
      %v852 = vpop.f32.mrb[0].mxu0
      %853 = vdwg.mxu0
      %v854 = vadd.f32 %v731, %v848
      %v855 = vadd.f32 %v732, %v851
      %v856 = vld [vmem:[%s259] sm:$0xc]
      %v857 = vld [vmem:[%s259 + $0x4] sm:$0xf]
      %v858 = vld [vmem:[%s259 + $0x8] sm:$0x3]
      %s859 = scalar_lea.vmem %s3, 320
      %v860 = vld [vmem:[%s859] sm:$0xf]
      %v861 = vld [vmem:[%s859 + $0x4] sm:$0xf]
      %v862 = vld [vmem:[%s859 + $0x8] sm:$0xf]
      %v863 = vld [vmem:[%s859 + $0xc] sm:$0xf]
      %v864 = vld [vmem:[%s859 + $0x10] sm:$0xf]
      %v865 = vld [vmem:[%s859 + $0x14] sm:$0xf]
      %v866 = vld [vmem:[%s859 + $0x18] sm:$0xf]
      %v867 = vld [vmem:[%s859 + $0x1c] sm:$0xf]
      %v868 = vld [vmem:[%s859 + $0x20] sm:$0xf]
      %v869 = vld [vmem:[%s859 + $0x24] sm:$0xf]
      %v870 = vld [vmem:[%s859 + $0x28] sm:$0xf]
      %v871 = vld [vmem:[%s859 + $0x2c] sm:$0xf]
      %v872 = vld [vmem:[%s859 + $0x30] sm:$0xf]
      %v873 = vld [vmem:[%s859 + $0x34] sm:$0xf]
      %v874 = vld [vmem:[%s859 + $0x38] sm:$0xf]
      %v875 = vld [vmem:[%s859 + $0x3c] sm:$0xf]
      %v879 = vunpack.c.l.b16 %v856
      %v880 = vunpack.c.l.b16 %v857
      %v881 = vunpack.c.l.b16 %v858
      %v882 = vpack.c.b16 %v880, %v879
      %v883 = vpack.c.b16 %v881, %v881
      %v884 = vrot.slane %v882, 2
      %v885 = vrot.slane %v883, 2
      %v886 = vsel %vm637, %v884, %v885
      %v904 = vunpack.c.l.b16 %v860
      %v905 = vunpack.c.l.b16 %v861
      %v906 = vunpack.c.l.b16 %v862
      %v907 = vunpack.c.l.b16 %v863
      %v908 = vunpack.c.l.b16 %v864
      %v909 = vunpack.c.l.b16 %v865
      %v910 = vunpack.c.l.b16 %v866
      %v911 = vunpack.c.l.b16 %v867
      %v912 = vunpack.c.l.b16 %v868
      %v913 = vunpack.c.l.b16 %v869
      %v914 = vunpack.c.l.b16 %v870
      %v915 = vunpack.c.l.b16 %v871
      %v916 = vunpack.c.l.b16 %v872
      %v917 = vunpack.c.l.b16 %v873
      %v918 = vunpack.c.l.b16 %v874
      %v919 = vunpack.c.l.b16 %v875
      %v920 = vpack.c.b16 %v905, %v904
      %v921 = vpack.c.b16 %v907, %v906
      %v922 = vpack.c.b16 %v909, %v908
      %v923 = vpack.c.b16 %v911, %v910
      %v924 = vpack.c.b16 %v913, %v912
      %v925 = vpack.c.b16 %v915, %v914
      %v926 = vpack.c.b16 %v917, %v916
      %v927 = vpack.c.b16 %v919, %v918
      %936 = vmatprep.subr.bf16.mxu0 0
      %937 = vmatpush1.bf16.msra.mxu0 %v920
      %938 = vmatprep.subr.bf16.mxu0 0
      %939 = vmatpush1.bf16.msra.mxu0 %v921
      %940 = vmatprep.subr.bf16.mxu0 0
      %941 = vmatpush1.bf16.msra.mxu0 %v922
      %942 = vmatprep.subr.bf16.mxu0 0
      %943 = vmatpush1.bf16.msra.mxu0 %v923
      %944 = vmatprep.subr.bf16.mxu0 0
      %945 = vmatpush1.bf16.msra.mxu0 %v924
      %946 = vmatprep.subr.bf16.mxu0 0
      %947 = vmatpush1.bf16.msra.mxu0 %v925
      %948 = vmatprep.subr.bf16.mxu0 0
      %949 = vmatpush1.bf16.msra.mxu0 %v926
      %950 = vmatprep.subr.bf16.mxu0 0
      %951 = vmatpush1.bf16.msra.mxu0 %v927
      %952 = vmatprep.subr.bf16.mxu0 0
      %953 = vmatpush1.bf16.msra.mxu0 0
      %954 = vmatprep.subr.bf16.mxu0 0
      %955 = vmatpush1.bf16.msra.mxu0 0
      %956 = vmatprep.subr.bf16.mxu0 0
      %957 = vmatpush1.bf16.msra.mxu0 0
      %958 = vmatprep.subr.bf16.mxu0 0
      %959 = vmatpush1.bf16.msra.mxu0 0
      %960 = vmatprep.subr.bf16.mxu0 0
      %961 = vmatpush1.bf16.msra.mxu0 0
      %962 = vmatprep.subr.bf16.mxu0 0
      %963 = vmatpush1.bf16.msra.mxu0 0
      %964 = vmatprep.subr.bf16.mxu0 0
      %965 = vmatpush1.bf16.msra.mxu0 0
      %966 = vmatprep.subr.bf16.mxu0 0
      %967 = vmatpush1.bf16.msra.mxu0 0
      %968 = vmatprep.mubr.bf16.mxu0 0
      %969 = vmatmul.mubr.bf16.gmra.mrb[0].mxu0 %v886
      %v970 = vpop.f32.mrb[0].mxu0
      %v971 = vadd.f32 0.0, %v970
      %v972 = vpop.f32.mrb[0].mxu0
      %v973 = vpop.f32.mrb[0].mxu0
      %v974 = vadd.f32 0.0, %v973
      %v975 = vpop.f32.mrb[0].mxu0
      %976 = vdwg.mxu0
      %v977 = vadd.f32 %v854, %v971
      %v978 = vadd.f32 %v855, %v974
      %v979 = vld [vmem:[%s249 + $0x8] sm:$0xf]
      %s980 = scalar_lea.vmem %s3, 384
      %v981 = vld [vmem:[%s980] sm:$0xf]
      %v982 = vld [vmem:[%s980 + $0x4] sm:$0xf]
      %v983 = vld [vmem:[%s980 + $0x8] sm:$0xf]
      %v984 = vld [vmem:[%s980 + $0xc] sm:$0xf]
      %v985 = vld [vmem:[%s980 + $0x10] sm:$0xf]
      %v986 = vld [vmem:[%s980 + $0x14] sm:$0xf]
      %v987 = vld [vmem:[%s980 + $0x18] sm:$0xf]
      %v988 = vld [vmem:[%s980 + $0x1c] sm:$0xf]
      %v989 = vld [vmem:[%s980 + $0x20] sm:$0xf]
      %v990 = vld [vmem:[%s980 + $0x24] sm:$0xf]
      %v991 = vld [vmem:[%s980 + $0x28] sm:$0xf]
      %v992 = vld [vmem:[%s980 + $0x2c] sm:$0xf]
      %v993 = vld [vmem:[%s980 + $0x30] sm:$0xf]
      %v994 = vld [vmem:[%s980 + $0x34] sm:$0xf]
      %v995 = vld [vmem:[%s980 + $0x38] sm:$0xf]
      %v996 = vld [vmem:[%s980 + $0x3c] sm:$0xf]
      %v998 = vunpack.c.l.b16 %v979
      %v999 = vpack.c.b16 %v998, %v633
      %v1017 = vunpack.c.l.b16 %v981
      %v1018 = vunpack.c.l.b16 %v982
      %v1019 = vunpack.c.l.b16 %v983
      %v1020 = vunpack.c.l.b16 %v984
      %v1021 = vunpack.c.l.b16 %v985
      %v1022 = vunpack.c.l.b16 %v986
      %v1023 = vunpack.c.l.b16 %v987
      %v1024 = vunpack.c.l.b16 %v988
      %v1025 = vunpack.c.l.b16 %v989
      %v1026 = vunpack.c.l.b16 %v990
      %v1027 = vunpack.c.l.b16 %v991
      %v1028 = vunpack.c.l.b16 %v992
      %v1029 = vunpack.c.l.b16 %v993
      %v1030 = vunpack.c.l.b16 %v994
      %v1031 = vunpack.c.l.b16 %v995
      %v1032 = vunpack.c.l.b16 %v996
      %v1033 = vpack.c.b16 %v1018, %v1017
      %v1034 = vpack.c.b16 %v1020, %v1019
      %v1035 = vpack.c.b16 %v1022, %v1021
      %v1036 = vpack.c.b16 %v1024, %v1023
      %v1037 = vpack.c.b16 %v1026, %v1025
      %v1038 = vpack.c.b16 %v1028, %v1027
      %v1039 = vpack.c.b16 %v1030, %v1029
      %v1040 = vpack.c.b16 %v1032, %v1031
      %1049 = vmatprep.subr.bf16.mxu0 0
      %1050 = vmatpush1.bf16.msra.mxu0 %v1033
      %1051 = vmatprep.subr.bf16.mxu0 0
      %1052 = vmatpush1.bf16.msra.mxu0 %v1034
      %1053 = vmatprep.subr.bf16.mxu0 0
      %1054 = vmatpush1.bf16.msra.mxu0 %v1035
      %1055 = vmatprep.subr.bf16.mxu0 0
      %1056 = vmatpush1.bf16.msra.mxu0 %v1036
      %1057 = vmatprep.subr.bf16.mxu0 0
      %1058 = vmatpush1.bf16.msra.mxu0 %v1037
      %1059 = vmatprep.subr.bf16.mxu0 0
      %1060 = vmatpush1.bf16.msra.mxu0 %v1038
      %1061 = vmatprep.subr.bf16.mxu0 0
      %1062 = vmatpush1.bf16.msra.mxu0 %v1039
      %1063 = vmatprep.subr.bf16.mxu0 0
      %1064 = vmatpush1.bf16.msra.mxu0 %v1040
      %1065 = vmatprep.subr.bf16.mxu0 0
      %1066 = vmatpush1.bf16.msra.mxu0 0
      %1067 = vmatprep.subr.bf16.mxu0 0
      %1068 = vmatpush1.bf16.msra.mxu0 0
      %1069 = vmatprep.subr.bf16.mxu0 0
      %1070 = vmatpush1.bf16.msra.mxu0 0
      %1071 = vmatprep.subr.bf16.mxu0 0
      %1072 = vmatpush1.bf16.msra.mxu0 0
      %1073 = vmatprep.subr.bf16.mxu0 0
      %1074 = vmatpush1.bf16.msra.mxu0 0
      %1075 = vmatprep.subr.bf16.mxu0 0
      %1076 = vmatpush1.bf16.msra.mxu0 0
      %1077 = vmatprep.subr.bf16.mxu0 0
      %1078 = vmatpush1.bf16.msra.mxu0 0
      %1079 = vmatprep.subr.bf16.mxu0 0
      %1080 = vmatpush1.bf16.msra.mxu0 0
      %1081 = vmatprep.mubr.bf16.mxu0 0
      %1082 = vmatmul.mubr.bf16.gmra.mrb[0].mxu0 %v999
      %v1083 = vpop.f32.mrb[0].mxu0
      %v1084 = vadd.f32 0.0, %v1083
      %v1085 = vpop.f32.mrb[0].mxu0
      %v1086 = vpop.f32.mrb[0].mxu0
      %v1087 = vadd.f32 0.0, %v1086
      %v1088 = vpop.f32.mrb[0].mxu0
      %1089 = vdwg.mxu0
      %v1090 = vadd.f32 %v977, %v1084
      %v1091 = vadd.f32 %v978, %v1087
      %v1092 = vld [vmem:[%s254 + $0x8] sm:$0xf]
      %s1093 = scalar_lea.vmem %s3, 448
      %v1094 = vld [vmem:[%s1093] sm:$0xf]
      %v1095 = vld [vmem:[%s1093 + $0x4] sm:$0xf]
      %v1096 = vld [vmem:[%s1093 + $0x8] sm:$0xf]
      %v1097 = vld [vmem:[%s1093 + $0xc] sm:$0xf]
      %v1098 = vld [vmem:[%s1093 + $0x10] sm:$0xf]
      %v1099 = vld [vmem:[%s1093 + $0x14] sm:$0xf]
      %v1100 = vld [vmem:[%s1093 + $0x18] sm:$0xf]
      %v1101 = vld [vmem:[%s1093 + $0x1c] sm:$0xf]
      %v1102 = vld [vmem:[%s1093 + $0x20] sm:$0xf]
      %v1103 = vld [vmem:[%s1093 + $0x24] sm:$0xf]
      %v1104 = vld [vmem:[%s1093 + $0x28] sm:$0xf]
      %v1105 = vld [vmem:[%s1093 + $0x2c] sm:$0xf]
      %v1106 = vld [vmem:[%s1093 + $0x30] sm:$0xf]
      %v1107 = vld [vmem:[%s1093 + $0x34] sm:$0xf]
      %v1108 = vld [vmem:[%s1093 + $0x38] sm:$0xf]
      %v1109 = vld [vmem:[%s1093 + $0x3c] sm:$0xf]
      %v1111 = vunpack.c.l.b16 %v1092
      %v1112 = vpack.c.b16 %v1111, %v757
      %v1130 = vunpack.c.l.b16 %v1094
      %v1131 = vunpack.c.l.b16 %v1095
      %v1132 = vunpack.c.l.b16 %v1096
      %v1133 = vunpack.c.l.b16 %v1097
      %v1134 = vunpack.c.l.b16 %v1098
      %v1135 = vunpack.c.l.b16 %v1099
      %v1136 = vunpack.c.l.b16 %v1100
      %v1137 = vunpack.c.l.b16 %v1101
      %v1138 = vunpack.c.l.b16 %v1102
      %v1139 = vunpack.c.l.b16 %v1103
      %v1140 = vunpack.c.l.b16 %v1104
      %v1141 = vunpack.c.l.b16 %v1105
      %v1142 = vunpack.c.l.b16 %v1106
      %v1143 = vunpack.c.l.b16 %v1107
      %v1144 = vunpack.c.l.b16 %v1108
      %v1145 = vunpack.c.l.b16 %v1109
      %v1146 = vpack.c.b16 %v1131, %v1130
      %v1147 = vpack.c.b16 %v1133, %v1132
      %v1148 = vpack.c.b16 %v1135, %v1134
      %v1149 = vpack.c.b16 %v1137, %v1136
      %v1150 = vpack.c.b16 %v1139, %v1138
      %v1151 = vpack.c.b16 %v1141, %v1140
      %v1152 = vpack.c.b16 %v1143, %v1142
      %v1153 = vpack.c.b16 %v1145, %v1144
      %1162 = vmatprep.subr.bf16.mxu0 0
      %1163 = vmatpush1.bf16.msra.mxu0 %v1146
      %1164 = vmatprep.subr.bf16.mxu0 0
      %1165 = vmatpush1.bf16.msra.mxu0 %v1147
      %1166 = vmatprep.subr.bf16.mxu0 0
      %1167 = vmatpush1.bf16.msra.mxu0 %v1148
      %1168 = vmatprep.subr.bf16.mxu0 0
      %1169 = vmatpush1.bf16.msra.mxu0 %v1149
      %1170 = vmatprep.subr.bf16.mxu0 0
      %1171 = vmatpush1.bf16.msra.mxu0 %v1150
      %1172 = vmatprep.subr.bf16.mxu0 0
      %1173 = vmatpush1.bf16.msra.mxu0 %v1151
      %1174 = vmatprep.subr.bf16.mxu0 0
      %1175 = vmatpush1.bf16.msra.mxu0 %v1152
      %1176 = vmatprep.subr.bf16.mxu0 0
      %1177 = vmatpush1.bf16.msra.mxu0 %v1153
      %1178 = vmatprep.subr.bf16.mxu0 0
      %1179 = vmatpush1.bf16.msra.mxu0 0
      %1180 = vmatprep.subr.bf16.mxu0 0
      %1181 = vmatpush1.bf16.msra.mxu0 0
      %1182 = vmatprep.subr.bf16.mxu0 0
      %1183 = vmatpush1.bf16.msra.mxu0 0
      %1184 = vmatprep.subr.bf16.mxu0 0
      %1185 = vmatpush1.bf16.msra.mxu0 0
      %1186 = vmatprep.subr.bf16.mxu0 0
      %1187 = vmatpush1.bf16.msra.mxu0 0
      %1188 = vmatprep.subr.bf16.mxu0 0
      %1189 = vmatpush1.bf16.msra.mxu0 0
      %1190 = vmatprep.subr.bf16.mxu0 0
      %1191 = vmatpush1.bf16.msra.mxu0 0
      %1192 = vmatprep.subr.bf16.mxu0 0
      %1193 = vmatpush1.bf16.msra.mxu0 0
      %1194 = vmatprep.mubr.bf16.mxu0 0
      %1195 = vmatmul.mubr.bf16.gmra.mrb[0].mxu0 %v1112
      %v1196 = vpop.f32.mrb[0].mxu0
      %v1197 = vadd.f32 0.0, %v1196
      %v1198 = vpop.f32.mrb[0].mxu0
      %v1199 = vpop.f32.mrb[0].mxu0
      %v1200 = vadd.f32 0.0, %v1199
      %v1201 = vpop.f32.mrb[0].mxu0
      %1202 = vdwg.mxu0
      %v1203 = vadd.f32 %v1090, %v1197
      %v1204 = vadd.f32 %v1091, %v1200
      %v1205 = vld [vmem:[%s259 + $0x8] sm:$0xf]
      %s1206 = scalar_lea.vmem %s3, 512
      %v1207 = vld [vmem:[%s1206] sm:$0xf]
      %v1208 = vld [vmem:[%s1206 + $0x4] sm:$0xf]
      %v1209 = vld [vmem:[%s1206 + $0x8] sm:$0xf]
      %v1210 = vld [vmem:[%s1206 + $0xc] sm:$0xf]
      %v1211 = vld [vmem:[%s1206 + $0x10] sm:$0xf]
      %v1212 = vld [vmem:[%s1206 + $0x14] sm:$0xf]
      %v1213 = vld [vmem:[%s1206 + $0x18] sm:$0xf]
      %v1214 = vld [vmem:[%s1206 + $0x1c] sm:$0xf]
      %v1215 = vld [vmem:[%s1206 + $0x20] sm:$0xf]
      %v1216 = vld [vmem:[%s1206 + $0x24] sm:$0xf]
      %v1217 = vld [vmem:[%s1206 + $0x28] sm:$0xf]
      %v1218 = vld [vmem:[%s1206 + $0x2c] sm:$0xf]
      %v1219 = vld [vmem:[%s1206 + $0x30] sm:$0xf]
      %v1220 = vld [vmem:[%s1206 + $0x34] sm:$0xf]
      %v1221 = vld [vmem:[%s1206 + $0x38] sm:$0xf]
      %v1222 = vld [vmem:[%s1206 + $0x3c] sm:$0xf]
      %v1224 = vunpack.c.l.b16 %v1205
      %v1225 = vpack.c.b16 %v1224, %v880
      %v1243 = vunpack.c.l.b16 %v1207
      %v1244 = vunpack.c.l.b16 %v1208
      %v1245 = vunpack.c.l.b16 %v1209
      %v1246 = vunpack.c.l.b16 %v1210
      %v1247 = vunpack.c.l.b16 %v1211
      %v1248 = vunpack.c.l.b16 %v1212
      %v1249 = vunpack.c.l.b16 %v1213
      %v1250 = vunpack.c.l.b16 %v1214
      %v1251 = vunpack.c.l.b16 %v1215
      %v1252 = vunpack.c.l.b16 %v1216
      %v1253 = vunpack.c.l.b16 %v1217
      %v1254 = vunpack.c.l.b16 %v1218
      %v1255 = vunpack.c.l.b16 %v1219
      %v1256 = vunpack.c.l.b16 %v1220
      %v1257 = vunpack.c.l.b16 %v1221
      %v1258 = vunpack.c.l.b16 %v1222
      %v1259 = vpack.c.b16 %v1244, %v1243
      %v1260 = vpack.c.b16 %v1246, %v1245
      %v1261 = vpack.c.b16 %v1248, %v1247
      %v1262 = vpack.c.b16 %v1250, %v1249
      %v1263 = vpack.c.b16 %v1252, %v1251
      %v1264 = vpack.c.b16 %v1254, %v1253
      %v1265 = vpack.c.b16 %v1256, %v1255
      %v1266 = vpack.c.b16 %v1258, %v1257
      %1275 = vmatprep.subr.bf16.mxu0 0
      %1276 = vmatpush1.bf16.msra.mxu0 %v1259
      %1277 = vmatprep.subr.bf16.mxu0 0
      %1278 = vmatpush1.bf16.msra.mxu0 %v1260
      %1279 = vmatprep.subr.bf16.mxu0 0
      %1280 = vmatpush1.bf16.msra.mxu0 %v1261
      %1281 = vmatprep.subr.bf16.mxu0 0
      %1282 = vmatpush1.bf16.msra.mxu0 %v1262
      %1283 = vmatprep.subr.bf16.mxu0 0
      %1284 = vmatpush1.bf16.msra.mxu0 %v1263
      %1285 = vmatprep.subr.bf16.mxu0 0
      %1286 = vmatpush1.bf16.msra.mxu0 %v1264
      %1287 = vmatprep.subr.bf16.mxu0 0
      %1288 = vmatpush1.bf16.msra.mxu0 %v1265
      %1289 = vmatprep.subr.bf16.mxu0 0
      %1290 = vmatpush1.bf16.msra.mxu0 %v1266
      %1291 = vmatprep.subr.bf16.mxu0 0
      %1292 = vmatpush1.bf16.msra.mxu0 0
      %1293 = vmatprep.subr.bf16.mxu0 0
      %1294 = vmatpush1.bf16.msra.mxu0 0
      %1295 = vmatprep.subr.bf16.mxu0 0
      %1296 = vmatpush1.bf16.msra.mxu0 0
      %1297 = vmatprep.subr.bf16.mxu0 0
      %1298 = vmatpush1.bf16.msra.mxu0 0
      %1299 = vmatprep.subr.bf16.mxu0 0
      %1300 = vmatpush1.bf16.msra.mxu0 0
      %1301 = vmatprep.subr.bf16.mxu0 0
      %1302 = vmatpush1.bf16.msra.mxu0 0
      %1303 = vmatprep.subr.bf16.mxu0 0
      %1304 = vmatpush1.bf16.msra.mxu0 0
      %1305 = vmatprep.subr.bf16.mxu0 0
      %1306 = vmatpush1.bf16.msra.mxu0 0
      %1307 = vmatprep.mubr.bf16.mxu0 0
      %1308 = vmatmul.mubr.bf16.gmra.mrb[0].mxu0 %v1225
      %v1309 = vpop.f32.mrb[0].mxu0
      %v1310 = vadd.f32 0.0, %v1309
      %v1311 = vpop.f32.mrb[0].mxu0
      %v1312 = vpop.f32.mrb[0].mxu0
      %v1313 = vadd.f32 0.0, %v1312
      %v1314 = vpop.f32.mrb[0].mxu0
      %1315 = vdwg.mxu0
      %v1316 = vadd.f32 %v1203, %v1310
      %v1317 = vadd.f32 %v1204, %v1313
      %v1318 = vld [vmem:[%s4] sm:$0x1]
      %v1320 = vlaneseq
      %v1321 = vshrl.u32 %v1320, 7
      %v1322 = vsub.s32 0, %v1321
      %v1323 = vrot.slane %v1318, %v1322
      %v1325 = vadd.f32 %v1316, %v1323
      %v1326 = vadd.f32 %v1317, %v1323
      %v1327 = vmax.f32 %v1325, 0.0
      %v1328 = vmax.f32 %v1326, 0.0
      %v1329 = vpack.c.bf16 %v1328, %v1327
      %v1331 = vunpack.c.l.b16 %v1329
      %v1332 = vunpack.c.h.b16 %v1329
      %v1333 = vpack.c.b16 %v1331, %v1331
      %v1334 = vpack.c.b16 %v1332, %v1332
      %1337 = vst [vmem:[%s264] sm:$0xf] %v1333
      %1338 = vst [vmem:[%s264 + $0x4] sm:$0xf] %v1334
      %p1339 = scmp.lt.s32.totalorder %s16, 1
      %s1340 = scalar_select %p1339, %s16, 1
      %s1341 = smul.addr %s1340, 2
      %s1342 = smul.addr %s1341, 4
      %s1343 = scalar_lea.vmem %s5, %s1342
      // Predicated region
      $region41: #{backbone_forward.14} parent=39 // pred_check
        %p1344 = pneg %p154
      $region42: #{backbone_forward.14} parent=39 // pred_check_branch
        %1346 = sbr.rel (%p1344) target = $region44
      $region43: #{backbone_forward.14} parent=39 // pred_region
        _
      $region44: #{backbone_forward.14} parent=39 // pred_fallthru
        _
    $region40: #{backbone_forward.14} parent=5 // pred_fallthru
      _
    %p1347 = scmp.le.s32.totalorder 2, %s11
    // Predicated region
    $region45: #{backbone_forward.14} parent=5 // pred_check
      %p1348 = pneg %p1347
    $region46: #{backbone_forward.14} parent=5 // pred_check_branch
      %1350 = sbr.rel (%p1348) target = $region48
    $region47: #{backbone_forward.14} parent=5 // pred_region
      %s1351 = ssub.s32 %s11, 2
      // Predicated region
      $region49: #{backbone_forward.14} parent=47 // pred_check
        %p1352 = pneg %p160
      $region50: #{backbone_forward.14} parent=47 // pred_check_branch
        %1354 = sbr.rel (%p1352) target = $region52
      $region51: #{backbone_forward.14} parent=47 // pred_region
        %p1355 = scmp.lt.s32.totalorder %s17, 1
        %s1356 = scalar_select %p1355, %s17, 1
        %s1357 = smul.addr %s1356, 2
        %s1358 = smul.addr %s1357, 4
        %s1359 = scalar_lea.vmem %s5, %s1358
      $region52: #{backbone_forward.14} parent=47 // pred_fallthru
        _
    $region48: #{backbone_forward.14} parent=5 // pred_fallthru
      _
  $region6: #{backbone_forward.14} parent=0 // loop_footer
    %s15 = sadd.s32 1, %s11
  $region7: #{backbone_forward.14} parent=0 // loop_footer_branch
    %10 = sbr.rel target = $region3
  $region8: #{backbone_forward.14} parent=0 // loop_exit
    _

</llo_original>
